<compile_context>
chip_gen: v7x
topology: tpu7x:2x2x1
jax: 0.10.0
libtpu: 0.0.40
codegen_flags: <defaults>
</compile_context>

<pallas_src>
import jax
import jax.numpy as jnp
from jax.experimental import pallas as pl
from jax.experimental.pallas import tpu as pltpu


# --------------------------- conv block (Pallas) ----------------------------

def conv_block(x, w_torch, b):
    """Conv2d(3x3, stride 1, pad 1) + ReLU fused in Pallas, then 2x2 max-pool.

    x:        (N, H, W, Cin)  bf16, NHWC
    w_torch:  (Cout, Cin, 3, 3) f32   (PyTorch Conv2d layout)
    b:        (Cout,) f32
    returns   (N, H//2, W//2, Cout) bf16
    """
    N, H, W, Cin = x.shape
    Cout = w_torch.shape[0]
    assert H % 2 == 0 and W % 2 == 0, "spatial dims must be even for 2x2 pool"

    Wp = W + 2                # padded row width
    M = H * Wp                # rows of the (width-padded) conv output
    P = (H + 3) * Wp          # rows of the flattened padded image

    # Zero-pad: 1 row top, 2 rows bottom (extra row lets every tap slice stay
    # in-bounds), 1 col left/right.  Then flatten (H+3, W+2) -> P rows.
    xp = jnp.pad(x, ((0, 0), (1, 2), (1, 1), (0, 0))).reshape(N, P, Cin)

    # (Cout, Cin, kh, kw) -> (kh, kw, Cin, Cout) -> (9, Cin, Cout); tap t = dy*3+dx
    w9 = jnp.transpose(w_torch, (2, 3, 1, 0)).reshape(9, Cin, Cout).astype(jnp.float32)
    b2 = b.reshape(1, Cout).astype(jnp.float32)

    def kernel(x_ref, w_ref, b_ref, o_ref, acc_ref):
        # One image per grid step.  bf16 block -> f32 once; the 9 shifted taps
        # are plain static slices of the f32 value (no reshape / no gather).
        xf = x_ref[...].astype(jnp.float32)               # (P, Cin)

        def tap(t):
            dy, dx = divmod(t, 3)
            r0 = dy * Wp + dx
            return jnp.dot(xf[r0:r0 + M, :], w_ref[t],
                           preferred_element_type=jnp.float32)

        acc_ref[...] = tap(0)
        for t in range(1, 9):
            acc_ref[...] += tap(t)

        y = jnp.maximum(acc_ref[...] + b_ref[...], 0.0)    # bias + ReLU (f32)
        o_ref[...] = y.astype(o_ref.dtype)                 # store bf16

    flops = 2 * N * H * W * 9 * Cin * Cout
    bytes_accessed = (N * P * Cin * 2            # bf16 input
                      + N * M * Cout * 2         # bf16 output
                      + 9 * Cin * Cout * 4 + Cout * 4)

    y = pl.pallas_call(
        kernel,
        out_shape=jax.ShapeDtypeStruct((N, M, Cout), jnp.bfloat16),
        grid=(N,),
        in_specs=[
            pl.BlockSpec((None, P, Cin), lambda n: (n, 0, 0)),   # one image
            pl.BlockSpec((9, Cin, Cout), lambda n: (0, 0, 0)),   # resident
            pl.BlockSpec((1, Cout), lambda n: (0, 0)),           # resident
        ],
        out_specs=pl.BlockSpec((None, M, Cout), lambda n: (n, 0, 0)),
        scratch_shapes=[pltpu.VMEM((M, Cout), jnp.float32)],
        compiler_params=pltpu.CompilerParams(
            dimension_semantics=("parallel",),
            vmem_limit_bytes=32 * 1024 * 1024),
        cost_estimate=pl.CostEstimate(flops=flops, transcendentals=0,
                                      bytes_accessed=bytes_accessed),
    )(xp, w9, b2)

    # Drop the 2 garbage columns per row, then 2x2 max-pool (XLA glue).
    y = y.reshape(N, H, Wp, Cout)[:, :, :W, :]
    y = y.reshape(N, H // 2, 2, W // 2, 2, Cout).max(axis=(2, 4))
    return y


# ----------------------------- MLP head (Pallas) ----------------------------

def mlp_head(feat, w1, b1, w2, b2):
    """softmax(relu(feat @ w1 + b1) @ w2 + b2), fused, with a K-tiled fc1."""
    B, D = feat.shape
    H1 = w1.shape[1]
    O = w2.shape[1]

    DK = D
    for cand in (512, 256, 128):
        if D % cand == 0:
            DK = cand
            break
    n_k = D // DK

    def kernel(x_ref, w1_ref, b1_ref, w2_ref, b2_ref, o_ref, acc_ref):
        k = pl.program_id(0)

        @pl.when(k == 0)
        def _():
            acc_ref[...] = jnp.zeros_like(acc_ref)

        acc_ref[...] += jnp.dot(x_ref[...], w1_ref[...],
                                preferred_element_type=jnp.float32)

        @pl.when(k == pl.num_programs(0) - 1)
        def _():
            h = jnp.maximum(acc_ref[...] + b1_ref[...], 0.0)
            logits = jnp.dot(h.astype(w2_ref.dtype), w2_ref[...],
                             preferred_element_type=jnp.float32) + b2_ref[...]
            m = jnp.max(logits, axis=-1, keepdims=True)
            e = jnp.exp(logits - m)
            denom = jnp.sum(e, axis=-1, keepdims=True)
            o_ref[...] = (e * pl.reciprocal(denom, approx=True)).astype(o_ref.dtype)

    return pl.pallas_call(
        kernel,
        out_shape=jax.ShapeDtypeStruct((B, O), jnp.float32),
        grid=(n_k,),
        in_specs=[
            pl.BlockSpec((B, DK), lambda k: (0, k)),
            pl.BlockSpec((DK, H1), lambda k: (k, 0)),
            pl.BlockSpec((1, H1), lambda k: (0, 0)),
            pl.BlockSpec((H1, O), lambda k: (0, 0)),
            pl.BlockSpec((1, O), lambda k: (0, 0)),
        ],
        out_specs=pl.BlockSpec((B, O), lambda k: (0, 0)),
        scratch_shapes=[pltpu.VMEM((B, H1), jnp.float32)],
        compiler_params=pltpu.CompilerParams(
            dimension_semantics=("arbitrary",),
            vmem_limit_bytes=32 * 1024 * 1024),
        cost_estimate=pl.CostEstimate(
            flops=2 * B * D * H1 + 2 * B * H1 * O,
            transcendentals=B * O,
            bytes_accessed=B * D * 2 + D * H1 * 2 + H1 * 4 + H1 * O * 2
            + O * 4 + B * O * 4),
    )(feat, w1, b1, w2, b2)


# ------------------------------- forward pass -------------------------------

def cnn_forward(x_nchw, p, img_size):
    assert img_size % 8 == 0, "img_size must be divisible by 8"
    fi = img_size // 8
    N = x_nchw.shape[0]

    x = jnp.transpose(x_nchw, (0, 2, 3, 1)).astype(jnp.bfloat16)   # NCHW->NHWC
    x = conv_block(x, p["conv1_w"], p["conv1_b"])                  # (N,H/2,W/2,16)
    x = conv_block(x, p["conv2_w"], p["conv2_b"])                  # (N,H/4,W/4,32)
    x = conv_block(x, p["conv3_w"], p["conv3_b"])                  # (N,H/8,W/8,64)

    # Match torch's flatten of NCHW: feature order (C, H, W).
    feat = jnp.transpose(x, (0, 3, 1, 2)).reshape(N, fi * fi * 64)

    # torch Linear: y = x @ W.T + b  -> pass transposed weights (bf16 MXU path).
    w1 = p["fc1_w"].T.astype(jnp.bfloat16)
    b1 = p["fc1_b"].reshape(1, -1).astype(jnp.float32)
    w2 = p["fc2_w"].T.astype(jnp.bfloat16)
    b2 = p["fc2_b"].reshape(1, -1).astype(jnp.float32)
    return mlp_head(feat, w1, b1, w2, b2)


# --------------------------- deterministic params ---------------------------

def init_params(key, img_size):
    fi = img_size // 8
    ks = jax.random.split(key, 10)

    def w(k, shape, scale):
        return (scale * jax.random.normal(k, shape)).astype(jnp.float32)

    d1_in = fi * fi * 64
    d1_out = fi * fi * 16
    return {
        # torch Conv2d weight layout: (Cout, Cin, kh, kw)
        "conv1_w": w(ks[0], (16, 3, 3, 3), 0.10),
        "conv1_b": w(ks[1], (16,), 0.10),
        "conv2_w": w(ks[2], (32, 16, 3, 3), 0.05),
        "conv2_b": w(ks[3], (32,), 0.05),
        "conv3_w": w(ks[4], (64, 32, 3, 3), 0.05),
        "conv3_b": w(ks[5], (64,), 0.05),
        # torch Linear weight layout: (out_features, in_features)
        "fc1_w": w(ks[6], (d1_out, d1_in), 0.05),
        "fc1_b": w(ks[7], (d1_out,), 0.05),
        "fc2_w": w(ks[8], (2, d1_out), 0.05),
        "fc2_b": w(ks[9], (2,), 0.05),
    }


if __name__ == "__main__":
    IMG_SIZE = 16          # divisible by 8 -> final_img_size = 2
    BATCH = 2

    key = jax.random.PRNGKey(0)
    k_x, k_p = jax.random.split(key)
    x = jax.random.normal(k_x, (BATCH, 3, IMG_SIZE, IMG_SIZE), dtype=jnp.float32)
    params = init_params(k_p, IMG_SIZE)

    out = cnn_forward(x, params, IMG_SIZE)
    out = jax.block_until_ready(out)

    assert out.shape == (BATCH, 2), out.shape
    assert bool(jnp.all(jnp.isfinite(out)))
    # softmax rows must sum to ~1 (approx reciprocal + bf16 -> loose atol)
    assert jnp.allclose(jnp.sum(out, axis=-1), 1.0, atol=5e-3)
    print("KERNEL_OK")
</pallas_src>

<mosaic_0001>
module attributes {stable_mosaic.version = 11 : i64} {
  func.func @kernel(%arg0: i32, %arg1: memref<1x342x3xbf16, #tpu.memory_space<vmem>>, %arg2: memref<9x3x16xf32, #tpu.memory_space<vmem>>, %arg3: memref<1x16xf32, #tpu.memory_space<vmem>>, %arg4: memref<1x288x16xbf16, #tpu.memory_space<vmem>>, %arg5: memref<288x16xf32, #tpu.memory_space<vmem>>) attributes {dimension_semantics = [#tpu.dimension_semantics<parallel>], iteration_bounds = array<i64: 2>, scalar_prefetch = 0 : i64, scratch_operands = 1 : i64, tpu.core_type = #tpu.core_type<tc>, window_params = [{transform_indices = @transform_0, window_bounds = array<i64: 1, 342, 3>}, {pipeline_mode = #tpu.pipeline_mode<synchronous>, transform_indices = @transform_1, window_bounds = array<i64: 9, 3, 16>}, {pipeline_mode = #tpu.pipeline_mode<synchronous>, transform_indices = @transform_2, window_bounds = array<i64: 1, 16>}, {transform_indices = @transform_3, window_bounds = array<i64: 1, 288, 16>}]} {
    %c0 = arith.constant 0 : index
    %c0_0 = arith.constant 0 : index
    %c0_1 = arith.constant 0 : index
    %0 = vector.load %arg1[%c0, %c0_0, %c0_1] : memref<1x342x3xbf16, #tpu.memory_space<vmem>>, vector<1x342x3xbf16>
    %1 = vector.shape_cast %0 : vector<1x342x3xbf16> to vector<342x3xbf16>
    %2 = arith.extf %1 : vector<342x3xbf16> to vector<342x3xf32>
    %3 = vector.extract_strided_slice %2 {offsets = [0, 0], sizes = [288, 3], strides = [1, 1]} : vector<342x3xf32> to vector<288x3xf32>
    %c0_2 = arith.constant 0 : index
    %c0_3 = arith.constant 0 : index
    %c0_4 = arith.constant 0 : index
    %4 = vector.load %arg2[%c0_2, %c0_3, %c0_4] : memref<9x3x16xf32, #tpu.memory_space<vmem>>, vector<1x3x16xf32>
    %5 = vector.shape_cast %4 : vector<1x3x16xf32> to vector<3x16xf32>
    %cst = arith.constant dense<0.000000e+00> : vector<288x16xf32>
    %6 = tpu.matmul %3, %5, %cst {dimension_numbers = #tpu.dot_dimension_numbers<[1], [0], [0], [1], [0, 0, 1, 1], [], []>} : vector<288x3xf32>, vector<3x16xf32>, vector<288x16xf32> -> vector<288x16xf32>
    %c0_5 = arith.constant 0 : index
    %c0_6 = arith.constant 0 : index
    %7 = vector.load %arg5[%c0_5, %c0_6] : memref<288x16xf32, #tpu.memory_space<vmem>>, vector<288x16xf32>
    tpu.vector_store %arg5[%c0_5, %c0_6], %6 {strides = array<i32>} : memref<288x16xf32, #tpu.memory_space<vmem>>, vector<288x16xf32>,
    %c0_7 = arith.constant 0 : index
    %c0_8 = arith.constant 0 : index
    %8 = vector.load %arg5[%c0_7, %c0_8] : memref<288x16xf32, #tpu.memory_space<vmem>>, vector<288x16xf32>
    %9 = vector.extract_strided_slice %2 {offsets = [1, 0], sizes = [288, 3], strides = [1, 1]} : vector<342x3xf32> to vector<288x3xf32>
    %c1 = arith.constant 1 : index
    %c0_9 = arith.constant 0 : index
    %c0_10 = arith.constant 0 : index
    %10 = vector.load %arg2[%c1, %c0_9, %c0_10] : memref<9x3x16xf32, #tpu.memory_space<vmem>>, vector<1x3x16xf32>
    %11 = vector.shape_cast %10 : vector<1x3x16xf32> to vector<3x16xf32>
    %cst_11 = arith.constant dense<0.000000e+00> : vector<288x16xf32>
    %12 = tpu.matmul %9, %11, %cst_11 {dimension_numbers = #tpu.dot_dimension_numbers<[1], [0], [0], [1], [0, 0, 1, 1], [], []>} : vector<288x3xf32>, vector<3x16xf32>, vector<288x16xf32> -> vector<288x16xf32>
    %13 = arith.addf %8, %12 : vector<288x16xf32>
    %c0_12 = arith.constant 0 : index
    %c0_13 = arith.constant 0 : index
    %14 = vector.load %arg5[%c0_12, %c0_13] : memref<288x16xf32, #tpu.memory_space<vmem>>, vector<288x16xf32>
    tpu.vector_store %arg5[%c0_12, %c0_13], %13 {strides = array<i32>} : memref<288x16xf32, #tpu.memory_space<vmem>>, vector<288x16xf32>,
    %c0_14 = arith.constant 0 : index
    %c0_15 = arith.constant 0 : index
    %15 = vector.load %arg5[%c0_14, %c0_15] : memref<288x16xf32, #tpu.memory_space<vmem>>, vector<288x16xf32>
    %16 = vector.extract_strided_slice %2 {offsets = [2, 0], sizes = [288, 3], strides = [1, 1]} : vector<342x3xf32> to vector<288x3xf32>
    %c2 = arith.constant 2 : index
    %c0_16 = arith.constant 0 : index
    %c0_17 = arith.constant 0 : index
    %17 = vector.load %arg2[%c2, %c0_16, %c0_17] : memref<9x3x16xf32, #tpu.memory_space<vmem>>, vector<1x3x16xf32>
    %18 = vector.shape_cast %17 : vector<1x3x16xf32> to vector<3x16xf32>
    %cst_18 = arith.constant dense<0.000000e+00> : vector<288x16xf32>
    %19 = tpu.matmul %16, %18, %cst_18 {dimension_numbers = #tpu.dot_dimension_numbers<[1], [0], [0], [1], [0, 0, 1, 1], [], []>} : vector<288x3xf32>, vector<3x16xf32>, vector<288x16xf32> -> vector<288x16xf32>
    %20 = arith.addf %15, %19 : vector<288x16xf32>
    %c0_19 = arith.constant 0 : index
    %c0_20 = arith.constant 0 : index
    %21 = vector.load %arg5[%c0_19, %c0_20] : memref<288x16xf32, #tpu.memory_space<vmem>>, vector<288x16xf32>
    tpu.vector_store %arg5[%c0_19, %c0_20], %20 {strides = array<i32>} : memref<288x16xf32, #tpu.memory_space<vmem>>, vector<288x16xf32>,
    %c0_21 = arith.constant 0 : index
    %c0_22 = arith.constant 0 : index
    %22 = vector.load %arg5[%c0_21, %c0_22] : memref<288x16xf32, #tpu.memory_space<vmem>>, vector<288x16xf32>
    %23 = vector.extract_strided_slice %2 {offsets = [18, 0], sizes = [288, 3], strides = [1, 1]} : vector<342x3xf32> to vector<288x3xf32>
    %c3 = arith.constant 3 : index
    %c0_23 = arith.constant 0 : index
    %c0_24 = arith.constant 0 : index
    %24 = vector.load %arg2[%c3, %c0_23, %c0_24] : memref<9x3x16xf32, #tpu.memory_space<vmem>>, vector<1x3x16xf32>
    %25 = vector.shape_cast %24 : vector<1x3x16xf32> to vector<3x16xf32>
    %cst_25 = arith.constant dense<0.000000e+00> : vector<288x16xf32>
    %26 = tpu.matmul %23, %25, %cst_25 {dimension_numbers = #tpu.dot_dimension_numbers<[1], [0], [0], [1], [0, 0, 1, 1], [], []>} : vector<288x3xf32>, vector<3x16xf32>, vector<288x16xf32> -> vector<288x16xf32>
    %27 = arith.addf %22, %26 : vector<288x16xf32>
    %c0_26 = arith.constant 0 : index
    %c0_27 = arith.constant 0 : index
    %28 = vector.load %arg5[%c0_26, %c0_27] : memref<288x16xf32, #tpu.memory_space<vmem>>, vector<288x16xf32>
    tpu.vector_store %arg5[%c0_26, %c0_27], %27 {strides = array<i32>} : memref<288x16xf32, #tpu.memory_space<vmem>>, vector<288x16xf32>,
    %c0_28 = arith.constant 0 : index
    %c0_29 = arith.constant 0 : index
    %29 = vector.load %arg5[%c0_28, %c0_29] : memref<288x16xf32, #tpu.memory_space<vmem>>, vector<288x16xf32>
    %30 = vector.extract_strided_slice %2 {offsets = [19, 0], sizes = [288, 3], strides = [1, 1]} : vector<342x3xf32> to vector<288x3xf32>
    %c4 = arith.constant 4 : index
    %c0_30 = arith.constant 0 : index
    %c0_31 = arith.constant 0 : index
    %31 = vector.load %arg2[%c4, %c0_30, %c0_31] : memref<9x3x16xf32, #tpu.memory_space<vmem>>, vector<1x3x16xf32>
    %32 = vector.shape_cast %31 : vector<1x3x16xf32> to vector<3x16xf32>
    %cst_32 = arith.constant dense<0.000000e+00> : vector<288x16xf32>
    %33 = tpu.matmul %30, %32, %cst_32 {dimension_numbers = #tpu.dot_dimension_numbers<[1], [0], [0], [1], [0, 0, 1, 1], [], []>} : vector<288x3xf32>, vector<3x16xf32>, vector<288x16xf32> -> vector<288x16xf32>
    %34 = arith.addf %29, %33 : vector<288x16xf32>
    %c0_33 = arith.constant 0 : index
    %c0_34 = arith.constant 0 : index
    %35 = vector.load %arg5[%c0_33, %c0_34] : memref<288x16xf32, #tpu.memory_space<vmem>>, vector<288x16xf32>
    tpu.vector_store %arg5[%c0_33, %c0_34], %34 {strides = array<i32>} : memref<288x16xf32, #tpu.memory_space<vmem>>, vector<288x16xf32>,
    %c0_35 = arith.constant 0 : index
    %c0_36 = arith.constant 0 : index
    %36 = vector.load %arg5[%c0_35, %c0_36] : memref<288x16xf32, #tpu.memory_space<vmem>>, vector<288x16xf32>
    %37 = vector.extract_strided_slice %2 {offsets = [20, 0], sizes = [288, 3], strides = [1, 1]} : vector<342x3xf32> to vector<288x3xf32>
    %c5 = arith.constant 5 : index
    %c0_37 = arith.constant 0 : index
    %c0_38 = arith.constant 0 : index
    %38 = vector.load %arg2[%c5, %c0_37, %c0_38] : memref<9x3x16xf32, #tpu.memory_space<vmem>>, vector<1x3x16xf32>
    %39 = vector.shape_cast %38 : vector<1x3x16xf32> to vector<3x16xf32>
    %cst_39 = arith.constant dense<0.000000e+00> : vector<288x16xf32>
    %40 = tpu.matmul %37, %39, %cst_39 {dimension_numbers = #tpu.dot_dimension_numbers<[1], [0], [0], [1], [0, 0, 1, 1], [], []>} : vector<288x3xf32>, vector<3x16xf32>, vector<288x16xf32> -> vector<288x16xf32>
    %41 = arith.addf %36, %40 : vector<288x16xf32>
    %c0_40 = arith.constant 0 : index
    %c0_41 = arith.constant 0 : index
    %42 = vector.load %arg5[%c0_40, %c0_41] : memref<288x16xf32, #tpu.memory_space<vmem>>, vector<288x16xf32>
    tpu.vector_store %arg5[%c0_40, %c0_41], %41 {strides = array<i32>} : memref<288x16xf32, #tpu.memory_space<vmem>>, vector<288x16xf32>,
    %c0_42 = arith.constant 0 : index
    %c0_43 = arith.constant 0 : index
    %43 = vector.load %arg5[%c0_42, %c0_43] : memref<288x16xf32, #tpu.memory_space<vmem>>, vector<288x16xf32>
    %44 = vector.extract_strided_slice %2 {offsets = [36, 0], sizes = [288, 3], strides = [1, 1]} : vector<342x3xf32> to vector<288x3xf32>
    %c6 = arith.constant 6 : index
    %c0_44 = arith.constant 0 : index
    %c0_45 = arith.constant 0 : index
    %45 = vector.load %arg2[%c6, %c0_44, %c0_45] : memref<9x3x16xf32, #tpu.memory_space<vmem>>, vector<1x3x16xf32>
    %46 = vector.shape_cast %45 : vector<1x3x16xf32> to vector<3x16xf32>
    %cst_46 = arith.constant dense<0.000000e+00> : vector<288x16xf32>
    %47 = tpu.matmul %44, %46, %cst_46 {dimension_numbers = #tpu.dot_dimension_numbers<[1], [0], [0], [1], [0, 0, 1, 1], [], []>} : vector<288x3xf32>, vector<3x16xf32>, vector<288x16xf32> -> vector<288x16xf32>
    %48 = arith.addf %43, %47 : vector<288x16xf32>
    %c0_47 = arith.constant 0 : index
    %c0_48 = arith.constant 0 : index
    %49 = vector.load %arg5[%c0_47, %c0_48] : memref<288x16xf32, #tpu.memory_space<vmem>>, vector<288x16xf32>
    tpu.vector_store %arg5[%c0_47, %c0_48], %48 {strides = array<i32>} : memref<288x16xf32, #tpu.memory_space<vmem>>, vector<288x16xf32>,
    %c0_49 = arith.constant 0 : index
    %c0_50 = arith.constant 0 : index
    %50 = vector.load %arg5[%c0_49, %c0_50] : memref<288x16xf32, #tpu.memory_space<vmem>>, vector<288x16xf32>
    %51 = vector.extract_strided_slice %2 {offsets = [37, 0], sizes = [288, 3], strides = [1, 1]} : vector<342x3xf32> to vector<288x3xf32>
    %c7 = arith.constant 7 : index
    %c0_51 = arith.constant 0 : index
    %c0_52 = arith.constant 0 : index
    %52 = vector.load %arg2[%c7, %c0_51, %c0_52] : memref<9x3x16xf32, #tpu.memory_space<vmem>>, vector<1x3x16xf32>
    %53 = vector.shape_cast %52 : vector<1x3x16xf32> to vector<3x16xf32>
    %cst_53 = arith.constant dense<0.000000e+00> : vector<288x16xf32>
    %54 = tpu.matmul %51, %53, %cst_53 {dimension_numbers = #tpu.dot_dimension_numbers<[1], [0], [0], [1], [0, 0, 1, 1], [], []>} : vector<288x3xf32>, vector<3x16xf32>, vector<288x16xf32> -> vector<288x16xf32>
    %55 = arith.addf %50, %54 : vector<288x16xf32>
    %c0_54 = arith.constant 0 : index
    %c0_55 = arith.constant 0 : index
    %56 = vector.load %arg5[%c0_54, %c0_55] : memref<288x16xf32, #tpu.memory_space<vmem>>, vector<288x16xf32>
    tpu.vector_store %arg5[%c0_54, %c0_55], %55 {strides = array<i32>} : memref<288x16xf32, #tpu.memory_space<vmem>>, vector<288x16xf32>,
    %c0_56 = arith.constant 0 : index
    %c0_57 = arith.constant 0 : index
    %57 = vector.load %arg5[%c0_56, %c0_57] : memref<288x16xf32, #tpu.memory_space<vmem>>, vector<288x16xf32>
    %58 = vector.extract_strided_slice %2 {offsets = [38, 0], sizes = [288, 3], strides = [1, 1]} : vector<342x3xf32> to vector<288x3xf32>
    %c8 = arith.constant 8 : index
    %c0_58 = arith.constant 0 : index
    %c0_59 = arith.constant 0 : index
    %59 = vector.load %arg2[%c8, %c0_58, %c0_59] : memref<9x3x16xf32, #tpu.memory_space<vmem>>, vector<1x3x16xf32>
    %60 = vector.shape_cast %59 : vector<1x3x16xf32> to vector<3x16xf32>
    %cst_60 = arith.constant dense<0.000000e+00> : vector<288x16xf32>
    %61 = tpu.matmul %58, %60, %cst_60 {dimension_numbers = #tpu.dot_dimension_numbers<[1], [0], [0], [1], [0, 0, 1, 1], [], []>} : vector<288x3xf32>, vector<3x16xf32>, vector<288x16xf32> -> vector<288x16xf32>
    %62 = arith.addf %57, %61 : vector<288x16xf32>
    %c0_61 = arith.constant 0 : index
    %c0_62 = arith.constant 0 : index
    %63 = vector.load %arg5[%c0_61, %c0_62] : memref<288x16xf32, #tpu.memory_space<vmem>>, vector<288x16xf32>
    tpu.vector_store %arg5[%c0_61, %c0_62], %62 {strides = array<i32>} : memref<288x16xf32, #tpu.memory_space<vmem>>, vector<288x16xf32>,
    %c0_63 = arith.constant 0 : index
    %c0_64 = arith.constant 0 : index
    %64 = vector.load %arg5[%c0_63, %c0_64] : memref<288x16xf32, #tpu.memory_space<vmem>>, vector<288x16xf32>
    %c0_65 = arith.constant 0 : index
    %c0_66 = arith.constant 0 : index
    %65 = vector.load %arg3[%c0_65, %c0_66] : memref<1x16xf32, #tpu.memory_space<vmem>>, vector<1x16xf32>
    %66 = vector.broadcast %65 : vector<1x16xf32> to vector<288x16xf32>
    %67 = arith.addf %64, %66 : vector<288x16xf32>
    %cst_67 = arith.constant 0.000000e+00 : f32
    %68 = vector.broadcast %cst_67 : f32 to vector<288x16xf32>
    %69 = arith.maximumf %67, %68 : vector<288x16xf32>
    %70 = arith.truncf %69 : vector<288x16xf32> to vector<288x16xbf16>
    %c0_68 = arith.constant 0 : index
    %c0_69 = arith.constant 0 : index
    %c0_70 = arith.constant 0 : index
    %71 = vector.load %arg4[%c0_68, %c0_69, %c0_70] : memref<1x288x16xbf16, #tpu.memory_space<vmem>>, vector<1x288x16xbf16>
    %72 = vector.shape_cast %71 : vector<1x288x16xbf16> to vector<288x16xbf16>
    %73 = vector.shape_cast %70 : vector<288x16xbf16> to vector<1x288x16xbf16>
    tpu.vector_store %arg4[%c0_68, %c0_69, %c0_70], %73 {strides = array<i32>} : memref<1x288x16xbf16, #tpu.memory_space<vmem>>, vector<1x288x16xbf16>,
    return
  }
  func.func @transform_0(%arg0: i32) -> (i32, i32, i32) {
    %c0_i32 = arith.constant 0 : i32
    %c0_i32_0 = arith.constant 0 : i32
    %c0_i32_1 = arith.constant 0 : i32
    return %arg0, %c0_i32, %c0_i32_0 : i32, i32, i32
  }
  func.func @transform_1(%arg0: i32) -> (i32, i32, i32) {
    %c0_i32 = arith.constant 0 : i32
    %c0_i32_0 = arith.constant 0 : i32
    %c0_i32_1 = arith.constant 0 : i32
    %c0_i32_2 = arith.constant 0 : i32
    return %c0_i32, %c0_i32_0, %c0_i32_1 : i32, i32, i32
  }
  func.func @transform_2(%arg0: i32) -> (i32, i32) {
    %c0_i32 = arith.constant 0 : i32
    %c0_i32_0 = arith.constant 0 : i32
    %c0_i32_1 = arith.constant 0 : i32
    return %c0_i32, %c0_i32_0 : i32, i32
  }
  func.func @transform_3(%arg0: i32) -> (i32, i32, i32) {
    %c0_i32 = arith.constant 0 : i32
    %c0_i32_0 = arith.constant 0 : i32
    %c0_i32_1 = arith.constant 0 : i32
    return %arg0, %c0_i32, %c0_i32_0 : i32, i32, i32
  }
}

</mosaic_0001>

<llo_original>
// kernel: tpu_custom_call.1
$region0: #{tpu_custom_call.1}
  #allocation0 [shape = 'u32[]', space=smem, size = 0x4, offset = 0x4, fixed_abs, tag = 'smem constant byte address 0x4 - core index']
  #allocation1 [shape = 'u32[144,128]{1,0:T(1,128)}', space=vmem, size = 0x12000, scoped, tag = 'internal scratch']
  #allocation2 [shape = 'f32[288,16]{1,0:T(8,128)}', space=vmem, size = 0x24000, scoped, tag = 'scratch operand']
  %s0 = inlined_call_operand.vmem [shape: bf16[2,342,3], index: 0, kind: input, shape index: {}]
  %s1 = inlined_call_operand.vmem [shape: f32[9,3,16], index: 1, kind: input, shape index: {}]
  %s2 = inlined_call_operand.vmem [shape: f32[1,16], index: 2, kind: input, shape index: {}]
  %s3 = inlined_call_operand.vmem [shape: bf16[2,288,16], index: 3, kind: output, shape index: {}]
  %s4 = sld [smem:[#allocation0]]
  $region45: #{tpu_custom_call.1} parent=0
    _
  %s6 = ssub.s32 1, %s4
  %s7 = scalar_select 0, %s6, %s4
  loop: start=0, step=1, limit=4
  $region2: #{tpu_custom_call.1} parent=0 // loop_pre_header
    _
  $region3: #{tpu_custom_call.1} parent=0 // loop_header
    %s9 = sphi 0, %s13
    %p10 = scmp.ge.s32.totalorder %s9, 4
    %s19 = sphi 0, %s21
    %s22 = sphi 0, %s19
    %s23 = sphi 0, %s22
    %s39 = sphi 0, %s23
    %s43 = sphi 0, %s43
    %s45 = sphi 0, %s43
    %s46 = sphi 0, %s45
    %s60 = sphi 0, %s46
    %s64 = sphi 0, %s64
    %s66 = sphi 0, %s64
    %s67 = sphi 0, %s66
    %s81 = sphi 0, %s67
    %s87 = sphi 0, %s89
    %s90 = sphi 0, %s87
    %s91 = sphi 0, %s90
    %s107 = sphi 0, %s91
  $region4: #{tpu_custom_call.1} parent=0 // loop_header_branch
    %12 = sbr.rel (%p10) target = $region8
  $region5: #{tpu_custom_call.1} parent=0 // loop_body
    %s14 = ssub.s32 %s9, 1
    %s15 = ssub.s32 %s9, 2
    %s16 = sadd.s32 %s9, 1
    %s17 = ssub.s32 %s9, %s16
    %p18 = scmp.eq.s32.totalorder %s17, 0
    %s20 = sadd.s32 %s19, 1
    %s21 = scalar_select %p18, %s19, %s20
    %p24 = pneg %p18
    %p25 = scmp.eq.s32.totalorder %s9, 1
    %p26 = por %p24, %p25
    %p27 = scmp.ne.s32.totalorder %s19, %s22
    %p28 = scmp.eq.s32.totalorder %s9, 0
    %p29 = por %p27, %p28
    %p30 = scmp.ne.s32.totalorder %s19, %s22
    %p31 = scmp.eq.s32.totalorder %s14, 1
    %p32 = por %p30, %p31
    %p33 = scmp.ne.s32.totalorder %s22, %s23
    %p34 = scmp.eq.s32.totalorder %s14, 0
    %p35 = por %p33, %p34
    %p36 = scmp.ne.s32.totalorder %s22, %s23
    %p37 = scmp.eq.s32.totalorder %s15, 1
    %p38 = por %p36, %p37
    %p40 = scmp.ne.s32.totalorder %s23, %s39
    %p41 = scmp.eq.s32.totalorder %s15, 0
    %p42 = por %p40, %p41
    %s44 = sadd.s32 %s43, 1
    %p47 = scmp.eq.s32.totalorder %s9, 1
    %p48 = scmp.ne.s32.totalorder %s43, %s45
    %p49 = scmp.eq.s32.totalorder %s9, 0
    %p50 = por %p48, %p49
    %p51 = scmp.ne.s32.totalorder %s43, %s45
    %p52 = scmp.eq.s32.totalorder %s14, 1
    %p53 = por %p51, %p52
    %p54 = scmp.ne.s32.totalorder %s45, %s46
    %p55 = scmp.eq.s32.totalorder %s14, 0
    %p56 = por %p54, %p55
    %p57 = scmp.ne.s32.totalorder %s45, %s46
    %p58 = scmp.eq.s32.totalorder %s15, 1
    %p59 = por %p57, %p58
    %p61 = scmp.ne.s32.totalorder %s46, %s60
    %p62 = scmp.eq.s32.totalorder %s15, 0
    %p63 = por %p61, %p62
    %s65 = sadd.s32 %s64, 1
    %p68 = scmp.eq.s32.totalorder %s9, 1
    %p69 = scmp.ne.s32.totalorder %s64, %s66
    %p70 = scmp.eq.s32.totalorder %s9, 0
    %p71 = por %p69, %p70
    %p72 = scmp.ne.s32.totalorder %s64, %s66
    %p73 = scmp.eq.s32.totalorder %s14, 1
    %p74 = por %p72, %p73
    %p75 = scmp.ne.s32.totalorder %s66, %s67
    %p76 = scmp.eq.s32.totalorder %s14, 0
    %p77 = por %p75, %p76
    %p78 = scmp.ne.s32.totalorder %s66, %s67
    %p79 = scmp.eq.s32.totalorder %s15, 1
    %p80 = por %p78, %p79
    %p82 = scmp.ne.s32.totalorder %s67, %s81
    %p83 = scmp.eq.s32.totalorder %s15, 0
    %p84 = por %p82, %p83
    %s85 = ssub.s32 %s9, %s16
    %p86 = scmp.eq.s32.totalorder %s85, 0
    %s88 = sadd.s32 %s87, 1
    %s89 = scalar_select %p86, %s87, %s88
    %p92 = pneg %p86
    %p93 = scmp.eq.s32.totalorder %s9, 1
    %p94 = por %p92, %p93
    %p95 = scmp.ne.s32.totalorder %s87, %s90
    %p96 = scmp.eq.s32.totalorder %s9, 0
    %p97 = por %p95, %p96
    %p98 = scmp.ne.s32.totalorder %s87, %s90
    %p99 = scmp.eq.s32.totalorder %s14, 1
    %p100 = por %p98, %p99
    %p101 = scmp.ne.s32.totalorder %s90, %s91
    %p102 = scmp.eq.s32.totalorder %s14, 0
    %p103 = por %p101, %p102
    %p104 = scmp.ne.s32.totalorder %s90, %s91
    %p105 = scmp.eq.s32.totalorder %s15, 1
    %p106 = por %p104, %p105
    %p108 = scmp.ne.s32.totalorder %s91, %s107
    %p109 = scmp.eq.s32.totalorder %s15, 0
    %p110 = por %p108, %p109
    %p111 = scmp.le.s32.totalorder 1, %s9
    %p112 = scmp.lt.s32.totalorder %s9, 3
    %p113 = pnand %p111, %p112
    %p114 = pneg %p113
    // Predicated region
    $region9: #{tpu_custom_call.1} parent=5 // pred_check
      _
    $region10: #{tpu_custom_call.1} parent=5 // pred_check_branch
      %116 = sbr.rel (%p113) target = $region12
    $region11: #{tpu_custom_call.1} parent=5 // pred_region
      %s117 = ssub.s32 %s9, 1
      // Predicated region
      $region13: #{tpu_custom_call.1} parent=11 // pred_check
        %p118 = pneg %p56
      $region14: #{tpu_custom_call.1} parent=11 // pred_check_branch
        %120 = sbr.rel (%p118) target = $region16
      $region15: #{tpu_custom_call.1} parent=11 // pred_region
        _
      $region16: #{tpu_custom_call.1} parent=11 // pred_fallthru
        _
      // Predicated region
      $region17: #{tpu_custom_call.1} parent=11 // pred_check
        %p121 = pneg %p77
      $region18: #{tpu_custom_call.1} parent=11 // pred_check_branch
        %123 = sbr.rel (%p121) target = $region20
      $region19: #{tpu_custom_call.1} parent=11 // pred_region
        _
      $region20: #{tpu_custom_call.1} parent=11 // pred_fallthru
        _
    $region12: #{tpu_custom_call.1} parent=5 // pred_fallthru
      _
    %p124 = scmp.lt.s32.totalorder %s9, 2
    // Predicated region
    $region21: #{tpu_custom_call.1} parent=5 // pred_check
      %p125 = pneg %p124
    $region22: #{tpu_custom_call.1} parent=5 // pred_check_branch
      %127 = sbr.rel (%p125) target = $region24
    $region23: #{tpu_custom_call.1} parent=5 // pred_region
      // Predicated region
      $region25: #{tpu_custom_call.1} parent=23 // pred_check
        %p128 = pneg %p29
      $region26: #{tpu_custom_call.1} parent=23 // pred_check_branch
        %130 = sbr.rel (%p128) target = $region28
      $region27: #{tpu_custom_call.1} parent=23 // pred_region
        %p131 = scmp.lt.s32.totalorder %s9, 1
        %s132 = scalar_select %p131, %s9, 1
        %s133 = smul.addr %s132, 43
        %s134 = smul.addr %s133, 4
        %s135 = scalar_lea.vmem %s0, %s134
      $region28: #{tpu_custom_call.1} parent=23 // pred_fallthru
        _
    $region24: #{tpu_custom_call.1} parent=5 // pred_fallthru
      _
    %p136 = scmp.le.s32.totalorder 1, %s9
    %p137 = scmp.lt.s32.totalorder %s9, 3
    %p138 = pnand %p136, %p137
    %p139 = pneg %p138
    // Predicated region
    $region29: #{tpu_custom_call.1} parent=5 // pred_check
      _
    $region30: #{tpu_custom_call.1} parent=5 // pred_check_branch
      %141 = sbr.rel (%p138) target = $region32
    $region31: #{tpu_custom_call.1} parent=5 // pred_region
      %s142 = ssub.s32 %s9, 1
      %p143 = scmp.lt.s32.totalorder %s14, 1
      %s144 = scalar_select %p143, %s14, 1
      %s145 = smul.addr %s144, 43
      %s146 = smul.addr %s145, 4
      %s147 = scalar_lea.vmem %s0, %s146
      %p148 = pneg %p35
      %p149 = pneg %p32
      %p150 = pneg %p56
      %p151 = pneg %p53
      %p152 = pneg %p77
      %p153 = pneg %p74
      %p154 = pneg %p103
      %p155 = pneg %p100
      %p156 = scmp.lt.s32.totalorder %s14, 1
      %s157 = scalar_select %p156, %s14, 1
      %s158 = smul.addr %s157, 36
      %s159 = smul.addr %s158, 4
      %s160 = scalar_lea.vmem %s3, %s159
      %p161 = scmp.lt.s32.totalorder %s14, 1
      %s162 = scalar_select %p161, %s14, 1
      %s163 = smul.addr %s162, 43
      %s164 = smul.addr %s163, 4
      %s165 = scalar_lea.vmem %s0, %s164
      %p166 = scmp.lt.s32.totalorder %s14, 1
      %s167 = scalar_select %p166, %s14, 1
      %s168 = smul.addr %s167, 36
      %s169 = smul.addr %s168, 4
      %s170 = scalar_lea.vmem %s3, %s169
      %v171 = vld [vmem:[%s165] sm:$0xf]
      %v172 = vld [vmem:[%s165 + $0x4] sm:$0xf]
      %v173 = vld [vmem:[%s165 + $0x8] sm:$0xf]
      %v174 = vld [vmem:[%s165 + $0xc] sm:$0xf]
      %v175 = vld [vmem:[%s165 + $0x10] sm:$0xf]
      %v176 = vld [vmem:[%s165 + $0x14] sm:$0xf]
      %v177 = vld [vmem:[%s165 + $0x18] sm:$0xf]
      %v178 = vld [vmem:[%s165 + $0x1c] sm:$0xf]
      %v179 = vld [vmem:[%s165 + $0x20] sm:$0xf]
      %v180 = vld [vmem:[%s165 + $0x24] sm:$0xf]
      %v181 = vld [vmem:[%s165 + $0x28] sm:$0xf]
      %v182 = vld [vmem:[%s165 + $0x2c] sm:$0xf]
      %v183 = vld [vmem:[%s165 + $0x30] sm:$0xf]
      %v184 = vld [vmem:[%s165 + $0x34] sm:$0xf]
      %v185 = vld [vmem:[%s165 + $0x38] sm:$0xf]
      %v186 = vld [vmem:[%s165 + $0x3c] sm:$0xf]
      %v187 = vld [vmem:[%s165 + $0x40] sm:$0xf]
      %v188 = vld [vmem:[%s165 + $0x44] sm:$0xf]
      %v189 = vld [vmem:[%s165 + $0x48] sm:$0xf]
      %v190 = vld [vmem:[%s165 + $0x4c] sm:$0xf]
      %v191 = vld [vmem:[%s165 + $0x50] sm:$0xf]
      %v192 = vld [vmem:[%s165 + $0x54] sm:$0xf]
      %v193 = vld [vmem:[%s165 + $0x58] sm:$0xf]
      %v194 = vld [vmem:[%s165 + $0x5c] sm:$0xf]
      %v195 = vld [vmem:[%s165 + $0x60] sm:$0xf]
      %v196 = vld [vmem:[%s165 + $0x64] sm:$0xf]
      %v197 = vld [vmem:[%s165 + $0x68] sm:$0xf]
      %v198 = vld [vmem:[%s165 + $0x6c] sm:$0xf]
      %v199 = vld [vmem:[%s165 + $0x70] sm:$0xf]
      %v200 = vld [vmem:[%s165 + $0x74] sm:$0xf]
      %v201 = vld [vmem:[%s165 + $0x78] sm:$0xf]
      %v202 = vld [vmem:[%s165 + $0x7c] sm:$0xf]
      %v203 = vld [vmem:[%s165 + $0x80] sm:$0xf]
      %v204 = vld [vmem:[%s165 + $0x84] sm:$0xf]
      %v205 = vld [vmem:[%s165 + $0x88] sm:$0xf]
      %v206 = vld [vmem:[%s165 + $0x8c] sm:$0xf]
      %v207 = vld [vmem:[%s165 + $0x90] sm:$0xf]
      %v208 = vld [vmem:[%s165 + $0x94] sm:$0xf]
      %v209 = vld [vmem:[%s165 + $0x98] sm:$0xf]
      %v210 = vld [vmem:[%s165 + $0x9c] sm:$0xf]
      %v211 = vld [vmem:[%s165 + $0xa0] sm:$0xf]
      %v212 = vunpack.c.l.bf16 %v171
      %v213 = vunpack.c.l.bf16 %v172
      %v214 = vunpack.c.l.bf16 %v173
      %v215 = vunpack.c.l.bf16 %v174
      %v216 = vunpack.c.l.bf16 %v175
      %v217 = vunpack.c.l.bf16 %v176
      %v218 = vunpack.c.l.bf16 %v177
      %v219 = vunpack.c.l.bf16 %v178
      %v220 = vunpack.c.l.bf16 %v179
      %v221 = vunpack.c.l.bf16 %v180
      %v222 = vunpack.c.l.bf16 %v181
      %v223 = vunpack.c.l.bf16 %v182
      %v224 = vunpack.c.l.bf16 %v183
      %v225 = vunpack.c.l.bf16 %v184
      %v226 = vunpack.c.l.bf16 %v185
      %v227 = vunpack.c.l.bf16 %v186
      %v228 = vunpack.c.l.bf16 %v187
      %v229 = vunpack.c.l.bf16 %v188
      %v230 = vunpack.c.l.bf16 %v189
      %v231 = vunpack.c.l.bf16 %v190
      %v232 = vunpack.c.l.bf16 %v191
      %v233 = vunpack.c.l.bf16 %v192
      %v234 = vunpack.c.l.bf16 %v193
      %v235 = vunpack.c.l.bf16 %v194
      %v236 = vunpack.c.l.bf16 %v195
      %v237 = vunpack.c.l.bf16 %v196
      %v238 = vunpack.c.l.bf16 %v197
      %v239 = vunpack.c.l.bf16 %v198
      %v240 = vunpack.c.l.bf16 %v199
      %v241 = vunpack.c.l.bf16 %v200
      %v242 = vunpack.c.l.bf16 %v201
      %v243 = vunpack.c.l.bf16 %v202
      %v244 = vunpack.c.l.bf16 %v203
      %v245 = vunpack.c.l.bf16 %v204
      %v246 = vunpack.c.l.bf16 %v205
      %v247 = vunpack.c.l.bf16 %v206
      %v248 = vunpack.c.l.bf16 %v207
      %v249 = vunpack.c.l.bf16 %v208
      %v250 = vunpack.c.l.bf16 %v209
      %v251 = vunpack.c.l.bf16 %v210
      %v252 = vunpack.c.l.bf16 %v211
      %v253 = vld [vmem:[%s1] sm:$0x7]
      %vm254 = vcmask 23552
      %v256 = vsel %vm254, %v212, 0
      %v259 = vsel %vm254, %v213, 0
      %v262 = vsel %vm254, %v214, 0
      %v265 = vsel %vm254, %v215, 0
      %v268 = vsel %vm254, %v216, 0
      %v271 = vsel %vm254, %v217, 0
      %v274 = vsel %vm254, %v218, 0
      %v277 = vsel %vm254, %v219, 0
      %v280 = vsel %vm254, %v220, 0
      %v283 = vsel %vm254, %v221, 0
      %v286 = vsel %vm254, %v222, 0
      %v289 = vsel %vm254, %v223, 0
      %v292 = vsel %vm254, %v224, 0
      %v295 = vsel %vm254, %v225, 0
      %v298 = vsel %vm254, %v226, 0
      %v301 = vsel %vm254, %v227, 0
      %v304 = vsel %vm254, %v228, 0
      %v307 = vsel %vm254, %v229, 0
      %v310 = vsel %vm254, %v230, 0
      %v313 = vsel %vm254, %v231, 0
      %v316 = vsel %vm254, %v232, 0
      %v319 = vsel %vm254, %v233, 0
      %v322 = vsel %vm254, %v234, 0
      %v325 = vsel %vm254, %v235, 0
      %v328 = vsel %vm254, %v236, 0
      %v331 = vsel %vm254, %v237, 0
      %v334 = vsel %vm254, %v238, 0
      %v337 = vsel %vm254, %v239, 0
      %v340 = vsel %vm254, %v240, 0
      %v343 = vsel %vm254, %v241, 0
      %v346 = vsel %vm254, %v242, 0
      %v349 = vsel %vm254, %v243, 0
      %v352 = vsel %vm254, %v244, 0
      %v355 = vsel %vm254, %v245, 0
      %v358 = vsel %vm254, %v246, 0
      %v361 = vsel %vm254, %v247, 0
      %vm363 = vcmask 1042432
      %v365 = vsel %vm363, %v253, 0
      %367 = vmatprep.subr.mxu0 0.0
      %368 = vmatpush1.msra.mxu0 %v365
      %369 = vmatprep.subr.mxu0 0.0
      %370 = vmatpush1.msra.mxu0 0.0
      %371 = vmatprep.subr.mxu0 0.0
      %372 = vmatpush1.msra.mxu0 0.0
      %373 = vmatprep.subr.mxu0 0.0
      %374 = vmatpush1.msra.mxu0 0.0
      %375 = vmatprep.subr.mxu0 0.0
      %376 = vmatpush1.msra.mxu0 0.0
      %377 = vmatprep.subr.mxu0 0.0
      %378 = vmatpush1.msra.mxu0 0.0
      %379 = vmatprep.subr.mxu0 0.0
      %380 = vmatpush1.msra.mxu0 0.0
      %381 = vmatprep.subr.mxu0 0.0
      %382 = vmatpush1.msra.mxu0 0.0
      %383 = vmatprep.subr.mxu0 0.0
      %384 = vmatpush1.msra.mxu0 0.0
      %385 = vmatprep.subr.mxu0 0.0
      %386 = vmatpush1.msra.mxu0 0.0
      %387 = vmatprep.subr.mxu0 0.0
      %388 = vmatpush1.msra.mxu0 0.0
      %389 = vmatprep.subr.mxu0 0.0
      %390 = vmatpush1.msra.mxu0 0.0
      %391 = vmatprep.subr.mxu0 0.0
      %392 = vmatpush1.msra.mxu0 0.0
      %393 = vmatprep.subr.mxu0 0.0
      %394 = vmatpush1.msra.mxu0 0.0
      %395 = vmatprep.subr.mxu0 0.0
      %396 = vmatpush1.msra.mxu0 0.0
      %397 = vmatprep.subr.mxu0 0.0
      %398 = vmatpush1.msra.mxu0 0.0
      %399 = vmatprep.subr.mxu0 0.0
      %400 = vmatpush1.msra.mxu0 0.0
      %401 = vmatprep.subr.mxu0 0.0
      %402 = vmatpush1.msra.mxu0 0.0
      %403 = vmatprep.subr.mxu0 0.0
      %404 = vmatpush1.msra.mxu0 0.0
      %405 = vmatprep.subr.mxu0 0.0
      %406 = vmatpush1.msra.mxu0 0.0
      %407 = vmatprep.subr.mxu0 0.0
      %408 = vmatpush1.msra.mxu0 0.0
      %409 = vmatprep.subr.mxu0 0.0
      %410 = vmatpush1.msra.mxu0 0.0
      %411 = vmatprep.subr.mxu0 0.0
      %412 = vmatpush1.msra.mxu0 0.0
      %413 = vmatprep.subr.mxu0 0.0
      %414 = vmatpush1.msra.mxu0 0.0
      %415 = vmatprep.subr.mxu0 0.0
      %416 = vmatpush1.msra.mxu0 0.0
      %417 = vmatprep.subr.mxu0 0.0
      %418 = vmatpush1.msra.mxu0 0.0
      %419 = vmatprep.subr.mxu0 0.0
      %420 = vmatpush1.msra.mxu0 0.0
      %421 = vmatprep.subr.mxu0 0.0
      %422 = vmatpush1.msra.mxu0 0.0
      %423 = vmatprep.subr.mxu0 0.0
      %424 = vmatpush1.msra.mxu0 0.0
      %425 = vmatprep.subr.mxu0 0.0
      %426 = vmatpush1.msra.mxu0 0.0
      %427 = vmatprep.subr.mxu0 0.0
      %428 = vmatpush1.msra.mxu0 0.0
      %429 = vmatprep.subr.mxu0 0.0
      %430 = vmatpush1.msra.mxu0 0.0
      %431 = vmatprep.mubr.f32.mxu0 0.0
      %432 = vmatmul.mubr.f32.gmra.mrb[0].mxu0 %v256
      %v433 = vpop.f32.mrb[0].mxu0
      %v434 = vadd.f32 0.0, %v433
      %v435 = vpop.f32.mrb[0].mxu0
      %436 = vmatprep.mubr.f32.mxu0 0.0
      %437 = vmatmul.mubr.f32.gmra.mrb[0].mxu0 %v259
      %v438 = vpop.f32.mrb[0].mxu0
      %v439 = vadd.f32 0.0, %v438
      %v440 = vpop.f32.mrb[0].mxu0
      %441 = vmatprep.mubr.f32.mxu0 0.0
      %442 = vmatmul.mubr.f32.gmra.mrb[0].mxu0 %v262
      %v443 = vpop.f32.mrb[0].mxu0
      %v444 = vadd.f32 0.0, %v443
      %v445 = vpop.f32.mrb[0].mxu0
      %446 = vmatprep.mubr.f32.mxu0 0.0
      %447 = vmatmul.mubr.f32.gmra.mrb[0].mxu0 %v265
      %v448 = vpop.f32.mrb[0].mxu0
      %v449 = vadd.f32 0.0, %v448
      %v450 = vpop.f32.mrb[0].mxu0
      %451 = vmatprep.mubr.f32.mxu0 0.0
      %452 = vmatmul.mubr.f32.gmra.mrb[0].mxu0 %v268
      %v453 = vpop.f32.mrb[0].mxu0
      %v454 = vadd.f32 0.0, %v453
      %v455 = vpop.f32.mrb[0].mxu0
      %456 = vmatprep.mubr.f32.mxu0 0.0
      %457 = vmatmul.mubr.f32.gmra.mrb[0].mxu0 %v271
      %v458 = vpop.f32.mrb[0].mxu0
      %v459 = vadd.f32 0.0, %v458
      %v460 = vpop.f32.mrb[0].mxu0
      %461 = vmatprep.mubr.f32.mxu0 0.0
      %462 = vmatmul.mubr.f32.gmra.mrb[0].mxu0 %v274
      %v463 = vpop.f32.mrb[0].mxu0
      %v464 = vadd.f32 0.0, %v463
      %v465 = vpop.f32.mrb[0].mxu0
      %466 = vmatprep.mubr.f32.mxu0 0.0
      %467 = vmatmul.mubr.f32.gmra.mrb[0].mxu0 %v277
      %v468 = vpop.f32.mrb[0].mxu0
      %v469 = vadd.f32 0.0, %v468
      %v470 = vpop.f32.mrb[0].mxu0
      %471 = vmatprep.mubr.f32.mxu0 0.0
      %472 = vmatmul.mubr.f32.gmra.mrb[0].mxu0 %v280
      %v473 = vpop.f32.mrb[0].mxu0
      %v474 = vadd.f32 0.0, %v473
      %v475 = vpop.f32.mrb[0].mxu0
      %476 = vmatprep.mubr.f32.mxu0 0.0
      %477 = vmatmul.mubr.f32.gmra.mrb[0].mxu0 %v283
      %v478 = vpop.f32.mrb[0].mxu0
      %v479 = vadd.f32 0.0, %v478
      %v480 = vpop.f32.mrb[0].mxu0
      %481 = vmatprep.mubr.f32.mxu0 0.0
      %482 = vmatmul.mubr.f32.gmra.mrb[0].mxu0 %v286
      %v483 = vpop.f32.mrb[0].mxu0
      %v484 = vadd.f32 0.0, %v483
      %v485 = vpop.f32.mrb[0].mxu0
      %486 = vmatprep.mubr.f32.mxu0 0.0
      %487 = vmatmul.mubr.f32.gmra.mrb[0].mxu0 %v289
      %v488 = vpop.f32.mrb[0].mxu0
      %v489 = vadd.f32 0.0, %v488
      %v490 = vpop.f32.mrb[0].mxu0
      %491 = vmatprep.mubr.f32.mxu0 0.0
      %492 = vmatmul.mubr.f32.gmra.mrb[0].mxu0 %v292
      %v493 = vpop.f32.mrb[0].mxu0
      %v494 = vadd.f32 0.0, %v493
      %v495 = vpop.f32.mrb[0].mxu0
      %496 = vmatprep.mubr.f32.mxu0 0.0
      %497 = vmatmul.mubr.f32.gmra.mrb[0].mxu0 %v295
      %v498 = vpop.f32.mrb[0].mxu0
      %v499 = vadd.f32 0.0, %v498
      %v500 = vpop.f32.mrb[0].mxu0
      %501 = vmatprep.mubr.f32.mxu0 0.0
      %502 = vmatmul.mubr.f32.gmra.mrb[0].mxu0 %v298
      %v503 = vpop.f32.mrb[0].mxu0
      %v504 = vadd.f32 0.0, %v503
      %v505 = vpop.f32.mrb[0].mxu0
      %506 = vmatprep.mubr.f32.mxu0 0.0
      %507 = vmatmul.mubr.f32.gmra.mrb[0].mxu0 %v301
      %v508 = vpop.f32.mrb[0].mxu0
      %v509 = vadd.f32 0.0, %v508
      %v510 = vpop.f32.mrb[0].mxu0
      %511 = vmatprep.mubr.f32.mxu0 0.0
      %512 = vmatmul.mubr.f32.gmra.mrb[0].mxu0 %v304
      %v513 = vpop.f32.mrb[0].mxu0
      %v514 = vadd.f32 0.0, %v513
      %v515 = vpop.f32.mrb[0].mxu0
      %516 = vmatprep.mubr.f32.mxu0 0.0
      %517 = vmatmul.mubr.f32.gmra.mrb[0].mxu0 %v307
      %v518 = vpop.f32.mrb[0].mxu0
      %v519 = vadd.f32 0.0, %v518
      %v520 = vpop.f32.mrb[0].mxu0
      %521 = vmatprep.mubr.f32.mxu0 0.0
      %522 = vmatmul.mubr.f32.gmra.mrb[0].mxu0 %v310
      %v523 = vpop.f32.mrb[0].mxu0
      %v524 = vadd.f32 0.0, %v523
      %v525 = vpop.f32.mrb[0].mxu0
      %526 = vmatprep.mubr.f32.mxu0 0.0
      %527 = vmatmul.mubr.f32.gmra.mrb[0].mxu0 %v313
      %v528 = vpop.f32.mrb[0].mxu0
      %v529 = vadd.f32 0.0, %v528
      %v530 = vpop.f32.mrb[0].mxu0
      %531 = vmatprep.mubr.f32.mxu0 0.0
      %532 = vmatmul.mubr.f32.gmra.mrb[0].mxu0 %v316
      %v533 = vpop.f32.mrb[0].mxu0
      %v534 = vadd.f32 0.0, %v533
      %v535 = vpop.f32.mrb[0].mxu0
      %536 = vmatprep.mubr.f32.mxu0 0.0
      %537 = vmatmul.mubr.f32.gmra.mrb[0].mxu0 %v319
      %v538 = vpop.f32.mrb[0].mxu0
      %v539 = vadd.f32 0.0, %v538
      %v540 = vpop.f32.mrb[0].mxu0
      %541 = vmatprep.mubr.f32.mxu0 0.0
      %542 = vmatmul.mubr.f32.gmra.mrb[0].mxu0 %v322
      %v543 = vpop.f32.mrb[0].mxu0
      %v544 = vadd.f32 0.0, %v543
      %v545 = vpop.f32.mrb[0].mxu0
      %546 = vmatprep.mubr.f32.mxu0 0.0
      %547 = vmatmul.mubr.f32.gmra.mrb[0].mxu0 %v325
      %v548 = vpop.f32.mrb[0].mxu0
      %v549 = vadd.f32 0.0, %v548
      %v550 = vpop.f32.mrb[0].mxu0
      %551 = vmatprep.mubr.f32.mxu0 0.0
      %552 = vmatmul.mubr.f32.gmra.mrb[0].mxu0 %v328
      %v553 = vpop.f32.mrb[0].mxu0
      %v554 = vadd.f32 0.0, %v553
      %v555 = vpop.f32.mrb[0].mxu0
      %556 = vmatprep.mubr.f32.mxu0 0.0
      %557 = vmatmul.mubr.f32.gmra.mrb[0].mxu0 %v331
      %v558 = vpop.f32.mrb[0].mxu0
      %v559 = vadd.f32 0.0, %v558
      %v560 = vpop.f32.mrb[0].mxu0
      %561 = vmatprep.mubr.f32.mxu0 0.0
      %562 = vmatmul.mubr.f32.gmra.mrb[0].mxu0 %v334
      %v563 = vpop.f32.mrb[0].mxu0
      %v564 = vadd.f32 0.0, %v563
      %v565 = vpop.f32.mrb[0].mxu0
      %566 = vmatprep.mubr.f32.mxu0 0.0
      %567 = vmatmul.mubr.f32.gmra.mrb[0].mxu0 %v337
      %v568 = vpop.f32.mrb[0].mxu0
      %v569 = vadd.f32 0.0, %v568
      %v570 = vpop.f32.mrb[0].mxu0
      %571 = vmatprep.mubr.f32.mxu0 0.0
      %572 = vmatmul.mubr.f32.gmra.mrb[0].mxu0 %v340
      %v573 = vpop.f32.mrb[0].mxu0
      %v574 = vadd.f32 0.0, %v573
      %v575 = vpop.f32.mrb[0].mxu0
      %576 = vmatprep.mubr.f32.mxu0 0.0
      %577 = vmatmul.mubr.f32.gmra.mrb[0].mxu0 %v343
      %v578 = vpop.f32.mrb[0].mxu0
      %v579 = vadd.f32 0.0, %v578
      %v580 = vpop.f32.mrb[0].mxu0
      %581 = vmatprep.mubr.f32.mxu0 0.0
      %582 = vmatmul.mubr.f32.gmra.mrb[0].mxu0 %v346
      %v583 = vpop.f32.mrb[0].mxu0
      %v584 = vadd.f32 0.0, %v583
      %v585 = vpop.f32.mrb[0].mxu0
      %586 = vmatprep.mubr.f32.mxu0 0.0
      %587 = vmatmul.mubr.f32.gmra.mrb[0].mxu0 %v349
      %v588 = vpop.f32.mrb[0].mxu0
      %v589 = vadd.f32 0.0, %v588
      %v590 = vpop.f32.mrb[0].mxu0
      %591 = vmatprep.mubr.f32.mxu0 0.0
      %592 = vmatmul.mubr.f32.gmra.mrb[0].mxu0 %v352
      %v593 = vpop.f32.mrb[0].mxu0
      %v594 = vadd.f32 0.0, %v593
      %v595 = vpop.f32.mrb[0].mxu0
      %596 = vmatprep.mubr.f32.mxu0 0.0
      %597 = vmatmul.mubr.f32.gmra.mrb[0].mxu0 %v355
      %v598 = vpop.f32.mrb[0].mxu0
      %v599 = vadd.f32 0.0, %v598
      %v600 = vpop.f32.mrb[0].mxu0
      %601 = vmatprep.mubr.f32.mxu0 0.0
      %602 = vmatmul.mubr.f32.gmra.mrb[0].mxu0 %v358
      %v603 = vpop.f32.mrb[0].mxu0
      %v604 = vadd.f32 0.0, %v603
      %v605 = vpop.f32.mrb[0].mxu0
      %606 = vmatprep.mubr.f32.mxu0 0.0
      %607 = vmatmul.mubr.f32.gmra.mrb[0].mxu0 %v361
      %v608 = vpop.f32.mrb[0].mxu0
      %v609 = vadd.f32 0.0, %v608
      %v610 = vpop.f32.mrb[0].mxu0
      %611 = vdwg.mxu0
      %vm612 = vcmask 130048
      %613 = vst.msk [vmem:[#allocation2] sm:$0xff] %vm612, %v434
      %614 = vst.msk [vmem:[#allocation2 + $0x8] sm:$0xff] %vm612, %v439
      %615 = vst.msk [vmem:[#allocation2 + $0x10] sm:$0xff] %vm612, %v444
      %616 = vst.msk [vmem:[#allocation2 + $0x18] sm:$0xff] %vm612, %v449
      %617 = vst.msk [vmem:[#allocation2 + $0x20] sm:$0xff] %vm612, %v454
      %618 = vst.msk [vmem:[#allocation2 + $0x28] sm:$0xff] %vm612, %v459
      %619 = vst.msk [vmem:[#allocation2 + $0x30] sm:$0xff] %vm612, %v464
      %620 = vst.msk [vmem:[#allocation2 + $0x38] sm:$0xff] %vm612, %v469
      %621 = vst.msk [vmem:[#allocation2 + $0x40] sm:$0xff] %vm612, %v474
      %622 = vst.msk [vmem:[#allocation2 + $0x48] sm:$0xff] %vm612, %v479
      %623 = vst.msk [vmem:[#allocation2 + $0x50] sm:$0xff] %vm612, %v484
      %624 = vst.msk [vmem:[#allocation2 + $0x58] sm:$0xff] %vm612, %v489
      %625 = vst.msk [vmem:[#allocation2 + $0x60] sm:$0xff] %vm612, %v494
      %626 = vst.msk [vmem:[#allocation2 + $0x68] sm:$0xff] %vm612, %v499
      %627 = vst.msk [vmem:[#allocation2 + $0x70] sm:$0xff] %vm612, %v504
      %628 = vst.msk [vmem:[#allocation2 + $0x78] sm:$0xff] %vm612, %v509
      %629 = vst.msk [vmem:[#allocation2 + $0x80] sm:$0xff] %vm612, %v514
      %630 = vst.msk [vmem:[#allocation2 + $0x88] sm:$0xff] %vm612, %v519
      %631 = vst.msk [vmem:[#allocation2 + $0x90] sm:$0xff] %vm612, %v524
      %632 = vst.msk [vmem:[#allocation2 + $0x98] sm:$0xff] %vm612, %v529
      %633 = vst.msk [vmem:[#allocation2 + $0xa0] sm:$0xff] %vm612, %v534
      %634 = vst.msk [vmem:[#allocation2 + $0xa8] sm:$0xff] %vm612, %v539
      %635 = vst.msk [vmem:[#allocation2 + $0xb0] sm:$0xff] %vm612, %v544
      %636 = vst.msk [vmem:[#allocation2 + $0xb8] sm:$0xff] %vm612, %v549
      %637 = vst.msk [vmem:[#allocation2 + $0xc0] sm:$0xff] %vm612, %v554
      %638 = vst.msk [vmem:[#allocation2 + $0xc8] sm:$0xff] %vm612, %v559
      %639 = vst.msk [vmem:[#allocation2 + $0xd0] sm:$0xff] %vm612, %v564
      %640 = vst.msk [vmem:[#allocation2 + $0xd8] sm:$0xff] %vm612, %v569
      %641 = vst.msk [vmem:[#allocation2 + $0xe0] sm:$0xff] %vm612, %v574
      %642 = vst.msk [vmem:[#allocation2 + $0xe8] sm:$0xff] %vm612, %v579
      %643 = vst.msk [vmem:[#allocation2 + $0xf0] sm:$0xff] %vm612, %v584
      %644 = vst.msk [vmem:[#allocation2 + $0xf8] sm:$0xff] %vm612, %v589
      %645 = vst.msk [vmem:[#allocation2 + $0x100] sm:$0xff] %vm612, %v594
      %646 = vst.msk [vmem:[#allocation2 + $0x108] sm:$0xff] %vm612, %v599
      %647 = vst.msk [vmem:[#allocation2 + $0x110] sm:$0xff] %vm612, %v604
      %648 = vst.msk [vmem:[#allocation2 + $0x118] sm:$0xff] %vm612, %v609
      %v649 = vld [vmem:[#allocation2] sm:$0xff]
      %v650 = vld [vmem:[#allocation2 + $0x8] sm:$0xff]
      %v651 = vld [vmem:[#allocation2 + $0x10] sm:$0xff]
      %v652 = vld [vmem:[#allocation2 + $0x18] sm:$0xff]
      %v653 = vld [vmem:[#allocation2 + $0x20] sm:$0xff]
      %v654 = vld [vmem:[#allocation2 + $0x28] sm:$0xff]
      %v655 = vld [vmem:[#allocation2 + $0x30] sm:$0xff]
      %v656 = vld [vmem:[#allocation2 + $0x38] sm:$0xff]
      %v657 = vld [vmem:[#allocation2 + $0x40] sm:$0xff]
      %v658 = vld [vmem:[#allocation2 + $0x48] sm:$0xff]
      %v659 = vld [vmem:[#allocation2 + $0x50] sm:$0xff]
      %v660 = vld [vmem:[#allocation2 + $0x58] sm:$0xff]
      %v661 = vld [vmem:[#allocation2 + $0x60] sm:$0xff]
      %v662 = vld [vmem:[#allocation2 + $0x68] sm:$0xff]
      %v663 = vld [vmem:[#allocation2 + $0x70] sm:$0xff]
      %v664 = vld [vmem:[#allocation2 + $0x78] sm:$0xff]
      %v665 = vld [vmem:[#allocation2 + $0x80] sm:$0xff]
      %v666 = vld [vmem:[#allocation2 + $0x88] sm:$0xff]
      %v667 = vld [vmem:[#allocation2 + $0x90] sm:$0xff]
      %v668 = vld [vmem:[#allocation2 + $0x98] sm:$0xff]
      %v669 = vld [vmem:[#allocation2 + $0xa0] sm:$0xff]
      %v670 = vld [vmem:[#allocation2 + $0xa8] sm:$0xff]
      %v671 = vld [vmem:[#allocation2 + $0xb0] sm:$0xff]
      %v672 = vld [vmem:[#allocation2 + $0xb8] sm:$0xff]
      %v673 = vld [vmem:[#allocation2 + $0xc0] sm:$0xff]
      %v674 = vld [vmem:[#allocation2 + $0xc8] sm:$0xff]
      %v675 = vld [vmem:[#allocation2 + $0xd0] sm:$0xff]
      %v676 = vld [vmem:[#allocation2 + $0xd8] sm:$0xff]
      %v677 = vld [vmem:[#allocation2 + $0xe0] sm:$0xff]
      %v678 = vld [vmem:[#allocation2 + $0xe8] sm:$0xff]
      %v679 = vld [vmem:[#allocation2 + $0xf0] sm:$0xff]
      %v680 = vld [vmem:[#allocation2 + $0xf8] sm:$0xff]
      %v681 = vld [vmem:[#allocation2 + $0x100] sm:$0xff]
      %v682 = vld [vmem:[#allocation2 + $0x108] sm:$0xff]
      %v683 = vld [vmem:[#allocation2 + $0x110] sm:$0xff]
      %v684 = vld [vmem:[#allocation2 + $0x118] sm:$0xff]
      %s685 = scalar_lea.vmem %s1, 4
      %v686 = vld [vmem:[%s685] sm:$0x7]
      %vm688 = vcmask 1046528
      %v689 = vrot.slane %v212, 1
      %v690 = vrot.slane %v213, 1
      %v691 = vsel %vm688, %v689, %v690
      %v692 = vrot.slane %v214, 1
      %v693 = vsel %vm688, %v690, %v692
      %v694 = vrot.slane %v215, 1
      %v695 = vsel %vm688, %v692, %v694
      %v696 = vrot.slane %v216, 1
      %v697 = vsel %vm688, %v694, %v696
      %v698 = vrot.slane %v217, 1
      %v699 = vsel %vm688, %v696, %v698
      %v700 = vrot.slane %v218, 1
      %v701 = vsel %vm688, %v698, %v700
      %v702 = vrot.slane %v219, 1
      %v703 = vsel %vm688, %v700, %v702
      %v704 = vrot.slane %v220, 1
      %v705 = vsel %vm688, %v702, %v704
      %v706 = vrot.slane %v221, 1
      %v707 = vsel %vm688, %v704, %v706
      %v708 = vrot.slane %v222, 1
      %v709 = vsel %vm688, %v706, %v708
      %v710 = vrot.slane %v223, 1
      %v711 = vsel %vm688, %v708, %v710
      %v712 = vrot.slane %v224, 1
      %v713 = vsel %vm688, %v710, %v712
      %v714 = vrot.slane %v225, 1
      %v715 = vsel %vm688, %v712, %v714
      %v716 = vrot.slane %v226, 1
      %v717 = vsel %vm688, %v714, %v716
      %v718 = vrot.slane %v227, 1
      %v719 = vsel %vm688, %v716, %v718
      %v720 = vrot.slane %v228, 1
      %v721 = vsel %vm688, %v718, %v720
      %v722 = vrot.slane %v229, 1
      %v723 = vsel %vm688, %v720, %v722
      %v724 = vrot.slane %v230, 1
      %v725 = vsel %vm688, %v722, %v724
      %v726 = vrot.slane %v231, 1
      %v727 = vsel %vm688, %v724, %v726
      %v728 = vrot.slane %v232, 1
      %v729 = vsel %vm688, %v726, %v728
      %v730 = vrot.slane %v233, 1
      %v731 = vsel %vm688, %v728, %v730
      %v732 = vrot.slane %v234, 1
      %v733 = vsel %vm688, %v730, %v732
      %v734 = vrot.slane %v235, 1
      %v735 = vsel %vm688, %v732, %v734
      %v736 = vrot.slane %v236, 1
      %v737 = vsel %vm688, %v734, %v736
      %v738 = vrot.slane %v237, 1
      %v739 = vsel %vm688, %v736, %v738
      %v740 = vrot.slane %v238, 1
      %v741 = vsel %vm688, %v738, %v740
      %v742 = vrot.slane %v239, 1
      %v743 = vsel %vm688, %v740, %v742
      %v744 = vrot.slane %v240, 1
      %v745 = vsel %vm688, %v742, %v744
      %v746 = vrot.slane %v241, 1
      %v747 = vsel %vm688, %v744, %v746
      %v748 = vrot.slane %v242, 1
      %v749 = vsel %vm688, %v746, %v748
      %v750 = vrot.slane %v243, 1
      %v751 = vsel %vm688, %v748, %v750
      %v752 = vrot.slane %v244, 1
      %v753 = vsel %vm688, %v750, %v752
      %v754 = vrot.slane %v245, 1
      %v755 = vsel %vm688, %v752, %v754
      %v756 = vrot.slane %v246, 1
      %v757 = vsel %vm688, %v754, %v756
      %v758 = vrot.slane %v247, 1
      %v759 = vsel %vm688, %v756, %v758
      %v760 = vrot.slane %v248, 1
      %v761 = vsel %vm688, %v758, %v760
      %v762 = vsel %vm254, %v691, 0
      %v764 = vsel %vm254, %v693, 0
      %v766 = vsel %vm254, %v695, 0
      %v768 = vsel %vm254, %v697, 0
      %v770 = vsel %vm254, %v699, 0
      %v772 = vsel %vm254, %v701, 0
      %v774 = vsel %vm254, %v703, 0
      %v776 = vsel %vm254, %v705, 0
      %v778 = vsel %vm254, %v707, 0
      %v780 = vsel %vm254, %v709, 0
      %v782 = vsel %vm254, %v711, 0
      %v784 = vsel %vm254, %v713, 0
      %v786 = vsel %vm254, %v715, 0
      %v788 = vsel %vm254, %v717, 0
      %v790 = vsel %vm254, %v719, 0
      %v792 = vsel %vm254, %v721, 0
      %v794 = vsel %vm254, %v723, 0
      %v796 = vsel %vm254, %v725, 0
      %v798 = vsel %vm254, %v727, 0
      %v800 = vsel %vm254, %v729, 0
      %v802 = vsel %vm254, %v731, 0
      %v804 = vsel %vm254, %v733, 0
      %v806 = vsel %vm254, %v735, 0
      %v808 = vsel %vm254, %v737, 0
      %v810 = vsel %vm254, %v739, 0
      %v812 = vsel %vm254, %v741, 0
      %v814 = vsel %vm254, %v743, 0
      %v816 = vsel %vm254, %v745, 0
      %v818 = vsel %vm254, %v747, 0
      %v820 = vsel %vm254, %v749, 0
      %v822 = vsel %vm254, %v751, 0
      %v824 = vsel %vm254, %v753, 0
      %v826 = vsel %vm254, %v755, 0
      %v828 = vsel %vm254, %v757, 0
      %v830 = vsel %vm254, %v759, 0
      %v832 = vsel %vm254, %v761, 0
      %v835 = vsel %vm363, %v686, 0
      %837 = vmatprep.subr.mxu0 0.0
      %838 = vmatpush1.msra.mxu0 %v835
      %839 = vmatprep.subr.mxu0 0.0
      %840 = vmatpush1.msra.mxu0 0.0
      %841 = vmatprep.subr.mxu0 0.0
      %842 = vmatpush1.msra.mxu0 0.0
      %843 = vmatprep.subr.mxu0 0.0
      %844 = vmatpush1.msra.mxu0 0.0
      %845 = vmatprep.subr.mxu0 0.0
      %846 = vmatpush1.msra.mxu0 0.0
      %847 = vmatprep.subr.mxu0 0.0
      %848 = vmatpush1.msra.mxu0 0.0
      %849 = vmatprep.subr.mxu0 0.0
      %850 = vmatpush1.msra.mxu0 0.0
      %851 = vmatprep.subr.mxu0 0.0
      %852 = vmatpush1.msra.mxu0 0.0
      %853 = vmatprep.subr.mxu0 0.0
      %854 = vmatpush1.msra.mxu0 0.0
      %855 = vmatprep.subr.mxu0 0.0
      %856 = vmatpush1.msra.mxu0 0.0
      %857 = vmatprep.subr.mxu0 0.0
      %858 = vmatpush1.msra.mxu0 0.0
      %859 = vmatprep.subr.mxu0 0.0
      %860 = vmatpush1.msra.mxu0 0.0
      %861 = vmatprep.subr.mxu0 0.0
      %862 = vmatpush1.msra.mxu0 0.0
      %863 = vmatprep.subr.mxu0 0.0
      %864 = vmatpush1.msra.mxu0 0.0
      %865 = vmatprep.subr.mxu0 0.0
      %866 = vmatpush1.msra.mxu0 0.0
      %867 = vmatprep.subr.mxu0 0.0
      %868 = vmatpush1.msra.mxu0 0.0
      %869 = vmatprep.subr.mxu0 0.0
      %870 = vmatpush1.msra.mxu0 0.0
      %871 = vmatprep.subr.mxu0 0.0
      %872 = vmatpush1.msra.mxu0 0.0
      %873 = vmatprep.subr.mxu0 0.0
      %874 = vmatpush1.msra.mxu0 0.0
      %875 = vmatprep.subr.mxu0 0.0
      %876 = vmatpush1.msra.mxu0 0.0
      %877 = vmatprep.subr.mxu0 0.0
      %878 = vmatpush1.msra.mxu0 0.0
      %879 = vmatprep.subr.mxu0 0.0
      %880 = vmatpush1.msra.mxu0 0.0
      %881 = vmatprep.subr.mxu0 0.0
      %882 = vmatpush1.msra.mxu0 0.0
      %883 = vmatprep.subr.mxu0 0.0
      %884 = vmatpush1.msra.mxu0 0.0
      %885 = vmatprep.subr.mxu0 0.0
      %886 = vmatpush1.msra.mxu0 0.0
      %887 = vmatprep.subr.mxu0 0.0
      %888 = vmatpush1.msra.mxu0 0.0
      %889 = vmatprep.subr.mxu0 0.0
      %890 = vmatpush1.msra.mxu0 0.0
      %891 = vmatprep.subr.mxu0 0.0
      %892 = vmatpush1.msra.mxu0 0.0
      %893 = vmatprep.subr.mxu0 0.0
      %894 = vmatpush1.msra.mxu0 0.0
      %895 = vmatprep.subr.mxu0 0.0
      %896 = vmatpush1.msra.mxu0 0.0
      %897 = vmatprep.subr.mxu0 0.0
      %898 = vmatpush1.msra.mxu0 0.0
      %899 = vmatprep.subr.mxu0 0.0
      %900 = vmatpush1.msra.mxu0 0.0
      %901 = vmatprep.mubr.f32.mxu0 0.0
      %902 = vmatmul.mubr.f32.gmra.mrb[0].mxu0 %v762
      %v903 = vpop.f32.mrb[0].mxu0
      %v904 = vadd.f32 0.0, %v903
      %v905 = vpop.f32.mrb[0].mxu0
      %906 = vmatprep.mubr.f32.mxu0 0.0
      %907 = vmatmul.mubr.f32.gmra.mrb[0].mxu0 %v764
      %v908 = vpop.f32.mrb[0].mxu0
      %v909 = vadd.f32 0.0, %v908
      %v910 = vpop.f32.mrb[0].mxu0
      %911 = vmatprep.mubr.f32.mxu0 0.0
      %912 = vmatmul.mubr.f32.gmra.mrb[0].mxu0 %v766
      %v913 = vpop.f32.mrb[0].mxu0
      %v914 = vadd.f32 0.0, %v913
      %v915 = vpop.f32.mrb[0].mxu0
      %916 = vmatprep.mubr.f32.mxu0 0.0
      %917 = vmatmul.mubr.f32.gmra.mrb[0].mxu0 %v768
      %v918 = vpop.f32.mrb[0].mxu0
      %v919 = vadd.f32 0.0, %v918
      %v920 = vpop.f32.mrb[0].mxu0
      %921 = vmatprep.mubr.f32.mxu0 0.0
      %922 = vmatmul.mubr.f32.gmra.mrb[0].mxu0 %v770
      %v923 = vpop.f32.mrb[0].mxu0
      %v924 = vadd.f32 0.0, %v923
      %v925 = vpop.f32.mrb[0].mxu0
      %926 = vmatprep.mubr.f32.mxu0 0.0
      %927 = vmatmul.mubr.f32.gmra.mrb[0].mxu0 %v772
      %v928 = vpop.f32.mrb[0].mxu0
      %v929 = vadd.f32 0.0, %v928
      %v930 = vpop.f32.mrb[0].mxu0
      %931 = vmatprep.mubr.f32.mxu0 0.0
      %932 = vmatmul.mubr.f32.gmra.mrb[0].mxu0 %v774
      %v933 = vpop.f32.mrb[0].mxu0
      %v934 = vadd.f32 0.0, %v933
      %v935 = vpop.f32.mrb[0].mxu0
      %936 = vmatprep.mubr.f32.mxu0 0.0
      %937 = vmatmul.mubr.f32.gmra.mrb[0].mxu0 %v776
      %v938 = vpop.f32.mrb[0].mxu0
      %v939 = vadd.f32 0.0, %v938
      %v940 = vpop.f32.mrb[0].mxu0
      %941 = vmatprep.mubr.f32.mxu0 0.0
      %942 = vmatmul.mubr.f32.gmra.mrb[0].mxu0 %v778
      %v943 = vpop.f32.mrb[0].mxu0
      %v944 = vadd.f32 0.0, %v943
      %v945 = vpop.f32.mrb[0].mxu0
      %946 = vmatprep.mubr.f32.mxu0 0.0
      %947 = vmatmul.mubr.f32.gmra.mrb[0].mxu0 %v780
      %v948 = vpop.f32.mrb[0].mxu0
      %v949 = vadd.f32 0.0, %v948
      %v950 = vpop.f32.mrb[0].mxu0
      %951 = vmatprep.mubr.f32.mxu0 0.0
      %952 = vmatmul.mubr.f32.gmra.mrb[0].mxu0 %v782
      %v953 = vpop.f32.mrb[0].mxu0
      %v954 = vadd.f32 0.0, %v953
      %v955 = vpop.f32.mrb[0].mxu0
      %956 = vmatprep.mubr.f32.mxu0 0.0
      %957 = vmatmul.mubr.f32.gmra.mrb[0].mxu0 %v784
      %v958 = vpop.f32.mrb[0].mxu0
      %v959 = vadd.f32 0.0, %v958
      %v960 = vpop.f32.mrb[0].mxu0
      %961 = vmatprep.mubr.f32.mxu0 0.0
      %962 = vmatmul.mubr.f32.gmra.mrb[0].mxu0 %v786
      %v963 = vpop.f32.mrb[0].mxu0
      %v964 = vadd.f32 0.0, %v963
      %v965 = vpop.f32.mrb[0].mxu0
      %966 = vmatprep.mubr.f32.mxu0 0.0
      %967 = vmatmul.mubr.f32.gmra.mrb[0].mxu0 %v788
      %v968 = vpop.f32.mrb[0].mxu0
      %v969 = vadd.f32 0.0, %v968
      %v970 = vpop.f32.mrb[0].mxu0
      %971 = vmatprep.mubr.f32.mxu0 0.0
      %972 = vmatmul.mubr.f32.gmra.mrb[0].mxu0 %v790
      %v973 = vpop.f32.mrb[0].mxu0
      %v974 = vadd.f32 0.0, %v973
      %v975 = vpop.f32.mrb[0].mxu0
      %976 = vmatprep.mubr.f32.mxu0 0.0
      %977 = vmatmul.mubr.f32.gmra.mrb[0].mxu0 %v792
      %v978 = vpop.f32.mrb[0].mxu0
      %v979 = vadd.f32 0.0, %v978
      %v980 = vpop.f32.mrb[0].mxu0
      %981 = vmatprep.mubr.f32.mxu0 0.0
      %982 = vmatmul.mubr.f32.gmra.mrb[0].mxu0 %v794
      %v983 = vpop.f32.mrb[0].mxu0
      %v984 = vadd.f32 0.0, %v983
      %v985 = vpop.f32.mrb[0].mxu0
      %986 = vmatprep.mubr.f32.mxu0 0.0
      %987 = vmatmul.mubr.f32.gmra.mrb[0].mxu0 %v796
      %v988 = vpop.f32.mrb[0].mxu0
      %v989 = vadd.f32 0.0, %v988
      %v990 = vpop.f32.mrb[0].mxu0
      %991 = vmatprep.mubr.f32.mxu0 0.0
      %992 = vmatmul.mubr.f32.gmra.mrb[0].mxu0 %v798
      %v993 = vpop.f32.mrb[0].mxu0
      %v994 = vadd.f32 0.0, %v993
      %v995 = vpop.f32.mrb[0].mxu0
      %996 = vmatprep.mubr.f32.mxu0 0.0
      %997 = vmatmul.mubr.f32.gmra.mrb[0].mxu0 %v800
      %v998 = vpop.f32.mrb[0].mxu0
      %v999 = vadd.f32 0.0, %v998
      %v1000 = vpop.f32.mrb[0].mxu0
      %1001 = vmatprep.mubr.f32.mxu0 0.0
      %1002 = vmatmul.mubr.f32.gmra.mrb[0].mxu0 %v802
      %v1003 = vpop.f32.mrb[0].mxu0
      %v1004 = vadd.f32 0.0, %v1003
      %v1005 = vpop.f32.mrb[0].mxu0
      %1006 = vmatprep.mubr.f32.mxu0 0.0
      %1007 = vmatmul.mubr.f32.gmra.mrb[0].mxu0 %v804
      %v1008 = vpop.f32.mrb[0].mxu0
      %v1009 = vadd.f32 0.0, %v1008
      %v1010 = vpop.f32.mrb[0].mxu0
      %1011 = vmatprep.mubr.f32.mxu0 0.0
      %1012 = vmatmul.mubr.f32.gmra.mrb[0].mxu0 %v806
      %v1013 = vpop.f32.mrb[0].mxu0
      %v1014 = vadd.f32 0.0, %v1013
      %v1015 = vpop.f32.mrb[0].mxu0
      %1016 = vmatprep.mubr.f32.mxu0 0.0
      %1017 = vmatmul.mubr.f32.gmra.mrb[0].mxu0 %v808
      %v1018 = vpop.f32.mrb[0].mxu0
      %v1019 = vadd.f32 0.0, %v1018
      %v1020 = vpop.f32.mrb[0].mxu0
      %1021 = vmatprep.mubr.f32.mxu0 0.0
      %1022 = vmatmul.mubr.f32.gmra.mrb[0].mxu0 %v810
      %v1023 = vpop.f32.mrb[0].mxu0
      %v1024 = vadd.f32 0.0, %v1023
      %v1025 = vpop.f32.mrb[0].mxu0
      %1026 = vmatprep.mubr.f32.mxu0 0.0
      %1027 = vmatmul.mubr.f32.gmra.mrb[0].mxu0 %v812
      %v1028 = vpop.f32.mrb[0].mxu0
      %v1029 = vadd.f32 0.0, %v1028
      %v1030 = vpop.f32.mrb[0].mxu0
      %1031 = vmatprep.mubr.f32.mxu0 0.0
      %1032 = vmatmul.mubr.f32.gmra.mrb[0].mxu0 %v814
      %v1033 = vpop.f32.mrb[0].mxu0
      %v1034 = vadd.f32 0.0, %v1033
      %v1035 = vpop.f32.mrb[0].mxu0
      %1036 = vmatprep.mubr.f32.mxu0 0.0
      %1037 = vmatmul.mubr.f32.gmra.mrb[0].mxu0 %v816
      %v1038 = vpop.f32.mrb[0].mxu0
      %v1039 = vadd.f32 0.0, %v1038
      %v1040 = vpop.f32.mrb[0].mxu0
      %1041 = vmatprep.mubr.f32.mxu0 0.0
      %1042 = vmatmul.mubr.f32.gmra.mrb[0].mxu0 %v818
      %v1043 = vpop.f32.mrb[0].mxu0
      %v1044 = vadd.f32 0.0, %v1043
      %v1045 = vpop.f32.mrb[0].mxu0
      %1046 = vmatprep.mubr.f32.mxu0 0.0
      %1047 = vmatmul.mubr.f32.gmra.mrb[0].mxu0 %v820
      %v1048 = vpop.f32.mrb[0].mxu0
      %v1049 = vadd.f32 0.0, %v1048
      %v1050 = vpop.f32.mrb[0].mxu0
      %1051 = vmatprep.mubr.f32.mxu0 0.0
      %1052 = vmatmul.mubr.f32.gmra.mrb[0].mxu0 %v822
      %v1053 = vpop.f32.mrb[0].mxu0
      %v1054 = vadd.f32 0.0, %v1053
      %v1055 = vpop.f32.mrb[0].mxu0
      %1056 = vmatprep.mubr.f32.mxu0 0.0
      %1057 = vmatmul.mubr.f32.gmra.mrb[0].mxu0 %v824
      %v1058 = vpop.f32.mrb[0].mxu0
      %v1059 = vadd.f32 0.0, %v1058
      %v1060 = vpop.f32.mrb[0].mxu0
      %1061 = vmatprep.mubr.f32.mxu0 0.0
      %1062 = vmatmul.mubr.f32.gmra.mrb[0].mxu0 %v826
      %v1063 = vpop.f32.mrb[0].mxu0
      %v1064 = vadd.f32 0.0, %v1063
      %v1065 = vpop.f32.mrb[0].mxu0
      %1066 = vmatprep.mubr.f32.mxu0 0.0
      %1067 = vmatmul.mubr.f32.gmra.mrb[0].mxu0 %v828
      %v1068 = vpop.f32.mrb[0].mxu0
      %v1069 = vadd.f32 0.0, %v1068
      %v1070 = vpop.f32.mrb[0].mxu0
      %1071 = vmatprep.mubr.f32.mxu0 0.0
      %1072 = vmatmul.mubr.f32.gmra.mrb[0].mxu0 %v830
      %v1073 = vpop.f32.mrb[0].mxu0
      %v1074 = vadd.f32 0.0, %v1073
      %v1075 = vpop.f32.mrb[0].mxu0
      %1076 = vmatprep.mubr.f32.mxu0 0.0
      %1077 = vmatmul.mubr.f32.gmra.mrb[0].mxu0 %v832
      %v1078 = vpop.f32.mrb[0].mxu0
      %v1079 = vadd.f32 0.0, %v1078
      %v1080 = vpop.f32.mrb[0].mxu0
      %1081 = vdwg.mxu0
      %v1082 = vadd.f32 %v649, %v904
      %v1083 = vadd.f32 %v650, %v909
      %v1084 = vadd.f32 %v651, %v914
      %v1085 = vadd.f32 %v652, %v919
      %v1086 = vadd.f32 %v653, %v924
      %v1087 = vadd.f32 %v654, %v929
      %v1088 = vadd.f32 %v655, %v934
      %v1089 = vadd.f32 %v656, %v939
      %v1090 = vadd.f32 %v657, %v944
      %v1091 = vadd.f32 %v658, %v949
      %v1092 = vadd.f32 %v659, %v954
      %v1093 = vadd.f32 %v660, %v959
      %v1094 = vadd.f32 %v661, %v964
      %v1095 = vadd.f32 %v662, %v969
      %v1096 = vadd.f32 %v663, %v974
      %v1097 = vadd.f32 %v664, %v979
      %v1098 = vadd.f32 %v665, %v984
      %v1099 = vadd.f32 %v666, %v989
      %v1100 = vadd.f32 %v667, %v994
      %v1101 = vadd.f32 %v668, %v999
      %v1102 = vadd.f32 %v669, %v1004
      %v1103 = vadd.f32 %v670, %v1009
      %v1104 = vadd.f32 %v671, %v1014
      %v1105 = vadd.f32 %v672, %v1019
      %v1106 = vadd.f32 %v673, %v1024
      %v1107 = vadd.f32 %v674, %v1029
      %v1108 = vadd.f32 %v675, %v1034
      %v1109 = vadd.f32 %v676, %v1039
      %v1110 = vadd.f32 %v677, %v1044
      %v1111 = vadd.f32 %v678, %v1049
      %v1112 = vadd.f32 %v679, %v1054
      %v1113 = vadd.f32 %v680, %v1059
      %v1114 = vadd.f32 %v681, %v1064
      %v1115 = vadd.f32 %v682, %v1069
      %v1116 = vadd.f32 %v683, %v1074
      %v1117 = vadd.f32 %v684, %v1079
      %1118 = vst.msk [vmem:[#allocation2] sm:$0xff] %vm612, %v1082
      %1119 = vst.msk [vmem:[#allocation2 + $0x8] sm:$0xff] %vm612, %v1083
      %1120 = vst.msk [vmem:[#allocation2 + $0x10] sm:$0xff] %vm612, %v1084
      %1121 = vst.msk [vmem:[#allocation2 + $0x18] sm:$0xff] %vm612, %v1085
      %1122 = vst.msk [vmem:[#allocation2 + $0x20] sm:$0xff] %vm612, %v1086
      %1123 = vst.msk [vmem:[#allocation2 + $0x28] sm:$0xff] %vm612, %v1087
      %1124 = vst.msk [vmem:[#allocation2 + $0x30] sm:$0xff] %vm612, %v1088
      %1125 = vst.msk [vmem:[#allocation2 + $0x38] sm:$0xff] %vm612, %v1089
      %1126 = vst.msk [vmem:[#allocation2 + $0x40] sm:$0xff] %vm612, %v1090
      %1127 = vst.msk [vmem:[#allocation2 + $0x48] sm:$0xff] %vm612, %v1091
      %1128 = vst.msk [vmem:[#allocation2 + $0x50] sm:$0xff] %vm612, %v1092
      %1129 = vst.msk [vmem:[#allocation2 + $0x58] sm:$0xff] %vm612, %v1093
      %1130 = vst.msk [vmem:[#allocation2 + $0x60] sm:$0xff] %vm612, %v1094
      %1131 = vst.msk [vmem:[#allocation2 + $0x68] sm:$0xff] %vm612, %v1095
      %1132 = vst.msk [vmem:[#allocation2 + $0x70] sm:$0xff] %vm612, %v1096
      %1133 = vst.msk [vmem:[#allocation2 + $0x78] sm:$0xff] %vm612, %v1097
      %1134 = vst.msk [vmem:[#allocation2 + $0x80] sm:$0xff] %vm612, %v1098
      %1135 = vst.msk [vmem:[#allocation2 + $0x88] sm:$0xff] %vm612, %v1099
      %1136 = vst.msk [vmem:[#allocation2 + $0x90] sm:$0xff] %vm612, %v1100
      %1137 = vst.msk [vmem:[#allocation2 + $0x98] sm:$0xff] %vm612, %v1101
      %1138 = vst.msk [vmem:[#allocation2 + $0xa0] sm:$0xff] %vm612, %v1102
      %1139 = vst.msk [vmem:[#allocation2 + $0xa8] sm:$0xff] %vm612, %v1103
      %1140 = vst.msk [vmem:[#allocation2 + $0xb0] sm:$0xff] %vm612, %v1104
      %1141 = vst.msk [vmem:[#allocation2 + $0xb8] sm:$0xff] %vm612, %v1105
      %1142 = vst.msk [vmem:[#allocation2 + $0xc0] sm:$0xff] %vm612, %v1106
      %1143 = vst.msk [vmem:[#allocation2 + $0xc8] sm:$0xff] %vm612, %v1107
      %1144 = vst.msk [vmem:[#allocation2 + $0xd0] sm:$0xff] %vm612, %v1108
      %1145 = vst.msk [vmem:[#allocation2 + $0xd8] sm:$0xff] %vm612, %v1109
      %1146 = vst.msk [vmem:[#allocation2 + $0xe0] sm:$0xff] %vm612, %v1110
      %1147 = vst.msk [vmem:[#allocation2 + $0xe8] sm:$0xff] %vm612, %v1111
      %1148 = vst.msk [vmem:[#allocation2 + $0xf0] sm:$0xff] %vm612, %v1112
      %1149 = vst.msk [vmem:[#allocation2 + $0xf8] sm:$0xff] %vm612, %v1113
      %1150 = vst.msk [vmem:[#allocation2 + $0x100] sm:$0xff] %vm612, %v1114
      %1151 = vst.msk [vmem:[#allocation2 + $0x108] sm:$0xff] %vm612, %v1115
      %1152 = vst.msk [vmem:[#allocation2 + $0x110] sm:$0xff] %vm612, %v1116
      %1153 = vst.msk [vmem:[#allocation2 + $0x118] sm:$0xff] %vm612, %v1117
      %v1154 = vld [vmem:[#allocation2] sm:$0xff]
      %v1155 = vld [vmem:[#allocation2 + $0x8] sm:$0xff]
      %v1156 = vld [vmem:[#allocation2 + $0x10] sm:$0xff]
      %v1157 = vld [vmem:[#allocation2 + $0x18] sm:$0xff]
      %v1158 = vld [vmem:[#allocation2 + $0x20] sm:$0xff]
      %v1159 = vld [vmem:[#allocation2 + $0x28] sm:$0xff]
      %v1160 = vld [vmem:[#allocation2 + $0x30] sm:$0xff]
      %v1161 = vld [vmem:[#allocation2 + $0x38] sm:$0xff]
      %v1162 = vld [vmem:[#allocation2 + $0x40] sm:$0xff]
      %v1163 = vld [vmem:[#allocation2 + $0x48] sm:$0xff]
      %v1164 = vld [vmem:[#allocation2 + $0x50] sm:$0xff]
      %v1165 = vld [vmem:[#allocation2 + $0x58] sm:$0xff]
      %v1166 = vld [vmem:[#allocation2 + $0x60] sm:$0xff]
      %v1167 = vld [vmem:[#allocation2 + $0x68] sm:$0xff]
      %v1168 = vld [vmem:[#allocation2 + $0x70] sm:$0xff]
      %v1169 = vld [vmem:[#allocation2 + $0x78] sm:$0xff]
      %v1170 = vld [vmem:[#allocation2 + $0x80] sm:$0xff]
      %v1171 = vld [vmem:[#allocation2 + $0x88] sm:$0xff]
      %v1172 = vld [vmem:[#allocation2 + $0x90] sm:$0xff]
      %v1173 = vld [vmem:[#allocation2 + $0x98] sm:$0xff]
      %v1174 = vld [vmem:[#allocation2 + $0xa0] sm:$0xff]
      %v1175 = vld [vmem:[#allocation2 + $0xa8] sm:$0xff]
      %v1176 = vld [vmem:[#allocation2 + $0xb0] sm:$0xff]
      %v1177 = vld [vmem:[#allocation2 + $0xb8] sm:$0xff]
      %v1178 = vld [vmem:[#allocation2 + $0xc0] sm:$0xff]
      %v1179 = vld [vmem:[#allocation2 + $0xc8] sm:$0xff]
      %v1180 = vld [vmem:[#allocation2 + $0xd0] sm:$0xff]
      %v1181 = vld [vmem:[#allocation2 + $0xd8] sm:$0xff]
      %v1182 = vld [vmem:[#allocation2 + $0xe0] sm:$0xff]
      %v1183 = vld [vmem:[#allocation2 + $0xe8] sm:$0xff]
      %v1184 = vld [vmem:[#allocation2 + $0xf0] sm:$0xff]
      %v1185 = vld [vmem:[#allocation2 + $0xf8] sm:$0xff]
      %v1186 = vld [vmem:[#allocation2 + $0x100] sm:$0xff]
      %v1187 = vld [vmem:[#allocation2 + $0x108] sm:$0xff]
      %v1188 = vld [vmem:[#allocation2 + $0x110] sm:$0xff]
      %v1189 = vld [vmem:[#allocation2 + $0x118] sm:$0xff]
      %s1190 = scalar_lea.vmem %s1, 8
      %v1191 = vld [vmem:[%s1190] sm:$0x7]
      %vm1192 = vcmask 1045504
      %v1193 = vrot.slane %v212, 2
      %v1194 = vrot.slane %v213, 2
      %v1195 = vsel %vm1192, %v1193, %v1194
      %v1196 = vrot.slane %v214, 2
      %v1197 = vsel %vm1192, %v1194, %v1196
      %v1198 = vrot.slane %v215, 2
      %v1199 = vsel %vm1192, %v1196, %v1198
      %v1200 = vrot.slane %v216, 2
      %v1201 = vsel %vm1192, %v1198, %v1200
      %v1202 = vrot.slane %v217, 2
      %v1203 = vsel %vm1192, %v1200, %v1202
      %v1204 = vrot.slane %v218, 2
      %v1205 = vsel %vm1192, %v1202, %v1204
      %v1206 = vrot.slane %v219, 2
      %v1207 = vsel %vm1192, %v1204, %v1206
      %v1208 = vrot.slane %v220, 2
      %v1209 = vsel %vm1192, %v1206, %v1208
      %v1210 = vrot.slane %v221, 2
      %v1211 = vsel %vm1192, %v1208, %v1210
      %v1212 = vrot.slane %v222, 2
      %v1213 = vsel %vm1192, %v1210, %v1212
      %v1214 = vrot.slane %v223, 2
      %v1215 = vsel %vm1192, %v1212, %v1214
      %v1216 = vrot.slane %v224, 2
      %v1217 = vsel %vm1192, %v1214, %v1216
      %v1218 = vrot.slane %v225, 2
      %v1219 = vsel %vm1192, %v1216, %v1218
      %v1220 = vrot.slane %v226, 2
      %v1221 = vsel %vm1192, %v1218, %v1220
      %v1222 = vrot.slane %v227, 2
      %v1223 = vsel %vm1192, %v1220, %v1222
      %v1224 = vrot.slane %v228, 2
      %v1225 = vsel %vm1192, %v1222, %v1224
      %v1226 = vrot.slane %v229, 2
      %v1227 = vsel %vm1192, %v1224, %v1226
      %v1228 = vrot.slane %v230, 2
      %v1229 = vsel %vm1192, %v1226, %v1228
      %v1230 = vrot.slane %v231, 2
      %v1231 = vsel %vm1192, %v1228, %v1230
      %v1232 = vrot.slane %v232, 2
      %v1233 = vsel %vm1192, %v1230, %v1232
      %v1234 = vrot.slane %v233, 2
      %v1235 = vsel %vm1192, %v1232, %v1234
      %v1236 = vrot.slane %v234, 2
      %v1237 = vsel %vm1192, %v1234, %v1236
      %v1238 = vrot.slane %v235, 2
      %v1239 = vsel %vm1192, %v1236, %v1238
      %v1240 = vrot.slane %v236, 2
      %v1241 = vsel %vm1192, %v1238, %v1240
      %v1242 = vrot.slane %v237, 2
      %v1243 = vsel %vm1192, %v1240, %v1242
      %v1244 = vrot.slane %v238, 2
      %v1245 = vsel %vm1192, %v1242, %v1244
      %v1246 = vrot.slane %v239, 2
      %v1247 = vsel %vm1192, %v1244, %v1246
      %v1248 = vrot.slane %v240, 2
      %v1249 = vsel %vm1192, %v1246, %v1248
      %v1250 = vrot.slane %v241, 2
      %v1251 = vsel %vm1192, %v1248, %v1250
      %v1252 = vrot.slane %v242, 2
      %v1253 = vsel %vm1192, %v1250, %v1252
      %v1254 = vrot.slane %v243, 2
      %v1255 = vsel %vm1192, %v1252, %v1254
      %v1256 = vrot.slane %v244, 2
      %v1257 = vsel %vm1192, %v1254, %v1256
      %v1258 = vrot.slane %v245, 2
      %v1259 = vsel %vm1192, %v1256, %v1258
      %v1260 = vrot.slane %v246, 2
      %v1261 = vsel %vm1192, %v1258, %v1260
      %v1262 = vrot.slane %v247, 2
      %v1263 = vsel %vm1192, %v1260, %v1262
      %v1264 = vrot.slane %v248, 2
      %v1265 = vsel %vm1192, %v1262, %v1264
      %v1266 = vsel %vm254, %v1195, 0
      %v1268 = vsel %vm254, %v1197, 0
      %v1270 = vsel %vm254, %v1199, 0
      %v1272 = vsel %vm254, %v1201, 0
      %v1274 = vsel %vm254, %v1203, 0
      %v1276 = vsel %vm254, %v1205, 0
      %v1278 = vsel %vm254, %v1207, 0
      %v1280 = vsel %vm254, %v1209, 0
      %v1282 = vsel %vm254, %v1211, 0
      %v1284 = vsel %vm254, %v1213, 0
      %v1286 = vsel %vm254, %v1215, 0
      %v1288 = vsel %vm254, %v1217, 0
      %v1290 = vsel %vm254, %v1219, 0
      %v1292 = vsel %vm254, %v1221, 0
      %v1294 = vsel %vm254, %v1223, 0
      %v1296 = vsel %vm254, %v1225, 0
      %v1298 = vsel %vm254, %v1227, 0
      %v1300 = vsel %vm254, %v1229, 0
      %v1302 = vsel %vm254, %v1231, 0
      %v1304 = vsel %vm254, %v1233, 0
      %v1306 = vsel %vm254, %v1235, 0
      %v1308 = vsel %vm254, %v1237, 0
      %v1310 = vsel %vm254, %v1239, 0
      %v1312 = vsel %vm254, %v1241, 0
      %v1314 = vsel %vm254, %v1243, 0
      %v1316 = vsel %vm254, %v1245, 0
      %v1318 = vsel %vm254, %v1247, 0
      %v1320 = vsel %vm254, %v1249, 0
      %v1322 = vsel %vm254, %v1251, 0
      %v1324 = vsel %vm254, %v1253, 0
      %v1326 = vsel %vm254, %v1255, 0
      %v1328 = vsel %vm254, %v1257, 0
      %v1330 = vsel %vm254, %v1259, 0
      %v1332 = vsel %vm254, %v1261, 0
      %v1334 = vsel %vm254, %v1263, 0
      %v1336 = vsel %vm254, %v1265, 0
      %v1339 = vsel %vm363, %v1191, 0
      %1341 = vmatprep.subr.mxu0 0.0
      %1342 = vmatpush1.msra.mxu0 %v1339
      %1343 = vmatprep.subr.mxu0 0.0
      %1344 = vmatpush1.msra.mxu0 0.0
      %1345 = vmatprep.subr.mxu0 0.0
      %1346 = vmatpush1.msra.mxu0 0.0
      %1347 = vmatprep.subr.mxu0 0.0
      %1348 = vmatpush1.msra.mxu0 0.0
      %1349 = vmatprep.subr.mxu0 0.0
      %1350 = vmatpush1.msra.mxu0 0.0
      %1351 = vmatprep.subr.mxu0 0.0
      %1352 = vmatpush1.msra.mxu0 0.0
      %1353 = vmatprep.subr.mxu0 0.0
      %1354 = vmatpush1.msra.mxu0 0.0
      %1355 = vmatprep.subr.mxu0 0.0
      %1356 = vmatpush1.msra.mxu0 0.0
      %1357 = vmatprep.subr.mxu0 0.0
      %1358 = vmatpush1.msra.mxu0 0.0
      %1359 = vmatprep.subr.mxu0 0.0
      %1360 = vmatpush1.msra.mxu0 0.0
      %1361 = vmatprep.subr.mxu0 0.0
      %1362 = vmatpush1.msra.mxu0 0.0
      %1363 = vmatprep.subr.mxu0 0.0
      %1364 = vmatpush1.msra.mxu0 0.0
      %1365 = vmatprep.subr.mxu0 0.0
      %1366 = vmatpush1.msra.mxu0 0.0
      %1367 = vmatprep.subr.mxu0 0.0
      %1368 = vmatpush1.msra.mxu0 0.0
      %1369 = vmatprep.subr.mxu0 0.0
      %1370 = vmatpush1.msra.mxu0 0.0
      %1371 = vmatprep.subr.mxu0 0.0
      %1372 = vmatpush1.msra.mxu0 0.0
      %1373 = vmatprep.subr.mxu0 0.0
      %1374 = vmatpush1.msra.mxu0 0.0
      %1375 = vmatprep.subr.mxu0 0.0
      %1376 = vmatpush1.msra.mxu0 0.0
      %1377 = vmatprep.subr.mxu0 0.0
      %1378 = vmatpush1.msra.mxu0 0.0
      %1379 = vmatprep.subr.mxu0 0.0
      %1380 = vmatpush1.msra.mxu0 0.0
      %1381 = vmatprep.subr.mxu0 0.0
      %1382 = vmatpush1.msra.mxu0 0.0
      %1383 = vmatprep.subr.mxu0 0.0
      %1384 = vmatpush1.msra.mxu0 0.0
      %1385 = vmatprep.subr.mxu0 0.0
      %1386 = vmatpush1.msra.mxu0 0.0
      %1387 = vmatprep.subr.mxu0 0.0
      %1388 = vmatpush1.msra.mxu0 0.0
      %1389 = vmatprep.subr.mxu0 0.0
      %1390 = vmatpush1.msra.mxu0 0.0
      %1391 = vmatprep.subr.mxu0 0.0
      %1392 = vmatpush1.msra.mxu0 0.0
      %1393 = vmatprep.subr.mxu0 0.0
      %1394 = vmatpush1.msra.mxu0 0.0
      %1395 = vmatprep.subr.mxu0 0.0
      %1396 = vmatpush1.msra.mxu0 0.0
      %1397 = vmatprep.subr.mxu0 0.0
      %1398 = vmatpush1.msra.mxu0 0.0
      %1399 = vmatprep.subr.mxu0 0.0
      %1400 = vmatpush1.msra.mxu0 0.0
      %1401 = vmatprep.subr.mxu0 0.0
      %1402 = vmatpush1.msra.mxu0 0.0
      %1403 = vmatprep.subr.mxu0 0.0
      %1404 = vmatpush1.msra.mxu0 0.0
      %1405 = vmatprep.mubr.f32.mxu0 0.0
      %1406 = vmatmul.mubr.f32.gmra.mrb[0].mxu0 %v1266
      %v1407 = vpop.f32.mrb[0].mxu0
      %v1408 = vadd.f32 0.0, %v1407
      %v1409 = vpop.f32.mrb[0].mxu0
      %1410 = vmatprep.mubr.f32.mxu0 0.0
      %1411 = vmatmul.mubr.f32.gmra.mrb[0].mxu0 %v1268
      %v1412 = vpop.f32.mrb[0].mxu0
      %v1413 = vadd.f32 0.0, %v1412
      %v1414 = vpop.f32.mrb[0].mxu0
      %1415 = vmatprep.mubr.f32.mxu0 0.0
      %1416 = vmatmul.mubr.f32.gmra.mrb[0].mxu0 %v1270
      %v1417 = vpop.f32.mrb[0].mxu0
      %v1418 = vadd.f32 0.0, %v1417
      %v1419 = vpop.f32.mrb[0].mxu0
      %1420 = vmatprep.mubr.f32.mxu0 0.0
      %1421 = vmatmul.mubr.f32.gmra.mrb[0].mxu0 %v1272
      %v1422 = vpop.f32.mrb[0].mxu0
      %v1423 = vadd.f32 0.0, %v1422
      %v1424 = vpop.f32.mrb[0].mxu0
      %1425 = vmatprep.mubr.f32.mxu0 0.0
      %1426 = vmatmul.mubr.f32.gmra.mrb[0].mxu0 %v1274
      %v1427 = vpop.f32.mrb[0].mxu0
      %v1428 = vadd.f32 0.0, %v1427
      %v1429 = vpop.f32.mrb[0].mxu0
      %1430 = vmatprep.mubr.f32.mxu0 0.0
      %1431 = vmatmul.mubr.f32.gmra.mrb[0].mxu0 %v1276
      %v1432 = vpop.f32.mrb[0].mxu0
      %v1433 = vadd.f32 0.0, %v1432
      %v1434 = vpop.f32.mrb[0].mxu0
      %1435 = vmatprep.mubr.f32.mxu0 0.0
      %1436 = vmatmul.mubr.f32.gmra.mrb[0].mxu0 %v1278
      %v1437 = vpop.f32.mrb[0].mxu0
      %v1438 = vadd.f32 0.0, %v1437
      %v1439 = vpop.f32.mrb[0].mxu0
      %1440 = vmatprep.mubr.f32.mxu0 0.0
      %1441 = vmatmul.mubr.f32.gmra.mrb[0].mxu0 %v1280
      %v1442 = vpop.f32.mrb[0].mxu0
      %v1443 = vadd.f32 0.0, %v1442
      %v1444 = vpop.f32.mrb[0].mxu0
      %1445 = vmatprep.mubr.f32.mxu0 0.0
      %1446 = vmatmul.mubr.f32.gmra.mrb[0].mxu0 %v1282
      %v1447 = vpop.f32.mrb[0].mxu0
      %v1448 = vadd.f32 0.0, %v1447
      %v1449 = vpop.f32.mrb[0].mxu0
      %1450 = vmatprep.mubr.f32.mxu0 0.0
      %1451 = vmatmul.mubr.f32.gmra.mrb[0].mxu0 %v1284
      %v1452 = vpop.f32.mrb[0].mxu0
      %v1453 = vadd.f32 0.0, %v1452
      %v1454 = vpop.f32.mrb[0].mxu0
      %1455 = vmatprep.mubr.f32.mxu0 0.0
      %1456 = vmatmul.mubr.f32.gmra.mrb[0].mxu0 %v1286
      %v1457 = vpop.f32.mrb[0].mxu0
      %v1458 = vadd.f32 0.0, %v1457
      %v1459 = vpop.f32.mrb[0].mxu0
      %1460 = vmatprep.mubr.f32.mxu0 0.0
      %1461 = vmatmul.mubr.f32.gmra.mrb[0].mxu0 %v1288
      %v1462 = vpop.f32.mrb[0].mxu0
      %v1463 = vadd.f32 0.0, %v1462
      %v1464 = vpop.f32.mrb[0].mxu0
      %1465 = vmatprep.mubr.f32.mxu0 0.0
      %1466 = vmatmul.mubr.f32.gmra.mrb[0].mxu0 %v1290
      %v1467 = vpop.f32.mrb[0].mxu0
      %v1468 = vadd.f32 0.0, %v1467
      %v1469 = vpop.f32.mrb[0].mxu0
      %1470 = vmatprep.mubr.f32.mxu0 0.0
      %1471 = vmatmul.mubr.f32.gmra.mrb[0].mxu0 %v1292
      %v1472 = vpop.f32.mrb[0].mxu0
      %v1473 = vadd.f32 0.0, %v1472
      %v1474 = vpop.f32.mrb[0].mxu0
      %1475 = vmatprep.mubr.f32.mxu0 0.0
      %1476 = vmatmul.mubr.f32.gmra.mrb[0].mxu0 %v1294
      %v1477 = vpop.f32.mrb[0].mxu0
      %v1478 = vadd.f32 0.0, %v1477
      %v1479 = vpop.f32.mrb[0].mxu0
      %1480 = vmatprep.mubr.f32.mxu0 0.0
      %1481 = vmatmul.mubr.f32.gmra.mrb[0].mxu0 %v1296
      %v1482 = vpop.f32.mrb[0].mxu0
      %v1483 = vadd.f32 0.0, %v1482
      %v1484 = vpop.f32.mrb[0].mxu0
      %1485 = vmatprep.mubr.f32.mxu0 0.0
      %1486 = vmatmul.mubr.f32.gmra.mrb[0].mxu0 %v1298
      %v1487 = vpop.f32.mrb[0].mxu0
      %v1488 = vadd.f32 0.0, %v1487
      %v1489 = vpop.f32.mrb[0].mxu0
      %1490 = vmatprep.mubr.f32.mxu0 0.0
      %1491 = vmatmul.mubr.f32.gmra.mrb[0].mxu0 %v1300
      %v1492 = vpop.f32.mrb[0].mxu0
      %v1493 = vadd.f32 0.0, %v1492
      %v1494 = vpop.f32.mrb[0].mxu0
      %1495 = vmatprep.mubr.f32.mxu0 0.0
      %1496 = vmatmul.mubr.f32.gmra.mrb[0].mxu0 %v1302
      %v1497 = vpop.f32.mrb[0].mxu0
      %v1498 = vadd.f32 0.0, %v1497
      %v1499 = vpop.f32.mrb[0].mxu0
      %1500 = vmatprep.mubr.f32.mxu0 0.0
      %1501 = vmatmul.mubr.f32.gmra.mrb[0].mxu0 %v1304
      %v1502 = vpop.f32.mrb[0].mxu0
      %v1503 = vadd.f32 0.0, %v1502
      %v1504 = vpop.f32.mrb[0].mxu0
      %1505 = vmatprep.mubr.f32.mxu0 0.0
      %1506 = vmatmul.mubr.f32.gmra.mrb[0].mxu0 %v1306
      %v1507 = vpop.f32.mrb[0].mxu0
      %v1508 = vadd.f32 0.0, %v1507
      %v1509 = vpop.f32.mrb[0].mxu0
      %1510 = vmatprep.mubr.f32.mxu0 0.0
      %1511 = vmatmul.mubr.f32.gmra.mrb[0].mxu0 %v1308
      %v1512 = vpop.f32.mrb[0].mxu0
      %v1513 = vadd.f32 0.0, %v1512
      %v1514 = vpop.f32.mrb[0].mxu0
      %1515 = vmatprep.mubr.f32.mxu0 0.0
      %1516 = vmatmul.mubr.f32.gmra.mrb[0].mxu0 %v1310
      %v1517 = vpop.f32.mrb[0].mxu0
      %v1518 = vadd.f32 0.0, %v1517
      %v1519 = vpop.f32.mrb[0].mxu0
      %1520 = vmatprep.mubr.f32.mxu0 0.0
      %1521 = vmatmul.mubr.f32.gmra.mrb[0].mxu0 %v1312
      %v1522 = vpop.f32.mrb[0].mxu0
      %v1523 = vadd.f32 0.0, %v1522
      %v1524 = vpop.f32.mrb[0].mxu0
      %1525 = vmatprep.mubr.f32.mxu0 0.0
      %1526 = vmatmul.mubr.f32.gmra.mrb[0].mxu0 %v1314
      %v1527 = vpop.f32.mrb[0].mxu0
      %v1528 = vadd.f32 0.0, %v1527
      %v1529 = vpop.f32.mrb[0].mxu0
      %1530 = vmatprep.mubr.f32.mxu0 0.0
      %1531 = vmatmul.mubr.f32.gmra.mrb[0].mxu0 %v1316
      %v1532 = vpop.f32.mrb[0].mxu0
      %v1533 = vadd.f32 0.0, %v1532
      %v1534 = vpop.f32.mrb[0].mxu0
      %1535 = vmatprep.mubr.f32.mxu0 0.0
      %1536 = vmatmul.mubr.f32.gmra.mrb[0].mxu0 %v1318
      %v1537 = vpop.f32.mrb[0].mxu0
      %v1538 = vadd.f32 0.0, %v1537
      %v1539 = vpop.f32.mrb[0].mxu0
      %1540 = vmatprep.mubr.f32.mxu0 0.0
      %1541 = vmatmul.mubr.f32.gmra.mrb[0].mxu0 %v1320
      %v1542 = vpop.f32.mrb[0].mxu0
      %v1543 = vadd.f32 0.0, %v1542
      %v1544 = vpop.f32.mrb[0].mxu0
      %1545 = vmatprep.mubr.f32.mxu0 0.0
      %1546 = vmatmul.mubr.f32.gmra.mrb[0].mxu0 %v1322
      %v1547 = vpop.f32.mrb[0].mxu0
      %v1548 = vadd.f32 0.0, %v1547
      %v1549 = vpop.f32.mrb[0].mxu0
      %1550 = vmatprep.mubr.f32.mxu0 0.0
      %1551 = vmatmul.mubr.f32.gmra.mrb[0].mxu0 %v1324
      %v1552 = vpop.f32.mrb[0].mxu0
      %v1553 = vadd.f32 0.0, %v1552
      %v1554 = vpop.f32.mrb[0].mxu0
      %1555 = vmatprep.mubr.f32.mxu0 0.0
      %1556 = vmatmul.mubr.f32.gmra.mrb[0].mxu0 %v1326
      %v1557 = vpop.f32.mrb[0].mxu0
      %v1558 = vadd.f32 0.0, %v1557
      %v1559 = vpop.f32.mrb[0].mxu0
      %1560 = vmatprep.mubr.f32.mxu0 0.0
      %1561 = vmatmul.mubr.f32.gmra.mrb[0].mxu0 %v1328
      %v1562 = vpop.f32.mrb[0].mxu0
      %v1563 = vadd.f32 0.0, %v1562
      %v1564 = vpop.f32.mrb[0].mxu0
      %1565 = vmatprep.mubr.f32.mxu0 0.0
      %1566 = vmatmul.mubr.f32.gmra.mrb[0].mxu0 %v1330
      %v1567 = vpop.f32.mrb[0].mxu0
      %v1568 = vadd.f32 0.0, %v1567
      %v1569 = vpop.f32.mrb[0].mxu0
      %1570 = vmatprep.mubr.f32.mxu0 0.0
      %1571 = vmatmul.mubr.f32.gmra.mrb[0].mxu0 %v1332
      %v1572 = vpop.f32.mrb[0].mxu0
      %v1573 = vadd.f32 0.0, %v1572
      %v1574 = vpop.f32.mrb[0].mxu0
      %1575 = vmatprep.mubr.f32.mxu0 0.0
      %1576 = vmatmul.mubr.f32.gmra.mrb[0].mxu0 %v1334
      %v1577 = vpop.f32.mrb[0].mxu0
      %v1578 = vadd.f32 0.0, %v1577
      %v1579 = vpop.f32.mrb[0].mxu0
      %1580 = vmatprep.mubr.f32.mxu0 0.0
      %1581 = vmatmul.mubr.f32.gmra.mrb[0].mxu0 %v1336
      %v1582 = vpop.f32.mrb[0].mxu0
      %v1583 = vadd.f32 0.0, %v1582
      %v1584 = vpop.f32.mrb[0].mxu0
      %1585 = vdwg.mxu0
      %v1586 = vadd.f32 %v1154, %v1408
      %v1587 = vadd.f32 %v1155, %v1413
      %v1588 = vadd.f32 %v1156, %v1418
      %v1589 = vadd.f32 %v1157, %v1423
      %v1590 = vadd.f32 %v1158, %v1428
      %v1591 = vadd.f32 %v1159, %v1433
      %v1592 = vadd.f32 %v1160, %v1438
      %v1593 = vadd.f32 %v1161, %v1443
      %v1594 = vadd.f32 %v1162, %v1448
      %v1595 = vadd.f32 %v1163, %v1453
      %v1596 = vadd.f32 %v1164, %v1458
      %v1597 = vadd.f32 %v1165, %v1463
      %v1598 = vadd.f32 %v1166, %v1468
      %v1599 = vadd.f32 %v1167, %v1473
      %v1600 = vadd.f32 %v1168, %v1478
      %v1601 = vadd.f32 %v1169, %v1483
      %v1602 = vadd.f32 %v1170, %v1488
      %v1603 = vadd.f32 %v1171, %v1493
      %v1604 = vadd.f32 %v1172, %v1498
      %v1605 = vadd.f32 %v1173, %v1503
      %v1606 = vadd.f32 %v1174, %v1508
      %v1607 = vadd.f32 %v1175, %v1513
      %v1608 = vadd.f32 %v1176, %v1518
      %v1609 = vadd.f32 %v1177, %v1523
      %v1610 = vadd.f32 %v1178, %v1528
      %v1611 = vadd.f32 %v1179, %v1533
      %v1612 = vadd.f32 %v1180, %v1538
      %v1613 = vadd.f32 %v1181, %v1543
      %v1614 = vadd.f32 %v1182, %v1548
      %v1615 = vadd.f32 %v1183, %v1553
      %v1616 = vadd.f32 %v1184, %v1558
      %v1617 = vadd.f32 %v1185, %v1563
      %v1618 = vadd.f32 %v1186, %v1568
      %v1619 = vadd.f32 %v1187, %v1573
      %v1620 = vadd.f32 %v1188, %v1578
      %v1621 = vadd.f32 %v1189, %v1583
      %1622 = vst.msk [vmem:[#allocation2] sm:$0xff] %vm612, %v1586
      %1623 = vst.msk [vmem:[#allocation2 + $0x8] sm:$0xff] %vm612, %v1587
      %1624 = vst.msk [vmem:[#allocation2 + $0x10] sm:$0xff] %vm612, %v1588
      %1625 = vst.msk [vmem:[#allocation2 + $0x18] sm:$0xff] %vm612, %v1589
      %1626 = vst.msk [vmem:[#allocation2 + $0x20] sm:$0xff] %vm612, %v1590
      %1627 = vst.msk [vmem:[#allocation2 + $0x28] sm:$0xff] %vm612, %v1591
      %1628 = vst.msk [vmem:[#allocation2 + $0x30] sm:$0xff] %vm612, %v1592
      %1629 = vst.msk [vmem:[#allocation2 + $0x38] sm:$0xff] %vm612, %v1593
      %1630 = vst.msk [vmem:[#allocation2 + $0x40] sm:$0xff] %vm612, %v1594
      %1631 = vst.msk [vmem:[#allocation2 + $0x48] sm:$0xff] %vm612, %v1595
      %1632 = vst.msk [vmem:[#allocation2 + $0x50] sm:$0xff] %vm612, %v1596
      %1633 = vst.msk [vmem:[#allocation2 + $0x58] sm:$0xff] %vm612, %v1597
      %1634 = vst.msk [vmem:[#allocation2 + $0x60] sm:$0xff] %vm612, %v1598
      %1635 = vst.msk [vmem:[#allocation2 + $0x68] sm:$0xff] %vm612, %v1599
      %1636 = vst.msk [vmem:[#allocation2 + $0x70] sm:$0xff] %vm612, %v1600
      %1637 = vst.msk [vmem:[#allocation2 + $0x78] sm:$0xff] %vm612, %v1601
      %1638 = vst.msk [vmem:[#allocation2 + $0x80] sm:$0xff] %vm612, %v1602
      %1639 = vst.msk [vmem:[#allocation2 + $0x88] sm:$0xff] %vm612, %v1603
      %1640 = vst.msk [vmem:[#allocation2 + $0x90] sm:$0xff] %vm612, %v1604
      %1641 = vst.msk [vmem:[#allocation2 + $0x98] sm:$0xff] %vm612, %v1605
      %1642 = vst.msk [vmem:[#allocation2 + $0xa0] sm:$0xff] %vm612, %v1606
      %1643 = vst.msk [vmem:[#allocation2 + $0xa8] sm:$0xff] %vm612, %v1607
      %1644 = vst.msk [vmem:[#allocation2 + $0xb0] sm:$0xff] %vm612, %v1608
      %1645 = vst.msk [vmem:[#allocation2 + $0xb8] sm:$0xff] %vm612, %v1609
      %1646 = vst.msk [vmem:[#allocation2 + $0xc0] sm:$0xff] %vm612, %v1610
      %1647 = vst.msk [vmem:[#allocation2 + $0xc8] sm:$0xff] %vm612, %v1611
      %1648 = vst.msk [vmem:[#allocation2 + $0xd0] sm:$0xff] %vm612, %v1612
      %1649 = vst.msk [vmem:[#allocation2 + $0xd8] sm:$0xff] %vm612, %v1613
      %1650 = vst.msk [vmem:[#allocation2 + $0xe0] sm:$0xff] %vm612, %v1614
      %1651 = vst.msk [vmem:[#allocation2 + $0xe8] sm:$0xff] %vm612, %v1615
      %1652 = vst.msk [vmem:[#allocation2 + $0xf0] sm:$0xff] %vm612, %v1616
      %1653 = vst.msk [vmem:[#allocation2 + $0xf8] sm:$0xff] %vm612, %v1617
      %1654 = vst.msk [vmem:[#allocation2 + $0x100] sm:$0xff] %vm612, %v1618
      %1655 = vst.msk [vmem:[#allocation2 + $0x108] sm:$0xff] %vm612, %v1619
      %1656 = vst.msk [vmem:[#allocation2 + $0x110] sm:$0xff] %vm612, %v1620
      %1657 = vst.msk [vmem:[#allocation2 + $0x118] sm:$0xff] %vm612, %v1621
      %v1658 = vld [vmem:[#allocation2] sm:$0xff]
      %v1659 = vld [vmem:[#allocation2 + $0x8] sm:$0xff]
      %v1660 = vld [vmem:[#allocation2 + $0x10] sm:$0xff]
      %v1661 = vld [vmem:[#allocation2 + $0x18] sm:$0xff]
      %v1662 = vld [vmem:[#allocation2 + $0x20] sm:$0xff]
      %v1663 = vld [vmem:[#allocation2 + $0x28] sm:$0xff]
      %v1664 = vld [vmem:[#allocation2 + $0x30] sm:$0xff]
      %v1665 = vld [vmem:[#allocation2 + $0x38] sm:$0xff]
      %v1666 = vld [vmem:[#allocation2 + $0x40] sm:$0xff]
      %v1667 = vld [vmem:[#allocation2 + $0x48] sm:$0xff]
      %v1668 = vld [vmem:[#allocation2 + $0x50] sm:$0xff]
      %v1669 = vld [vmem:[#allocation2 + $0x58] sm:$0xff]
      %v1670 = vld [vmem:[#allocation2 + $0x60] sm:$0xff]
      %v1671 = vld [vmem:[#allocation2 + $0x68] sm:$0xff]
      %v1672 = vld [vmem:[#allocation2 + $0x70] sm:$0xff]
      %v1673 = vld [vmem:[#allocation2 + $0x78] sm:$0xff]
      %v1674 = vld [vmem:[#allocation2 + $0x80] sm:$0xff]
      %v1675 = vld [vmem:[#allocation2 + $0x88] sm:$0xff]
      %v1676 = vld [vmem:[#allocation2 + $0x90] sm:$0xff]
      %v1677 = vld [vmem:[#allocation2 + $0x98] sm:$0xff]
      %v1678 = vld [vmem:[#allocation2 + $0xa0] sm:$0xff]
      %v1679 = vld [vmem:[#allocation2 + $0xa8] sm:$0xff]
      %v1680 = vld [vmem:[#allocation2 + $0xb0] sm:$0xff]
      %v1681 = vld [vmem:[#allocation2 + $0xb8] sm:$0xff]
      %v1682 = vld [vmem:[#allocation2 + $0xc0] sm:$0xff]
      %v1683 = vld [vmem:[#allocation2 + $0xc8] sm:$0xff]
      %v1684 = vld [vmem:[#allocation2 + $0xd0] sm:$0xff]
      %v1685 = vld [vmem:[#allocation2 + $0xd8] sm:$0xff]
      %v1686 = vld [vmem:[#allocation2 + $0xe0] sm:$0xff]
      %v1687 = vld [vmem:[#allocation2 + $0xe8] sm:$0xff]
      %v1688 = vld [vmem:[#allocation2 + $0xf0] sm:$0xff]
      %v1689 = vld [vmem:[#allocation2 + $0xf8] sm:$0xff]
      %v1690 = vld [vmem:[#allocation2 + $0x100] sm:$0xff]
      %v1691 = vld [vmem:[#allocation2 + $0x108] sm:$0xff]
      %v1692 = vld [vmem:[#allocation2 + $0x110] sm:$0xff]
      %v1693 = vld [vmem:[#allocation2 + $0x118] sm:$0xff]
      %s1694 = scalar_lea.vmem %s1, 12
      %v1695 = vld [vmem:[%s1694] sm:$0x7]
      %v1698 = vrot.slane %v249, 2
      %v1699 = vsel %vm1192, %v1264, %v1698
      %v1700 = vrot.slane %v250, 2
      %v1701 = vsel %vm1192, %v1698, %v1700
      %v1702 = vsel %vm254, %v1699, 0
      %v1704 = vsel %vm254, %v1701, 0
      %v1707 = vsel %vm363, %v1695, 0
      %1709 = vmatprep.subr.mxu0 0.0
      %1710 = vmatpush1.msra.mxu0 %v1707
      %1711 = vmatprep.subr.mxu0 0.0
      %1712 = vmatpush1.msra.mxu0 0.0
      %1713 = vmatprep.subr.mxu0 0.0
      %1714 = vmatpush1.msra.mxu0 0.0
      %1715 = vmatprep.subr.mxu0 0.0
      %1716 = vmatpush1.msra.mxu0 0.0
      %1717 = vmatprep.subr.mxu0 0.0
      %1718 = vmatpush1.msra.mxu0 0.0
      %1719 = vmatprep.subr.mxu0 0.0
      %1720 = vmatpush1.msra.mxu0 0.0
      %1721 = vmatprep.subr.mxu0 0.0
      %1722 = vmatpush1.msra.mxu0 0.0
      %1723 = vmatprep.subr.mxu0 0.0
      %1724 = vmatpush1.msra.mxu0 0.0
      %1725 = vmatprep.subr.mxu0 0.0
      %1726 = vmatpush1.msra.mxu0 0.0
      %1727 = vmatprep.subr.mxu0 0.0
      %1728 = vmatpush1.msra.mxu0 0.0
      %1729 = vmatprep.subr.mxu0 0.0
      %1730 = vmatpush1.msra.mxu0 0.0
      %1731 = vmatprep.subr.mxu0 0.0
      %1732 = vmatpush1.msra.mxu0 0.0
      %1733 = vmatprep.subr.mxu0 0.0
      %1734 = vmatpush1.msra.mxu0 0.0
      %1735 = vmatprep.subr.mxu0 0.0
      %1736 = vmatpush1.msra.mxu0 0.0
      %1737 = vmatprep.subr.mxu0 0.0
      %1738 = vmatpush1.msra.mxu0 0.0
      %1739 = vmatprep.subr.mxu0 0.0
      %1740 = vmatpush1.msra.mxu0 0.0
      %1741 = vmatprep.subr.mxu0 0.0
      %1742 = vmatpush1.msra.mxu0 0.0
      %1743 = vmatprep.subr.mxu0 0.0
      %1744 = vmatpush1.msra.mxu0 0.0
      %1745 = vmatprep.subr.mxu0 0.0
      %1746 = vmatpush1.msra.mxu0 0.0
      %1747 = vmatprep.subr.mxu0 0.0
      %1748 = vmatpush1.msra.mxu0 0.0
      %1749 = vmatprep.subr.mxu0 0.0
      %1750 = vmatpush1.msra.mxu0 0.0
      %1751 = vmatprep.subr.mxu0 0.0
      %1752 = vmatpush1.msra.mxu0 0.0
      %1753 = vmatprep.subr.mxu0 0.0
      %1754 = vmatpush1.msra.mxu0 0.0
      %1755 = vmatprep.subr.mxu0 0.0
      %1756 = vmatpush1.msra.mxu0 0.0
      %1757 = vmatprep.subr.mxu0 0.0
      %1758 = vmatpush1.msra.mxu0 0.0
      %1759 = vmatprep.subr.mxu0 0.0
      %1760 = vmatpush1.msra.mxu0 0.0
      %1761 = vmatprep.subr.mxu0 0.0
      %1762 = vmatpush1.msra.mxu0 0.0
      %1763 = vmatprep.subr.mxu0 0.0
      %1764 = vmatpush1.msra.mxu0 0.0
      %1765 = vmatprep.subr.mxu0 0.0
      %1766 = vmatpush1.msra.mxu0 0.0
      %1767 = vmatprep.subr.mxu0 0.0
      %1768 = vmatpush1.msra.mxu0 0.0
      %1769 = vmatprep.subr.mxu0 0.0
      %1770 = vmatpush1.msra.mxu0 0.0
      %1771 = vmatprep.subr.mxu0 0.0
      %1772 = vmatpush1.msra.mxu0 0.0
      %1773 = vmatprep.mubr.f32.mxu0 0.0
      %1774 = vmatmul.mubr.f32.gmra.mrb[0].mxu0 %v1270
      %v1775 = vpop.f32.mrb[0].mxu0
      %v1776 = vadd.f32 0.0, %v1775
      %v1777 = vpop.f32.mrb[0].mxu0
      %1778 = vmatprep.mubr.f32.mxu0 0.0
      %1779 = vmatmul.mubr.f32.gmra.mrb[0].mxu0 %v1272
      %v1780 = vpop.f32.mrb[0].mxu0
      %v1781 = vadd.f32 0.0, %v1780
      %v1782 = vpop.f32.mrb[0].mxu0
      %1783 = vmatprep.mubr.f32.mxu0 0.0
      %1784 = vmatmul.mubr.f32.gmra.mrb[0].mxu0 %v1274
      %v1785 = vpop.f32.mrb[0].mxu0
      %v1786 = vadd.f32 0.0, %v1785
      %v1787 = vpop.f32.mrb[0].mxu0
      %1788 = vmatprep.mubr.f32.mxu0 0.0
      %1789 = vmatmul.mubr.f32.gmra.mrb[0].mxu0 %v1276
      %v1790 = vpop.f32.mrb[0].mxu0
      %v1791 = vadd.f32 0.0, %v1790
      %v1792 = vpop.f32.mrb[0].mxu0
      %1793 = vmatprep.mubr.f32.mxu0 0.0
      %1794 = vmatmul.mubr.f32.gmra.mrb[0].mxu0 %v1278
      %v1795 = vpop.f32.mrb[0].mxu0
      %v1796 = vadd.f32 0.0, %v1795
      %v1797 = vpop.f32.mrb[0].mxu0
      %1798 = vmatprep.mubr.f32.mxu0 0.0
      %1799 = vmatmul.mubr.f32.gmra.mrb[0].mxu0 %v1280
      %v1800 = vpop.f32.mrb[0].mxu0
      %v1801 = vadd.f32 0.0, %v1800
      %v1802 = vpop.f32.mrb[0].mxu0
      %1803 = vmatprep.mubr.f32.mxu0 0.0
      %1804 = vmatmul.mubr.f32.gmra.mrb[0].mxu0 %v1282
      %v1805 = vpop.f32.mrb[0].mxu0
      %v1806 = vadd.f32 0.0, %v1805
      %v1807 = vpop.f32.mrb[0].mxu0
      %1808 = vmatprep.mubr.f32.mxu0 0.0
      %1809 = vmatmul.mubr.f32.gmra.mrb[0].mxu0 %v1284
      %v1810 = vpop.f32.mrb[0].mxu0
      %v1811 = vadd.f32 0.0, %v1810
      %v1812 = vpop.f32.mrb[0].mxu0
      %1813 = vmatprep.mubr.f32.mxu0 0.0
      %1814 = vmatmul.mubr.f32.gmra.mrb[0].mxu0 %v1286
      %v1815 = vpop.f32.mrb[0].mxu0
      %v1816 = vadd.f32 0.0, %v1815
      %v1817 = vpop.f32.mrb[0].mxu0
      %1818 = vmatprep.mubr.f32.mxu0 0.0
      %1819 = vmatmul.mubr.f32.gmra.mrb[0].mxu0 %v1288
      %v1820 = vpop.f32.mrb[0].mxu0
      %v1821 = vadd.f32 0.0, %v1820
      %v1822 = vpop.f32.mrb[0].mxu0
      %1823 = vmatprep.mubr.f32.mxu0 0.0
      %1824 = vmatmul.mubr.f32.gmra.mrb[0].mxu0 %v1290
      %v1825 = vpop.f32.mrb[0].mxu0
      %v1826 = vadd.f32 0.0, %v1825
      %v1827 = vpop.f32.mrb[0].mxu0
      %1828 = vmatprep.mubr.f32.mxu0 0.0
      %1829 = vmatmul.mubr.f32.gmra.mrb[0].mxu0 %v1292
      %v1830 = vpop.f32.mrb[0].mxu0
      %v1831 = vadd.f32 0.0, %v1830
      %v1832 = vpop.f32.mrb[0].mxu0
      %1833 = vmatprep.mubr.f32.mxu0 0.0
      %1834 = vmatmul.mubr.f32.gmra.mrb[0].mxu0 %v1294
      %v1835 = vpop.f32.mrb[0].mxu0
      %v1836 = vadd.f32 0.0, %v1835
      %v1837 = vpop.f32.mrb[0].mxu0
      %1838 = vmatprep.mubr.f32.mxu0 0.0
      %1839 = vmatmul.mubr.f32.gmra.mrb[0].mxu0 %v1296
      %v1840 = vpop.f32.mrb[0].mxu0
      %v1841 = vadd.f32 0.0, %v1840
      %v1842 = vpop.f32.mrb[0].mxu0
      %1843 = vmatprep.mubr.f32.mxu0 0.0
      %1844 = vmatmul.mubr.f32.gmra.mrb[0].mxu0 %v1298
      %v1845 = vpop.f32.mrb[0].mxu0
      %v1846 = vadd.f32 0.0, %v1845
      %v1847 = vpop.f32.mrb[0].mxu0
      %1848 = vmatprep.mubr.f32.mxu0 0.0
      %1849 = vmatmul.mubr.f32.gmra.mrb[0].mxu0 %v1300
      %v1850 = vpop.f32.mrb[0].mxu0
      %v1851 = vadd.f32 0.0, %v1850
      %v1852 = vpop.f32.mrb[0].mxu0
      %1853 = vmatprep.mubr.f32.mxu0 0.0
      %1854 = vmatmul.mubr.f32.gmra.mrb[0].mxu0 %v1302
      %v1855 = vpop.f32.mrb[0].mxu0
      %v1856 = vadd.f32 0.0, %v1855
      %v1857 = vpop.f32.mrb[0].mxu0
      %1858 = vmatprep.mubr.f32.mxu0 0.0
      %1859 = vmatmul.mubr.f32.gmra.mrb[0].mxu0 %v1304
      %v1860 = vpop.f32.mrb[0].mxu0
      %v1861 = vadd.f32 0.0, %v1860
      %v1862 = vpop.f32.mrb[0].mxu0
      %1863 = vmatprep.mubr.f32.mxu0 0.0
      %1864 = vmatmul.mubr.f32.gmra.mrb[0].mxu0 %v1306
      %v1865 = vpop.f32.mrb[0].mxu0
      %v1866 = vadd.f32 0.0, %v1865
      %v1867 = vpop.f32.mrb[0].mxu0
      %1868 = vmatprep.mubr.f32.mxu0 0.0
      %1869 = vmatmul.mubr.f32.gmra.mrb[0].mxu0 %v1308
      %v1870 = vpop.f32.mrb[0].mxu0
      %v1871 = vadd.f32 0.0, %v1870
      %v1872 = vpop.f32.mrb[0].mxu0
      %1873 = vmatprep.mubr.f32.mxu0 0.0
      %1874 = vmatmul.mubr.f32.gmra.mrb[0].mxu0 %v1310
      %v1875 = vpop.f32.mrb[0].mxu0
      %v1876 = vadd.f32 0.0, %v1875
      %v1877 = vpop.f32.mrb[0].mxu0
      %1878 = vmatprep.mubr.f32.mxu0 0.0
      %1879 = vmatmul.mubr.f32.gmra.mrb[0].mxu0 %v1312
      %v1880 = vpop.f32.mrb[0].mxu0
      %v1881 = vadd.f32 0.0, %v1880
      %v1882 = vpop.f32.mrb[0].mxu0
      %1883 = vmatprep.mubr.f32.mxu0 0.0
      %1884 = vmatmul.mubr.f32.gmra.mrb[0].mxu0 %v1314
      %v1885 = vpop.f32.mrb[0].mxu0
      %v1886 = vadd.f32 0.0, %v1885
      %v1887 = vpop.f32.mrb[0].mxu0
      %1888 = vmatprep.mubr.f32.mxu0 0.0
      %1889 = vmatmul.mubr.f32.gmra.mrb[0].mxu0 %v1316
      %v1890 = vpop.f32.mrb[0].mxu0
      %v1891 = vadd.f32 0.0, %v1890
      %v1892 = vpop.f32.mrb[0].mxu0
      %1893 = vmatprep.mubr.f32.mxu0 0.0
      %1894 = vmatmul.mubr.f32.gmra.mrb[0].mxu0 %v1318
      %v1895 = vpop.f32.mrb[0].mxu0
      %v1896 = vadd.f32 0.0, %v1895
      %v1897 = vpop.f32.mrb[0].mxu0
      %1898 = vmatprep.mubr.f32.mxu0 0.0
      %1899 = vmatmul.mubr.f32.gmra.mrb[0].mxu0 %v1320
      %v1900 = vpop.f32.mrb[0].mxu0
      %v1901 = vadd.f32 0.0, %v1900
      %v1902 = vpop.f32.mrb[0].mxu0
      %1903 = vmatprep.mubr.f32.mxu0 0.0
      %1904 = vmatmul.mubr.f32.gmra.mrb[0].mxu0 %v1322
      %v1905 = vpop.f32.mrb[0].mxu0
      %v1906 = vadd.f32 0.0, %v1905
      %v1907 = vpop.f32.mrb[0].mxu0
      %1908 = vmatprep.mubr.f32.mxu0 0.0
      %1909 = vmatmul.mubr.f32.gmra.mrb[0].mxu0 %v1324
      %v1910 = vpop.f32.mrb[0].mxu0
      %v1911 = vadd.f32 0.0, %v1910
      %v1912 = vpop.f32.mrb[0].mxu0
      %1913 = vmatprep.mubr.f32.mxu0 0.0
      %1914 = vmatmul.mubr.f32.gmra.mrb[0].mxu0 %v1326
      %v1915 = vpop.f32.mrb[0].mxu0
      %v1916 = vadd.f32 0.0, %v1915
      %v1917 = vpop.f32.mrb[0].mxu0
      %1918 = vmatprep.mubr.f32.mxu0 0.0
      %1919 = vmatmul.mubr.f32.gmra.mrb[0].mxu0 %v1328
      %v1920 = vpop.f32.mrb[0].mxu0
      %v1921 = vadd.f32 0.0, %v1920
      %v1922 = vpop.f32.mrb[0].mxu0
      %1923 = vmatprep.mubr.f32.mxu0 0.0
      %1924 = vmatmul.mubr.f32.gmra.mrb[0].mxu0 %v1330
      %v1925 = vpop.f32.mrb[0].mxu0
      %v1926 = vadd.f32 0.0, %v1925
      %v1927 = vpop.f32.mrb[0].mxu0
      %1928 = vmatprep.mubr.f32.mxu0 0.0
      %1929 = vmatmul.mubr.f32.gmra.mrb[0].mxu0 %v1332
      %v1930 = vpop.f32.mrb[0].mxu0
      %v1931 = vadd.f32 0.0, %v1930
      %v1932 = vpop.f32.mrb[0].mxu0
      %1933 = vmatprep.mubr.f32.mxu0 0.0
      %1934 = vmatmul.mubr.f32.gmra.mrb[0].mxu0 %v1334
      %v1935 = vpop.f32.mrb[0].mxu0
      %v1936 = vadd.f32 0.0, %v1935
      %v1937 = vpop.f32.mrb[0].mxu0
      %1938 = vmatprep.mubr.f32.mxu0 0.0
      %1939 = vmatmul.mubr.f32.gmra.mrb[0].mxu0 %v1336
      %v1940 = vpop.f32.mrb[0].mxu0
      %v1941 = vadd.f32 0.0, %v1940
      %v1942 = vpop.f32.mrb[0].mxu0
      %1943 = vmatprep.mubr.f32.mxu0 0.0
      %1944 = vmatmul.mubr.f32.gmra.mrb[0].mxu0 %v1702
      %v1945 = vpop.f32.mrb[0].mxu0
      %v1946 = vadd.f32 0.0, %v1945
      %v1947 = vpop.f32.mrb[0].mxu0
      %1948 = vmatprep.mubr.f32.mxu0 0.0
      %1949 = vmatmul.mubr.f32.gmra.mrb[0].mxu0 %v1704
      %v1950 = vpop.f32.mrb[0].mxu0
      %v1951 = vadd.f32 0.0, %v1950
      %v1952 = vpop.f32.mrb[0].mxu0
      %1953 = vdwg.mxu0
      %v1954 = vadd.f32 %v1658, %v1776
      %v1955 = vadd.f32 %v1659, %v1781
      %v1956 = vadd.f32 %v1660, %v1786
      %v1957 = vadd.f32 %v1661, %v1791
      %v1958 = vadd.f32 %v1662, %v1796
      %v1959 = vadd.f32 %v1663, %v1801
      %v1960 = vadd.f32 %v1664, %v1806
      %v1961 = vadd.f32 %v1665, %v1811
      %v1962 = vadd.f32 %v1666, %v1816
      %v1963 = vadd.f32 %v1667, %v1821
      %v1964 = vadd.f32 %v1668, %v1826
      %v1965 = vadd.f32 %v1669, %v1831
      %v1966 = vadd.f32 %v1670, %v1836
      %v1967 = vadd.f32 %v1671, %v1841
      %v1968 = vadd.f32 %v1672, %v1846
      %v1969 = vadd.f32 %v1673, %v1851
      %v1970 = vadd.f32 %v1674, %v1856
      %v1971 = vadd.f32 %v1675, %v1861
      %v1972 = vadd.f32 %v1676, %v1866
      %v1973 = vadd.f32 %v1677, %v1871
      %v1974 = vadd.f32 %v1678, %v1876
      %v1975 = vadd.f32 %v1679, %v1881
      %v1976 = vadd.f32 %v1680, %v1886
      %v1977 = vadd.f32 %v1681, %v1891
      %v1978 = vadd.f32 %v1682, %v1896
      %v1979 = vadd.f32 %v1683, %v1901
      %v1980 = vadd.f32 %v1684, %v1906
      %v1981 = vadd.f32 %v1685, %v1911
      %v1982 = vadd.f32 %v1686, %v1916
      %v1983 = vadd.f32 %v1687, %v1921
      %v1984 = vadd.f32 %v1688, %v1926
      %v1985 = vadd.f32 %v1689, %v1931
      %v1986 = vadd.f32 %v1690, %v1936
      %v1987 = vadd.f32 %v1691, %v1941
      %v1988 = vadd.f32 %v1692, %v1946
      %v1989 = vadd.f32 %v1693, %v1951
      %1990 = vst.msk [vmem:[#allocation2] sm:$0xff] %vm612, %v1954
      %1991 = vst.msk [vmem:[#allocation2 + $0x8] sm:$0xff] %vm612, %v1955
      %1992 = vst.msk [vmem:[#allocation2 + $0x10] sm:$0xff] %vm612, %v1956
      %1993 = vst.msk [vmem:[#allocation2 + $0x18] sm:$0xff] %vm612, %v1957
      %1994 = vst.msk [vmem:[#allocation2 + $0x20] sm:$0xff] %vm612, %v1958
      %1995 = vst.msk [vmem:[#allocation2 + $0x28] sm:$0xff] %vm612, %v1959
      %1996 = vst.msk [vmem:[#allocation2 + $0x30] sm:$0xff] %vm612, %v1960
      %1997 = vst.msk [vmem:[#allocation2 + $0x38] sm:$0xff] %vm612, %v1961
      %1998 = vst.msk [vmem:[#allocation2 + $0x40] sm:$0xff] %vm612, %v1962
      %1999 = vst.msk [vmem:[#allocation2 + $0x48] sm:$0xff] %vm612, %v1963
      %2000 = vst.msk [vmem:[#allocation2 + $0x50] sm:$0xff] %vm612, %v1964
      %2001 = vst.msk [vmem:[#allocation2 + $0x58] sm:$0xff] %vm612, %v1965
      %2002 = vst.msk [vmem:[#allocation2 + $0x60] sm:$0xff] %vm612, %v1966
      %2003 = vst.msk [vmem:[#allocation2 + $0x68] sm:$0xff] %vm612, %v1967
      %2004 = vst.msk [vmem:[#allocation2 + $0x70] sm:$0xff] %vm612, %v1968
      %2005 = vst.msk [vmem:[#allocation2 + $0x78] sm:$0xff] %vm612, %v1969
      %2006 = vst.msk [vmem:[#allocation2 + $0x80] sm:$0xff] %vm612, %v1970
      %2007 = vst.msk [vmem:[#allocation2 + $0x88] sm:$0xff] %vm612, %v1971
      %2008 = vst.msk [vmem:[#allocation2 + $0x90] sm:$0xff] %vm612, %v1972
      %2009 = vst.msk [vmem:[#allocation2 + $0x98] sm:$0xff] %vm612, %v1973
      %2010 = vst.msk [vmem:[#allocation2 + $0xa0] sm:$0xff] %vm612, %v1974
      %2011 = vst.msk [vmem:[#allocation2 + $0xa8] sm:$0xff] %vm612, %v1975
      %2012 = vst.msk [vmem:[#allocation2 + $0xb0] sm:$0xff] %vm612, %v1976
      %2013 = vst.msk [vmem:[#allocation2 + $0xb8] sm:$0xff] %vm612, %v1977
      %2014 = vst.msk [vmem:[#allocation2 + $0xc0] sm:$0xff] %vm612, %v1978
      %2015 = vst.msk [vmem:[#allocation2 + $0xc8] sm:$0xff] %vm612, %v1979
      %2016 = vst.msk [vmem:[#allocation2 + $0xd0] sm:$0xff] %vm612, %v1980
      %2017 = vst.msk [vmem:[#allocation2 + $0xd8] sm:$0xff] %vm612, %v1981
      %2018 = vst.msk [vmem:[#allocation2 + $0xe0] sm:$0xff] %vm612, %v1982
      %2019 = vst.msk [vmem:[#allocation2 + $0xe8] sm:$0xff] %vm612, %v1983
      %2020 = vst.msk [vmem:[#allocation2 + $0xf0] sm:$0xff] %vm612, %v1984
      %2021 = vst.msk [vmem:[#allocation2 + $0xf8] sm:$0xff] %vm612, %v1985
      %2022 = vst.msk [vmem:[#allocation2 + $0x100] sm:$0xff] %vm612, %v1986
      %2023 = vst.msk [vmem:[#allocation2 + $0x108] sm:$0xff] %vm612, %v1987
      %2024 = vst.msk [vmem:[#allocation2 + $0x110] sm:$0xff] %vm612, %v1988
      %2025 = vst.msk [vmem:[#allocation2 + $0x118] sm:$0xff] %vm612, %v1989
      %v2026 = vld [vmem:[#allocation2] sm:$0xff]
      %v2027 = vld [vmem:[#allocation2 + $0x8] sm:$0xff]
      %v2028 = vld [vmem:[#allocation2 + $0x10] sm:$0xff]
      %v2029 = vld [vmem:[#allocation2 + $0x18] sm:$0xff]
      %v2030 = vld [vmem:[#allocation2 + $0x20] sm:$0xff]
      %v2031 = vld [vmem:[#allocation2 + $0x28] sm:$0xff]
      %v2032 = vld [vmem:[#allocation2 + $0x30] sm:$0xff]
      %v2033 = vld [vmem:[#allocation2 + $0x38] sm:$0xff]
      %v2034 = vld [vmem:[#allocation2 + $0x40] sm:$0xff]
      %v2035 = vld [vmem:[#allocation2 + $0x48] sm:$0xff]
      %v2036 = vld [vmem:[#allocation2 + $0x50] sm:$0xff]
      %v2037 = vld [vmem:[#allocation2 + $0x58] sm:$0xff]
      %v2038 = vld [vmem:[#allocation2 + $0x60] sm:$0xff]
      %v2039 = vld [vmem:[#allocation2 + $0x68] sm:$0xff]
      %v2040 = vld [vmem:[#allocation2 + $0x70] sm:$0xff]
      %v2041 = vld [vmem:[#allocation2 + $0x78] sm:$0xff]
      %v2042 = vld [vmem:[#allocation2 + $0x80] sm:$0xff]
      %v2043 = vld [vmem:[#allocation2 + $0x88] sm:$0xff]
      %v2044 = vld [vmem:[#allocation2 + $0x90] sm:$0xff]
      %v2045 = vld [vmem:[#allocation2 + $0x98] sm:$0xff]
      %v2046 = vld [vmem:[#allocation2 + $0xa0] sm:$0xff]
      %v2047 = vld [vmem:[#allocation2 + $0xa8] sm:$0xff]
      %v2048 = vld [vmem:[#allocation2 + $0xb0] sm:$0xff]
      %v2049 = vld [vmem:[#allocation2 + $0xb8] sm:$0xff]
      %v2050 = vld [vmem:[#allocation2 + $0xc0] sm:$0xff]
      %v2051 = vld [vmem:[#allocation2 + $0xc8] sm:$0xff]
      %v2052 = vld [vmem:[#allocation2 + $0xd0] sm:$0xff]
      %v2053 = vld [vmem:[#allocation2 + $0xd8] sm:$0xff]
      %v2054 = vld [vmem:[#allocation2 + $0xe0] sm:$0xff]
      %v2055 = vld [vmem:[#allocation2 + $0xe8] sm:$0xff]
      %v2056 = vld [vmem:[#allocation2 + $0xf0] sm:$0xff]
      %v2057 = vld [vmem:[#allocation2 + $0xf8] sm:$0xff]
      %v2058 = vld [vmem:[#allocation2 + $0x100] sm:$0xff]
      %v2059 = vld [vmem:[#allocation2 + $0x108] sm:$0xff]
      %v2060 = vld [vmem:[#allocation2 + $0x110] sm:$0xff]
      %v2061 = vld [vmem:[#allocation2 + $0x118] sm:$0xff]
      %s2062 = scalar_lea.vmem %s1, 16
      %v2063 = vld [vmem:[%s2062] sm:$0x7]
      %vm2064 = vcmask 1044480
      %v2065 = vrot.slane %v214, 3
      %v2066 = vrot.slane %v215, 3
      %v2067 = vsel %vm2064, %v2065, %v2066
      %v2068 = vrot.slane %v216, 3
      %v2069 = vsel %vm2064, %v2066, %v2068
      %v2070 = vrot.slane %v217, 3
      %v2071 = vsel %vm2064, %v2068, %v2070
      %v2072 = vrot.slane %v218, 3
      %v2073 = vsel %vm2064, %v2070, %v2072
      %v2074 = vrot.slane %v219, 3
      %v2075 = vsel %vm2064, %v2072, %v2074
      %v2076 = vrot.slane %v220, 3
      %v2077 = vsel %vm2064, %v2074, %v2076
      %v2078 = vrot.slane %v221, 3
      %v2079 = vsel %vm2064, %v2076, %v2078
      %v2080 = vrot.slane %v222, 3
      %v2081 = vsel %vm2064, %v2078, %v2080
      %v2082 = vrot.slane %v223, 3
      %v2083 = vsel %vm2064, %v2080, %v2082
      %v2084 = vrot.slane %v224, 3
      %v2085 = vsel %vm2064, %v2082, %v2084
      %v2086 = vrot.slane %v225, 3
      %v2087 = vsel %vm2064, %v2084, %v2086
      %v2088 = vrot.slane %v226, 3
      %v2089 = vsel %vm2064, %v2086, %v2088
      %v2090 = vrot.slane %v227, 3
      %v2091 = vsel %vm2064, %v2088, %v2090
      %v2092 = vrot.slane %v228, 3
      %v2093 = vsel %vm2064, %v2090, %v2092
      %v2094 = vrot.slane %v229, 3
      %v2095 = vsel %vm2064, %v2092, %v2094
      %v2096 = vrot.slane %v230, 3
      %v2097 = vsel %vm2064, %v2094, %v2096
      %v2098 = vrot.slane %v231, 3
      %v2099 = vsel %vm2064, %v2096, %v2098
      %v2100 = vrot.slane %v232, 3
      %v2101 = vsel %vm2064, %v2098, %v2100
      %v2102 = vrot.slane %v233, 3
      %v2103 = vsel %vm2064, %v2100, %v2102
      %v2104 = vrot.slane %v234, 3
      %v2105 = vsel %vm2064, %v2102, %v2104
      %v2106 = vrot.slane %v235, 3
      %v2107 = vsel %vm2064, %v2104, %v2106
      %v2108 = vrot.slane %v236, 3
      %v2109 = vsel %vm2064, %v2106, %v2108
      %v2110 = vrot.slane %v237, 3
      %v2111 = vsel %vm2064, %v2108, %v2110
      %v2112 = vrot.slane %v238, 3
      %v2113 = vsel %vm2064, %v2110, %v2112
      %v2114 = vrot.slane %v239, 3
      %v2115 = vsel %vm2064, %v2112, %v2114
      %v2116 = vrot.slane %v240, 3
      %v2117 = vsel %vm2064, %v2114, %v2116
      %v2118 = vrot.slane %v241, 3
      %v2119 = vsel %vm2064, %v2116, %v2118
      %v2120 = vrot.slane %v242, 3
      %v2121 = vsel %vm2064, %v2118, %v2120
      %v2122 = vrot.slane %v243, 3
      %v2123 = vsel %vm2064, %v2120, %v2122
      %v2124 = vrot.slane %v244, 3
      %v2125 = vsel %vm2064, %v2122, %v2124
      %v2126 = vrot.slane %v245, 3
      %v2127 = vsel %vm2064, %v2124, %v2126
      %v2128 = vrot.slane %v246, 3
      %v2129 = vsel %vm2064, %v2126, %v2128
      %v2130 = vrot.slane %v247, 3
      %v2131 = vsel %vm2064, %v2128, %v2130
      %v2132 = vrot.slane %v248, 3
      %v2133 = vsel %vm2064, %v2130, %v2132
      %v2134 = vrot.slane %v249, 3
      %v2135 = vsel %vm2064, %v2132, %v2134
      %v2136 = vrot.slane %v250, 3
      %v2137 = vsel %vm2064, %v2134, %v2136
      %v2138 = vsel %vm254, %v2067, 0
      %v2140 = vsel %vm254, %v2069, 0
      %v2142 = vsel %vm254, %v2071, 0
      %v2144 = vsel %vm254, %v2073, 0
      %v2146 = vsel %vm254, %v2075, 0
      %v2148 = vsel %vm254, %v2077, 0
      %v2150 = vsel %vm254, %v2079, 0
      %v2152 = vsel %vm254, %v2081, 0
      %v2154 = vsel %vm254, %v2083, 0
      %v2156 = vsel %vm254, %v2085, 0
      %v2158 = vsel %vm254, %v2087, 0
      %v2160 = vsel %vm254, %v2089, 0
      %v2162 = vsel %vm254, %v2091, 0
      %v2164 = vsel %vm254, %v2093, 0
      %v2166 = vsel %vm254, %v2095, 0
      %v2168 = vsel %vm254, %v2097, 0
      %v2170 = vsel %vm254, %v2099, 0
      %v2172 = vsel %vm254, %v2101, 0
      %v2174 = vsel %vm254, %v2103, 0
      %v2176 = vsel %vm254, %v2105, 0
      %v2178 = vsel %vm254, %v2107, 0
      %v2180 = vsel %vm254, %v2109, 0
      %v2182 = vsel %vm254, %v2111, 0
      %v2184 = vsel %vm254, %v2113, 0
      %v2186 = vsel %vm254, %v2115, 0
      %v2188 = vsel %vm254, %v2117, 0
      %v2190 = vsel %vm254, %v2119, 0
      %v2192 = vsel %vm254, %v2121, 0
      %v2194 = vsel %vm254, %v2123, 0
      %v2196 = vsel %vm254, %v2125, 0
      %v2198 = vsel %vm254, %v2127, 0
      %v2200 = vsel %vm254, %v2129, 0
      %v2202 = vsel %vm254, %v2131, 0
      %v2204 = vsel %vm254, %v2133, 0
      %v2206 = vsel %vm254, %v2135, 0
      %v2208 = vsel %vm254, %v2137, 0
      %v2211 = vsel %vm363, %v2063, 0
      %2213 = vmatprep.subr.mxu0 0.0
      %2214 = vmatpush1.msra.mxu0 %v2211
      %2215 = vmatprep.subr.mxu0 0.0
      %2216 = vmatpush1.msra.mxu0 0.0
      %2217 = vmatprep.subr.mxu0 0.0
      %2218 = vmatpush1.msra.mxu0 0.0
      %2219 = vmatprep.subr.mxu0 0.0
      %2220 = vmatpush1.msra.mxu0 0.0
      %2221 = vmatprep.subr.mxu0 0.0
      %2222 = vmatpush1.msra.mxu0 0.0
      %2223 = vmatprep.subr.mxu0 0.0
      %2224 = vmatpush1.msra.mxu0 0.0
      %2225 = vmatprep.subr.mxu0 0.0
      %2226 = vmatpush1.msra.mxu0 0.0
      %2227 = vmatprep.subr.mxu0 0.0
      %2228 = vmatpush1.msra.mxu0 0.0
      %2229 = vmatprep.subr.mxu0 0.0
      %2230 = vmatpush1.msra.mxu0 0.0
      %2231 = vmatprep.subr.mxu0 0.0
      %2232 = vmatpush1.msra.mxu0 0.0
      %2233 = vmatprep.subr.mxu0 0.0
      %2234 = vmatpush1.msra.mxu0 0.0
      %2235 = vmatprep.subr.mxu0 0.0
      %2236 = vmatpush1.msra.mxu0 0.0
      %2237 = vmatprep.subr.mxu0 0.0
      %2238 = vmatpush1.msra.mxu0 0.0
      %2239 = vmatprep.subr.mxu0 0.0
      %2240 = vmatpush1.msra.mxu0 0.0
      %2241 = vmatprep.subr.mxu0 0.0
      %2242 = vmatpush1.msra.mxu0 0.0
      %2243 = vmatprep.subr.mxu0 0.0
      %2244 = vmatpush1.msra.mxu0 0.0
      %2245 = vmatprep.subr.mxu0 0.0
      %2246 = vmatpush1.msra.mxu0 0.0
      %2247 = vmatprep.subr.mxu0 0.0
      %2248 = vmatpush1.msra.mxu0 0.0
      %2249 = vmatprep.subr.mxu0 0.0
      %2250 = vmatpush1.msra.mxu0 0.0
      %2251 = vmatprep.subr.mxu0 0.0
      %2252 = vmatpush1.msra.mxu0 0.0
      %2253 = vmatprep.subr.mxu0 0.0
      %2254 = vmatpush1.msra.mxu0 0.0
      %2255 = vmatprep.subr.mxu0 0.0
      %2256 = vmatpush1.msra.mxu0 0.0
      %2257 = vmatprep.subr.mxu0 0.0
      %2258 = vmatpush1.msra.mxu0 0.0
      %2259 = vmatprep.subr.mxu0 0.0
      %2260 = vmatpush1.msra.mxu0 0.0
      %2261 = vmatprep.subr.mxu0 0.0
      %2262 = vmatpush1.msra.mxu0 0.0
      %2263 = vmatprep.subr.mxu0 0.0
      %2264 = vmatpush1.msra.mxu0 0.0
      %2265 = vmatprep.subr.mxu0 0.0
      %2266 = vmatpush1.msra.mxu0 0.0
      %2267 = vmatprep.subr.mxu0 0.0
      %2268 = vmatpush1.msra.mxu0 0.0
      %2269 = vmatprep.subr.mxu0 0.0
      %2270 = vmatpush1.msra.mxu0 0.0
      %2271 = vmatprep.subr.mxu0 0.0
      %2272 = vmatpush1.msra.mxu0 0.0
      %2273 = vmatprep.subr.mxu0 0.0
      %2274 = vmatpush1.msra.mxu0 0.0
      %2275 = vmatprep.subr.mxu0 0.0
      %2276 = vmatpush1.msra.mxu0 0.0
      %2277 = vmatprep.mubr.f32.mxu0 0.0
      %2278 = vmatmul.mubr.f32.gmra.mrb[0].mxu0 %v2138
      %v2279 = vpop.f32.mrb[0].mxu0
      %v2280 = vadd.f32 0.0, %v2279
      %v2281 = vpop.f32.mrb[0].mxu0
      %2282 = vmatprep.mubr.f32.mxu0 0.0
      %2283 = vmatmul.mubr.f32.gmra.mrb[0].mxu0 %v2140
      %v2284 = vpop.f32.mrb[0].mxu0
      %v2285 = vadd.f32 0.0, %v2284
      %v2286 = vpop.f32.mrb[0].mxu0
      %2287 = vmatprep.mubr.f32.mxu0 0.0
      %2288 = vmatmul.mubr.f32.gmra.mrb[0].mxu0 %v2142
      %v2289 = vpop.f32.mrb[0].mxu0
      %v2290 = vadd.f32 0.0, %v2289
      %v2291 = vpop.f32.mrb[0].mxu0
      %2292 = vmatprep.mubr.f32.mxu0 0.0
      %2293 = vmatmul.mubr.f32.gmra.mrb[0].mxu0 %v2144
      %v2294 = vpop.f32.mrb[0].mxu0
      %v2295 = vadd.f32 0.0, %v2294
      %v2296 = vpop.f32.mrb[0].mxu0
      %2297 = vmatprep.mubr.f32.mxu0 0.0
      %2298 = vmatmul.mubr.f32.gmra.mrb[0].mxu0 %v2146
      %v2299 = vpop.f32.mrb[0].mxu0
      %v2300 = vadd.f32 0.0, %v2299
      %v2301 = vpop.f32.mrb[0].mxu0
      %2302 = vmatprep.mubr.f32.mxu0 0.0
      %2303 = vmatmul.mubr.f32.gmra.mrb[0].mxu0 %v2148
      %v2304 = vpop.f32.mrb[0].mxu0
      %v2305 = vadd.f32 0.0, %v2304
      %v2306 = vpop.f32.mrb[0].mxu0
      %2307 = vmatprep.mubr.f32.mxu0 0.0
      %2308 = vmatmul.mubr.f32.gmra.mrb[0].mxu0 %v2150
      %v2309 = vpop.f32.mrb[0].mxu0
      %v2310 = vadd.f32 0.0, %v2309
      %v2311 = vpop.f32.mrb[0].mxu0
      %2312 = vmatprep.mubr.f32.mxu0 0.0
      %2313 = vmatmul.mubr.f32.gmra.mrb[0].mxu0 %v2152
      %v2314 = vpop.f32.mrb[0].mxu0
      %v2315 = vadd.f32 0.0, %v2314
      %v2316 = vpop.f32.mrb[0].mxu0
      %2317 = vmatprep.mubr.f32.mxu0 0.0
      %2318 = vmatmul.mubr.f32.gmra.mrb[0].mxu0 %v2154
      %v2319 = vpop.f32.mrb[0].mxu0
      %v2320 = vadd.f32 0.0, %v2319
      %v2321 = vpop.f32.mrb[0].mxu0
      %2322 = vmatprep.mubr.f32.mxu0 0.0
      %2323 = vmatmul.mubr.f32.gmra.mrb[0].mxu0 %v2156
      %v2324 = vpop.f32.mrb[0].mxu0
      %v2325 = vadd.f32 0.0, %v2324
      %v2326 = vpop.f32.mrb[0].mxu0
      %2327 = vmatprep.mubr.f32.mxu0 0.0
      %2328 = vmatmul.mubr.f32.gmra.mrb[0].mxu0 %v2158
      %v2329 = vpop.f32.mrb[0].mxu0
      %v2330 = vadd.f32 0.0, %v2329
      %v2331 = vpop.f32.mrb[0].mxu0
      %2332 = vmatprep.mubr.f32.mxu0 0.0
      %2333 = vmatmul.mubr.f32.gmra.mrb[0].mxu0 %v2160
      %v2334 = vpop.f32.mrb[0].mxu0
      %v2335 = vadd.f32 0.0, %v2334
      %v2336 = vpop.f32.mrb[0].mxu0
      %2337 = vmatprep.mubr.f32.mxu0 0.0
      %2338 = vmatmul.mubr.f32.gmra.mrb[0].mxu0 %v2162
      %v2339 = vpop.f32.mrb[0].mxu0
      %v2340 = vadd.f32 0.0, %v2339
      %v2341 = vpop.f32.mrb[0].mxu0
      %2342 = vmatprep.mubr.f32.mxu0 0.0
      %2343 = vmatmul.mubr.f32.gmra.mrb[0].mxu0 %v2164
      %v2344 = vpop.f32.mrb[0].mxu0
      %v2345 = vadd.f32 0.0, %v2344
      %v2346 = vpop.f32.mrb[0].mxu0
      %2347 = vmatprep.mubr.f32.mxu0 0.0
      %2348 = vmatmul.mubr.f32.gmra.mrb[0].mxu0 %v2166
      %v2349 = vpop.f32.mrb[0].mxu0
      %v2350 = vadd.f32 0.0, %v2349
      %v2351 = vpop.f32.mrb[0].mxu0
      %2352 = vmatprep.mubr.f32.mxu0 0.0
      %2353 = vmatmul.mubr.f32.gmra.mrb[0].mxu0 %v2168
      %v2354 = vpop.f32.mrb[0].mxu0
      %v2355 = vadd.f32 0.0, %v2354
      %v2356 = vpop.f32.mrb[0].mxu0
      %2357 = vmatprep.mubr.f32.mxu0 0.0
      %2358 = vmatmul.mubr.f32.gmra.mrb[0].mxu0 %v2170
      %v2359 = vpop.f32.mrb[0].mxu0
      %v2360 = vadd.f32 0.0, %v2359
      %v2361 = vpop.f32.mrb[0].mxu0
      %2362 = vmatprep.mubr.f32.mxu0 0.0
      %2363 = vmatmul.mubr.f32.gmra.mrb[0].mxu0 %v2172
      %v2364 = vpop.f32.mrb[0].mxu0
      %v2365 = vadd.f32 0.0, %v2364
      %v2366 = vpop.f32.mrb[0].mxu0
      %2367 = vmatprep.mubr.f32.mxu0 0.0
      %2368 = vmatmul.mubr.f32.gmra.mrb[0].mxu0 %v2174
      %v2369 = vpop.f32.mrb[0].mxu0
      %v2370 = vadd.f32 0.0, %v2369
      %v2371 = vpop.f32.mrb[0].mxu0
      %2372 = vmatprep.mubr.f32.mxu0 0.0
      %2373 = vmatmul.mubr.f32.gmra.mrb[0].mxu0 %v2176
      %v2374 = vpop.f32.mrb[0].mxu0
      %v2375 = vadd.f32 0.0, %v2374
      %v2376 = vpop.f32.mrb[0].mxu0
      %2377 = vmatprep.mubr.f32.mxu0 0.0
      %2378 = vmatmul.mubr.f32.gmra.mrb[0].mxu0 %v2178
      %v2379 = vpop.f32.mrb[0].mxu0
      %v2380 = vadd.f32 0.0, %v2379
      %v2381 = vpop.f32.mrb[0].mxu0
      %2382 = vmatprep.mubr.f32.mxu0 0.0
      %2383 = vmatmul.mubr.f32.gmra.mrb[0].mxu0 %v2180
      %v2384 = vpop.f32.mrb[0].mxu0
      %v2385 = vadd.f32 0.0, %v2384
      %v2386 = vpop.f32.mrb[0].mxu0
      %2387 = vmatprep.mubr.f32.mxu0 0.0
      %2388 = vmatmul.mubr.f32.gmra.mrb[0].mxu0 %v2182
      %v2389 = vpop.f32.mrb[0].mxu0
      %v2390 = vadd.f32 0.0, %v2389
      %v2391 = vpop.f32.mrb[0].mxu0
      %2392 = vmatprep.mubr.f32.mxu0 0.0
      %2393 = vmatmul.mubr.f32.gmra.mrb[0].mxu0 %v2184
      %v2394 = vpop.f32.mrb[0].mxu0
      %v2395 = vadd.f32 0.0, %v2394
      %v2396 = vpop.f32.mrb[0].mxu0
      %2397 = vmatprep.mubr.f32.mxu0 0.0
      %2398 = vmatmul.mubr.f32.gmra.mrb[0].mxu0 %v2186
      %v2399 = vpop.f32.mrb[0].mxu0
      %v2400 = vadd.f32 0.0, %v2399
      %v2401 = vpop.f32.mrb[0].mxu0
      %2402 = vmatprep.mubr.f32.mxu0 0.0
      %2403 = vmatmul.mubr.f32.gmra.mrb[0].mxu0 %v2188
      %v2404 = vpop.f32.mrb[0].mxu0
      %v2405 = vadd.f32 0.0, %v2404
      %v2406 = vpop.f32.mrb[0].mxu0
      %2407 = vmatprep.mubr.f32.mxu0 0.0
      %2408 = vmatmul.mubr.f32.gmra.mrb[0].mxu0 %v2190
      %v2409 = vpop.f32.mrb[0].mxu0
      %v2410 = vadd.f32 0.0, %v2409
      %v2411 = vpop.f32.mrb[0].mxu0
      %2412 = vmatprep.mubr.f32.mxu0 0.0
      %2413 = vmatmul.mubr.f32.gmra.mrb[0].mxu0 %v2192
      %v2414 = vpop.f32.mrb[0].mxu0
      %v2415 = vadd.f32 0.0, %v2414
      %v2416 = vpop.f32.mrb[0].mxu0
      %2417 = vmatprep.mubr.f32.mxu0 0.0
      %2418 = vmatmul.mubr.f32.gmra.mrb[0].mxu0 %v2194
      %v2419 = vpop.f32.mrb[0].mxu0
      %v2420 = vadd.f32 0.0, %v2419
      %v2421 = vpop.f32.mrb[0].mxu0
      %2422 = vmatprep.mubr.f32.mxu0 0.0
      %2423 = vmatmul.mubr.f32.gmra.mrb[0].mxu0 %v2196
      %v2424 = vpop.f32.mrb[0].mxu0
      %v2425 = vadd.f32 0.0, %v2424
      %v2426 = vpop.f32.mrb[0].mxu0
      %2427 = vmatprep.mubr.f32.mxu0 0.0
      %2428 = vmatmul.mubr.f32.gmra.mrb[0].mxu0 %v2198
      %v2429 = vpop.f32.mrb[0].mxu0
      %v2430 = vadd.f32 0.0, %v2429
      %v2431 = vpop.f32.mrb[0].mxu0
      %2432 = vmatprep.mubr.f32.mxu0 0.0
      %2433 = vmatmul.mubr.f32.gmra.mrb[0].mxu0 %v2200
      %v2434 = vpop.f32.mrb[0].mxu0
      %v2435 = vadd.f32 0.0, %v2434
      %v2436 = vpop.f32.mrb[0].mxu0
      %2437 = vmatprep.mubr.f32.mxu0 0.0
      %2438 = vmatmul.mubr.f32.gmra.mrb[0].mxu0 %v2202
      %v2439 = vpop.f32.mrb[0].mxu0
      %v2440 = vadd.f32 0.0, %v2439
      %v2441 = vpop.f32.mrb[0].mxu0
      %2442 = vmatprep.mubr.f32.mxu0 0.0
      %2443 = vmatmul.mubr.f32.gmra.mrb[0].mxu0 %v2204
      %v2444 = vpop.f32.mrb[0].mxu0
      %v2445 = vadd.f32 0.0, %v2444
      %v2446 = vpop.f32.mrb[0].mxu0
      %2447 = vmatprep.mubr.f32.mxu0 0.0
      %2448 = vmatmul.mubr.f32.gmra.mrb[0].mxu0 %v2206
      %v2449 = vpop.f32.mrb[0].mxu0
      %v2450 = vadd.f32 0.0, %v2449
      %v2451 = vpop.f32.mrb[0].mxu0
      %2452 = vmatprep.mubr.f32.mxu0 0.0
      %2453 = vmatmul.mubr.f32.gmra.mrb[0].mxu0 %v2208
      %v2454 = vpop.f32.mrb[0].mxu0
      %v2455 = vadd.f32 0.0, %v2454
      %v2456 = vpop.f32.mrb[0].mxu0
      %2457 = vdwg.mxu0
      %v2458 = vadd.f32 %v2026, %v2280
      %v2459 = vadd.f32 %v2027, %v2285
      %v2460 = vadd.f32 %v2028, %v2290
      %v2461 = vadd.f32 %v2029, %v2295
      %v2462 = vadd.f32 %v2030, %v2300
      %v2463 = vadd.f32 %v2031, %v2305
      %v2464 = vadd.f32 %v2032, %v2310
      %v2465 = vadd.f32 %v2033, %v2315
      %v2466 = vadd.f32 %v2034, %v2320
      %v2467 = vadd.f32 %v2035, %v2325
      %v2468 = vadd.f32 %v2036, %v2330
      %v2469 = vadd.f32 %v2037, %v2335
      %v2470 = vadd.f32 %v2038, %v2340
      %v2471 = vadd.f32 %v2039, %v2345
      %v2472 = vadd.f32 %v2040, %v2350
      %v2473 = vadd.f32 %v2041, %v2355
      %v2474 = vadd.f32 %v2042, %v2360
      %v2475 = vadd.f32 %v2043, %v2365
      %v2476 = vadd.f32 %v2044, %v2370
      %v2477 = vadd.f32 %v2045, %v2375
      %v2478 = vadd.f32 %v2046, %v2380
      %v2479 = vadd.f32 %v2047, %v2385
      %v2480 = vadd.f32 %v2048, %v2390
      %v2481 = vadd.f32 %v2049, %v2395
      %v2482 = vadd.f32 %v2050, %v2400
      %v2483 = vadd.f32 %v2051, %v2405
      %v2484 = vadd.f32 %v2052, %v2410
      %v2485 = vadd.f32 %v2053, %v2415
      %v2486 = vadd.f32 %v2054, %v2420
      %v2487 = vadd.f32 %v2055, %v2425
      %v2488 = vadd.f32 %v2056, %v2430
      %v2489 = vadd.f32 %v2057, %v2435
      %v2490 = vadd.f32 %v2058, %v2440
      %v2491 = vadd.f32 %v2059, %v2445
      %v2492 = vadd.f32 %v2060, %v2450
      %v2493 = vadd.f32 %v2061, %v2455
      %2494 = vst.msk [vmem:[#allocation2] sm:$0xff] %vm612, %v2458
      %2495 = vst.msk [vmem:[#allocation2 + $0x8] sm:$0xff] %vm612, %v2459
      %2496 = vst.msk [vmem:[#allocation2 + $0x10] sm:$0xff] %vm612, %v2460
      %2497 = vst.msk [vmem:[#allocation2 + $0x18] sm:$0xff] %vm612, %v2461
      %2498 = vst.msk [vmem:[#allocation2 + $0x20] sm:$0xff] %vm612, %v2462
      %2499 = vst.msk [vmem:[#allocation2 + $0x28] sm:$0xff] %vm612, %v2463
      %2500 = vst.msk [vmem:[#allocation2 + $0x30] sm:$0xff] %vm612, %v2464
      %2501 = vst.msk [vmem:[#allocation2 + $0x38] sm:$0xff] %vm612, %v2465
      %2502 = vst.msk [vmem:[#allocation2 + $0x40] sm:$0xff] %vm612, %v2466
      %2503 = vst.msk [vmem:[#allocation2 + $0x48] sm:$0xff] %vm612, %v2467
      %2504 = vst.msk [vmem:[#allocation2 + $0x50] sm:$0xff] %vm612, %v2468
      %2505 = vst.msk [vmem:[#allocation2 + $0x58] sm:$0xff] %vm612, %v2469
      %2506 = vst.msk [vmem:[#allocation2 + $0x60] sm:$0xff] %vm612, %v2470
      %2507 = vst.msk [vmem:[#allocation2 + $0x68] sm:$0xff] %vm612, %v2471
      %2508 = vst.msk [vmem:[#allocation2 + $0x70] sm:$0xff] %vm612, %v2472
      %2509 = vst.msk [vmem:[#allocation2 + $0x78] sm:$0xff] %vm612, %v2473
      %2510 = vst.msk [vmem:[#allocation2 + $0x80] sm:$0xff] %vm612, %v2474
      %2511 = vst.msk [vmem:[#allocation2 + $0x88] sm:$0xff] %vm612, %v2475
      %2512 = vst.msk [vmem:[#allocation2 + $0x90] sm:$0xff] %vm612, %v2476
      %2513 = vst.msk [vmem:[#allocation2 + $0x98] sm:$0xff] %vm612, %v2477
      %2514 = vst.msk [vmem:[#allocation2 + $0xa0] sm:$0xff] %vm612, %v2478
      %2515 = vst.msk [vmem:[#allocation2 + $0xa8] sm:$0xff] %vm612, %v2479
      %2516 = vst.msk [vmem:[#allocation2 + $0xb0] sm:$0xff] %vm612, %v2480
      %2517 = vst.msk [vmem:[#allocation2 + $0xb8] sm:$0xff] %vm612, %v2481
      %2518 = vst.msk [vmem:[#allocation2 + $0xc0] sm:$0xff] %vm612, %v2482
      %2519 = vst.msk [vmem:[#allocation2 + $0xc8] sm:$0xff] %vm612, %v2483
      %2520 = vst.msk [vmem:[#allocation2 + $0xd0] sm:$0xff] %vm612, %v2484
      %2521 = vst.msk [vmem:[#allocation2 + $0xd8] sm:$0xff] %vm612, %v2485
      %2522 = vst.msk [vmem:[#allocation2 + $0xe0] sm:$0xff] %vm612, %v2486
      %2523 = vst.msk [vmem:[#allocation2 + $0xe8] sm:$0xff] %vm612, %v2487
      %2524 = vst.msk [vmem:[#allocation2 + $0xf0] sm:$0xff] %vm612, %v2488
      %2525 = vst.msk [vmem:[#allocation2 + $0xf8] sm:$0xff] %vm612, %v2489
      %2526 = vst.msk [vmem:[#allocation2 + $0x100] sm:$0xff] %vm612, %v2490
      %2527 = vst.msk [vmem:[#allocation2 + $0x108] sm:$0xff] %vm612, %v2491
      %2528 = vst.msk [vmem:[#allocation2 + $0x110] sm:$0xff] %vm612, %v2492
      %2529 = vst.msk [vmem:[#allocation2 + $0x118] sm:$0xff] %vm612, %v2493
      %v2530 = vld [vmem:[#allocation2] sm:$0xff]
      %v2531 = vld [vmem:[#allocation2 + $0x8] sm:$0xff]
      %v2532 = vld [vmem:[#allocation2 + $0x10] sm:$0xff]
      %v2533 = vld [vmem:[#allocation2 + $0x18] sm:$0xff]
      %v2534 = vld [vmem:[#allocation2 + $0x20] sm:$0xff]
      %v2535 = vld [vmem:[#allocation2 + $0x28] sm:$0xff]
      %v2536 = vld [vmem:[#allocation2 + $0x30] sm:$0xff]
      %v2537 = vld [vmem:[#allocation2 + $0x38] sm:$0xff]
      %v2538 = vld [vmem:[#allocation2 + $0x40] sm:$0xff]
      %v2539 = vld [vmem:[#allocation2 + $0x48] sm:$0xff]
      %v2540 = vld [vmem:[#allocation2 + $0x50] sm:$0xff]
      %v2541 = vld [vmem:[#allocation2 + $0x58] sm:$0xff]
      %v2542 = vld [vmem:[#allocation2 + $0x60] sm:$0xff]
      %v2543 = vld [vmem:[#allocation2 + $0x68] sm:$0xff]
      %v2544 = vld [vmem:[#allocation2 + $0x70] sm:$0xff]
      %v2545 = vld [vmem:[#allocation2 + $0x78] sm:$0xff]
      %v2546 = vld [vmem:[#allocation2 + $0x80] sm:$0xff]
      %v2547 = vld [vmem:[#allocation2 + $0x88] sm:$0xff]
      %v2548 = vld [vmem:[#allocation2 + $0x90] sm:$0xff]
      %v2549 = vld [vmem:[#allocation2 + $0x98] sm:$0xff]
      %v2550 = vld [vmem:[#allocation2 + $0xa0] sm:$0xff]
      %v2551 = vld [vmem:[#allocation2 + $0xa8] sm:$0xff]
      %v2552 = vld [vmem:[#allocation2 + $0xb0] sm:$0xff]
      %v2553 = vld [vmem:[#allocation2 + $0xb8] sm:$0xff]
      %v2554 = vld [vmem:[#allocation2 + $0xc0] sm:$0xff]
      %v2555 = vld [vmem:[#allocation2 + $0xc8] sm:$0xff]
      %v2556 = vld [vmem:[#allocation2 + $0xd0] sm:$0xff]
      %v2557 = vld [vmem:[#allocation2 + $0xd8] sm:$0xff]
      %v2558 = vld [vmem:[#allocation2 + $0xe0] sm:$0xff]
      %v2559 = vld [vmem:[#allocation2 + $0xe8] sm:$0xff]
      %v2560 = vld [vmem:[#allocation2 + $0xf0] sm:$0xff]
      %v2561 = vld [vmem:[#allocation2 + $0xf8] sm:$0xff]
      %v2562 = vld [vmem:[#allocation2 + $0x100] sm:$0xff]
      %v2563 = vld [vmem:[#allocation2 + $0x108] sm:$0xff]
      %v2564 = vld [vmem:[#allocation2 + $0x110] sm:$0xff]
      %v2565 = vld [vmem:[#allocation2 + $0x118] sm:$0xff]
      %s2566 = scalar_lea.vmem %s1, 20
      %v2567 = vld [vmem:[%s2566] sm:$0x7]
      %vm2568 = vcmask 1043456
      %v2569 = vrot.slane %v214, 4
      %v2570 = vrot.slane %v215, 4
      %v2571 = vsel %vm2568, %v2569, %v2570
      %v2572 = vrot.slane %v216, 4
      %v2573 = vsel %vm2568, %v2570, %v2572
      %v2574 = vrot.slane %v217, 4
      %v2575 = vsel %vm2568, %v2572, %v2574
      %v2576 = vrot.slane %v218, 4
      %v2577 = vsel %vm2568, %v2574, %v2576
      %v2578 = vrot.slane %v219, 4
      %v2579 = vsel %vm2568, %v2576, %v2578
      %v2580 = vrot.slane %v220, 4
      %v2581 = vsel %vm2568, %v2578, %v2580
      %v2582 = vrot.slane %v221, 4
      %v2583 = vsel %vm2568, %v2580, %v2582
      %v2584 = vrot.slane %v222, 4
      %v2585 = vsel %vm2568, %v2582, %v2584
      %v2586 = vrot.slane %v223, 4
      %v2587 = vsel %vm2568, %v2584, %v2586
      %v2588 = vrot.slane %v224, 4
      %v2589 = vsel %vm2568, %v2586, %v2588
      %v2590 = vrot.slane %v225, 4
      %v2591 = vsel %vm2568, %v2588, %v2590
      %v2592 = vrot.slane %v226, 4
      %v2593 = vsel %vm2568, %v2590, %v2592
      %v2594 = vrot.slane %v227, 4
      %v2595 = vsel %vm2568, %v2592, %v2594
      %v2596 = vrot.slane %v228, 4
      %v2597 = vsel %vm2568, %v2594, %v2596
      %v2598 = vrot.slane %v229, 4
      %v2599 = vsel %vm2568, %v2596, %v2598
      %v2600 = vrot.slane %v230, 4
      %v2601 = vsel %vm2568, %v2598, %v2600
      %v2602 = vrot.slane %v231, 4
      %v2603 = vsel %vm2568, %v2600, %v2602
      %v2604 = vrot.slane %v232, 4
      %v2605 = vsel %vm2568, %v2602, %v2604
      %v2606 = vrot.slane %v233, 4
      %v2607 = vsel %vm2568, %v2604, %v2606
      %v2608 = vrot.slane %v234, 4
      %v2609 = vsel %vm2568, %v2606, %v2608
      %v2610 = vrot.slane %v235, 4
      %v2611 = vsel %vm2568, %v2608, %v2610
      %v2612 = vrot.slane %v236, 4
      %v2613 = vsel %vm2568, %v2610, %v2612
      %v2614 = vrot.slane %v237, 4
      %v2615 = vsel %vm2568, %v2612, %v2614
      %v2616 = vrot.slane %v238, 4
      %v2617 = vsel %vm2568, %v2614, %v2616
      %v2618 = vrot.slane %v239, 4
      %v2619 = vsel %vm2568, %v2616, %v2618
      %v2620 = vrot.slane %v240, 4
      %v2621 = vsel %vm2568, %v2618, %v2620
      %v2622 = vrot.slane %v241, 4
      %v2623 = vsel %vm2568, %v2620, %v2622
      %v2624 = vrot.slane %v242, 4
      %v2625 = vsel %vm2568, %v2622, %v2624
      %v2626 = vrot.slane %v243, 4
      %v2627 = vsel %vm2568, %v2624, %v2626
      %v2628 = vrot.slane %v244, 4
      %v2629 = vsel %vm2568, %v2626, %v2628
      %v2630 = vrot.slane %v245, 4
      %v2631 = vsel %vm2568, %v2628, %v2630
      %v2632 = vrot.slane %v246, 4
      %v2633 = vsel %vm2568, %v2630, %v2632
      %v2634 = vrot.slane %v247, 4
      %v2635 = vsel %vm2568, %v2632, %v2634
      %v2636 = vrot.slane %v248, 4
      %v2637 = vsel %vm2568, %v2634, %v2636
      %v2638 = vrot.slane %v249, 4
      %v2639 = vsel %vm2568, %v2636, %v2638
      %v2640 = vrot.slane %v250, 4
      %v2641 = vsel %vm2568, %v2638, %v2640
      %v2642 = vsel %vm254, %v2571, 0
      %v2644 = vsel %vm254, %v2573, 0
      %v2646 = vsel %vm254, %v2575, 0
      %v2648 = vsel %vm254, %v2577, 0
      %v2650 = vsel %vm254, %v2579, 0
      %v2652 = vsel %vm254, %v2581, 0
      %v2654 = vsel %vm254, %v2583, 0
      %v2656 = vsel %vm254, %v2585, 0
      %v2658 = vsel %vm254, %v2587, 0
      %v2660 = vsel %vm254, %v2589, 0
      %v2662 = vsel %vm254, %v2591, 0
      %v2664 = vsel %vm254, %v2593, 0
      %v2666 = vsel %vm254, %v2595, 0
      %v2668 = vsel %vm254, %v2597, 0
      %v2670 = vsel %vm254, %v2599, 0
      %v2672 = vsel %vm254, %v2601, 0
      %v2674 = vsel %vm254, %v2603, 0
      %v2676 = vsel %vm254, %v2605, 0
      %v2678 = vsel %vm254, %v2607, 0
      %v2680 = vsel %vm254, %v2609, 0
      %v2682 = vsel %vm254, %v2611, 0
      %v2684 = vsel %vm254, %v2613, 0
      %v2686 = vsel %vm254, %v2615, 0
      %v2688 = vsel %vm254, %v2617, 0
      %v2690 = vsel %vm254, %v2619, 0
      %v2692 = vsel %vm254, %v2621, 0
      %v2694 = vsel %vm254, %v2623, 0
      %v2696 = vsel %vm254, %v2625, 0
      %v2698 = vsel %vm254, %v2627, 0
      %v2700 = vsel %vm254, %v2629, 0
      %v2702 = vsel %vm254, %v2631, 0
      %v2704 = vsel %vm254, %v2633, 0
      %v2706 = vsel %vm254, %v2635, 0
      %v2708 = vsel %vm254, %v2637, 0
      %v2710 = vsel %vm254, %v2639, 0
      %v2712 = vsel %vm254, %v2641, 0
      %v2715 = vsel %vm363, %v2567, 0
      %2717 = vmatprep.subr.mxu0 0.0
      %2718 = vmatpush1.msra.mxu0 %v2715
      %2719 = vmatprep.subr.mxu0 0.0
      %2720 = vmatpush1.msra.mxu0 0.0
      %2721 = vmatprep.subr.mxu0 0.0
      %2722 = vmatpush1.msra.mxu0 0.0
      %2723 = vmatprep.subr.mxu0 0.0
      %2724 = vmatpush1.msra.mxu0 0.0
      %2725 = vmatprep.subr.mxu0 0.0
      %2726 = vmatpush1.msra.mxu0 0.0
      %2727 = vmatprep.subr.mxu0 0.0
      %2728 = vmatpush1.msra.mxu0 0.0
      %2729 = vmatprep.subr.mxu0 0.0
      %2730 = vmatpush1.msra.mxu0 0.0
      %2731 = vmatprep.subr.mxu0 0.0
      %2732 = vmatpush1.msra.mxu0 0.0
      %2733 = vmatprep.subr.mxu0 0.0
      %2734 = vmatpush1.msra.mxu0 0.0
      %2735 = vmatprep.subr.mxu0 0.0
      %2736 = vmatpush1.msra.mxu0 0.0
      %2737 = vmatprep.subr.mxu0 0.0
      %2738 = vmatpush1.msra.mxu0 0.0
      %2739 = vmatprep.subr.mxu0 0.0
      %2740 = vmatpush1.msra.mxu0 0.0
      %2741 = vmatprep.subr.mxu0 0.0
      %2742 = vmatpush1.msra.mxu0 0.0
      %2743 = vmatprep.subr.mxu0 0.0
      %2744 = vmatpush1.msra.mxu0 0.0
      %2745 = vmatprep.subr.mxu0 0.0
      %2746 = vmatpush1.msra.mxu0 0.0
      %2747 = vmatprep.subr.mxu0 0.0
      %2748 = vmatpush1.msra.mxu0 0.0
      %2749 = vmatprep.subr.mxu0 0.0
      %2750 = vmatpush1.msra.mxu0 0.0
      %2751 = vmatprep.subr.mxu0 0.0
      %2752 = vmatpush1.msra.mxu0 0.0
      %2753 = vmatprep.subr.mxu0 0.0
      %2754 = vmatpush1.msra.mxu0 0.0
      %2755 = vmatprep.subr.mxu0 0.0
      %2756 = vmatpush1.msra.mxu0 0.0
      %2757 = vmatprep.subr.mxu0 0.0
      %2758 = vmatpush1.msra.mxu0 0.0
      %2759 = vmatprep.subr.mxu0 0.0
      %2760 = vmatpush1.msra.mxu0 0.0
      %2761 = vmatprep.subr.mxu0 0.0
      %2762 = vmatpush1.msra.mxu0 0.0
      %2763 = vmatprep.subr.mxu0 0.0
      %2764 = vmatpush1.msra.mxu0 0.0
      %2765 = vmatprep.subr.mxu0 0.0
      %2766 = vmatpush1.msra.mxu0 0.0
      %2767 = vmatprep.subr.mxu0 0.0
      %2768 = vmatpush1.msra.mxu0 0.0
      %2769 = vmatprep.subr.mxu0 0.0
      %2770 = vmatpush1.msra.mxu0 0.0
      %2771 = vmatprep.subr.mxu0 0.0
      %2772 = vmatpush1.msra.mxu0 0.0
      %2773 = vmatprep.subr.mxu0 0.0
      %2774 = vmatpush1.msra.mxu0 0.0
      %2775 = vmatprep.subr.mxu0 0.0
      %2776 = vmatpush1.msra.mxu0 0.0
      %2777 = vmatprep.subr.mxu0 0.0
      %2778 = vmatpush1.msra.mxu0 0.0
      %2779 = vmatprep.subr.mxu0 0.0
      %2780 = vmatpush1.msra.mxu0 0.0
      %2781 = vmatprep.mubr.f32.mxu0 0.0
      %2782 = vmatmul.mubr.f32.gmra.mrb[0].mxu0 %v2642
      %v2783 = vpop.f32.mrb[0].mxu0
      %v2784 = vadd.f32 0.0, %v2783
      %v2785 = vpop.f32.mrb[0].mxu0
      %2786 = vmatprep.mubr.f32.mxu0 0.0
      %2787 = vmatmul.mubr.f32.gmra.mrb[0].mxu0 %v2644
      %v2788 = vpop.f32.mrb[0].mxu0
      %v2789 = vadd.f32 0.0, %v2788
      %v2790 = vpop.f32.mrb[0].mxu0
      %2791 = vmatprep.mubr.f32.mxu0 0.0
      %2792 = vmatmul.mubr.f32.gmra.mrb[0].mxu0 %v2646
      %v2793 = vpop.f32.mrb[0].mxu0
      %v2794 = vadd.f32 0.0, %v2793
      %v2795 = vpop.f32.mrb[0].mxu0
      %2796 = vmatprep.mubr.f32.mxu0 0.0
      %2797 = vmatmul.mubr.f32.gmra.mrb[0].mxu0 %v2648
      %v2798 = vpop.f32.mrb[0].mxu0
      %v2799 = vadd.f32 0.0, %v2798
      %v2800 = vpop.f32.mrb[0].mxu0
      %2801 = vmatprep.mubr.f32.mxu0 0.0
      %2802 = vmatmul.mubr.f32.gmra.mrb[0].mxu0 %v2650
      %v2803 = vpop.f32.mrb[0].mxu0
      %v2804 = vadd.f32 0.0, %v2803
      %v2805 = vpop.f32.mrb[0].mxu0
      %2806 = vmatprep.mubr.f32.mxu0 0.0
      %2807 = vmatmul.mubr.f32.gmra.mrb[0].mxu0 %v2652
      %v2808 = vpop.f32.mrb[0].mxu0
      %v2809 = vadd.f32 0.0, %v2808
      %v2810 = vpop.f32.mrb[0].mxu0
      %2811 = vmatprep.mubr.f32.mxu0 0.0
      %2812 = vmatmul.mubr.f32.gmra.mrb[0].mxu0 %v2654
      %v2813 = vpop.f32.mrb[0].mxu0
      %v2814 = vadd.f32 0.0, %v2813
      %v2815 = vpop.f32.mrb[0].mxu0
      %2816 = vmatprep.mubr.f32.mxu0 0.0
      %2817 = vmatmul.mubr.f32.gmra.mrb[0].mxu0 %v2656
      %v2818 = vpop.f32.mrb[0].mxu0
      %v2819 = vadd.f32 0.0, %v2818
      %v2820 = vpop.f32.mrb[0].mxu0
      %2821 = vmatprep.mubr.f32.mxu0 0.0
      %2822 = vmatmul.mubr.f32.gmra.mrb[0].mxu0 %v2658
      %v2823 = vpop.f32.mrb[0].mxu0
      %v2824 = vadd.f32 0.0, %v2823
      %v2825 = vpop.f32.mrb[0].mxu0
      %2826 = vmatprep.mubr.f32.mxu0 0.0
      %2827 = vmatmul.mubr.f32.gmra.mrb[0].mxu0 %v2660
      %v2828 = vpop.f32.mrb[0].mxu0
      %v2829 = vadd.f32 0.0, %v2828
      %v2830 = vpop.f32.mrb[0].mxu0
      %2831 = vmatprep.mubr.f32.mxu0 0.0
      %2832 = vmatmul.mubr.f32.gmra.mrb[0].mxu0 %v2662
      %v2833 = vpop.f32.mrb[0].mxu0
      %v2834 = vadd.f32 0.0, %v2833
      %v2835 = vpop.f32.mrb[0].mxu0
      %2836 = vmatprep.mubr.f32.mxu0 0.0
      %2837 = vmatmul.mubr.f32.gmra.mrb[0].mxu0 %v2664
      %v2838 = vpop.f32.mrb[0].mxu0
      %v2839 = vadd.f32 0.0, %v2838
      %v2840 = vpop.f32.mrb[0].mxu0
      %2841 = vmatprep.mubr.f32.mxu0 0.0
      %2842 = vmatmul.mubr.f32.gmra.mrb[0].mxu0 %v2666
      %v2843 = vpop.f32.mrb[0].mxu0
      %v2844 = vadd.f32 0.0, %v2843
      %v2845 = vpop.f32.mrb[0].mxu0
      %2846 = vmatprep.mubr.f32.mxu0 0.0
      %2847 = vmatmul.mubr.f32.gmra.mrb[0].mxu0 %v2668
      %v2848 = vpop.f32.mrb[0].mxu0
      %v2849 = vadd.f32 0.0, %v2848
      %v2850 = vpop.f32.mrb[0].mxu0
      %2851 = vmatprep.mubr.f32.mxu0 0.0
      %2852 = vmatmul.mubr.f32.gmra.mrb[0].mxu0 %v2670
      %v2853 = vpop.f32.mrb[0].mxu0
      %v2854 = vadd.f32 0.0, %v2853
      %v2855 = vpop.f32.mrb[0].mxu0
      %2856 = vmatprep.mubr.f32.mxu0 0.0
      %2857 = vmatmul.mubr.f32.gmra.mrb[0].mxu0 %v2672
      %v2858 = vpop.f32.mrb[0].mxu0
      %v2859 = vadd.f32 0.0, %v2858
      %v2860 = vpop.f32.mrb[0].mxu0
      %2861 = vmatprep.mubr.f32.mxu0 0.0
      %2862 = vmatmul.mubr.f32.gmra.mrb[0].mxu0 %v2674
      %v2863 = vpop.f32.mrb[0].mxu0
      %v2864 = vadd.f32 0.0, %v2863
      %v2865 = vpop.f32.mrb[0].mxu0
      %2866 = vmatprep.mubr.f32.mxu0 0.0
      %2867 = vmatmul.mubr.f32.gmra.mrb[0].mxu0 %v2676
      %v2868 = vpop.f32.mrb[0].mxu0
      %v2869 = vadd.f32 0.0, %v2868
      %v2870 = vpop.f32.mrb[0].mxu0
      %2871 = vmatprep.mubr.f32.mxu0 0.0
      %2872 = vmatmul.mubr.f32.gmra.mrb[0].mxu0 %v2678
      %v2873 = vpop.f32.mrb[0].mxu0
      %v2874 = vadd.f32 0.0, %v2873
      %v2875 = vpop.f32.mrb[0].mxu0
      %2876 = vmatprep.mubr.f32.mxu0 0.0
      %2877 = vmatmul.mubr.f32.gmra.mrb[0].mxu0 %v2680
      %v2878 = vpop.f32.mrb[0].mxu0
      %v2879 = vadd.f32 0.0, %v2878
      %v2880 = vpop.f32.mrb[0].mxu0
      %2881 = vmatprep.mubr.f32.mxu0 0.0
      %2882 = vmatmul.mubr.f32.gmra.mrb[0].mxu0 %v2682
      %v2883 = vpop.f32.mrb[0].mxu0
      %v2884 = vadd.f32 0.0, %v2883
      %v2885 = vpop.f32.mrb[0].mxu0
      %2886 = vmatprep.mubr.f32.mxu0 0.0
      %2887 = vmatmul.mubr.f32.gmra.mrb[0].mxu0 %v2684
      %v2888 = vpop.f32.mrb[0].mxu0
      %v2889 = vadd.f32 0.0, %v2888
      %v2890 = vpop.f32.mrb[0].mxu0
      %2891 = vmatprep.mubr.f32.mxu0 0.0
      %2892 = vmatmul.mubr.f32.gmra.mrb[0].mxu0 %v2686
      %v2893 = vpop.f32.mrb[0].mxu0
      %v2894 = vadd.f32 0.0, %v2893
      %v2895 = vpop.f32.mrb[0].mxu0
      %2896 = vmatprep.mubr.f32.mxu0 0.0
      %2897 = vmatmul.mubr.f32.gmra.mrb[0].mxu0 %v2688
      %v2898 = vpop.f32.mrb[0].mxu0
      %v2899 = vadd.f32 0.0, %v2898
      %v2900 = vpop.f32.mrb[0].mxu0
      %2901 = vmatprep.mubr.f32.mxu0 0.0
      %2902 = vmatmul.mubr.f32.gmra.mrb[0].mxu0 %v2690
      %v2903 = vpop.f32.mrb[0].mxu0
      %v2904 = vadd.f32 0.0, %v2903
      %v2905 = vpop.f32.mrb[0].mxu0
      %2906 = vmatprep.mubr.f32.mxu0 0.0
      %2907 = vmatmul.mubr.f32.gmra.mrb[0].mxu0 %v2692
      %v2908 = vpop.f32.mrb[0].mxu0
      %v2909 = vadd.f32 0.0, %v2908
      %v2910 = vpop.f32.mrb[0].mxu0
      %2911 = vmatprep.mubr.f32.mxu0 0.0
      %2912 = vmatmul.mubr.f32.gmra.mrb[0].mxu0 %v2694
      %v2913 = vpop.f32.mrb[0].mxu0
      %v2914 = vadd.f32 0.0, %v2913
      %v2915 = vpop.f32.mrb[0].mxu0
      %2916 = vmatprep.mubr.f32.mxu0 0.0
      %2917 = vmatmul.mubr.f32.gmra.mrb[0].mxu0 %v2696
      %v2918 = vpop.f32.mrb[0].mxu0
      %v2919 = vadd.f32 0.0, %v2918
      %v2920 = vpop.f32.mrb[0].mxu0
      %2921 = vmatprep.mubr.f32.mxu0 0.0
      %2922 = vmatmul.mubr.f32.gmra.mrb[0].mxu0 %v2698
      %v2923 = vpop.f32.mrb[0].mxu0
      %v2924 = vadd.f32 0.0, %v2923
      %v2925 = vpop.f32.mrb[0].mxu0
      %2926 = vmatprep.mubr.f32.mxu0 0.0
      %2927 = vmatmul.mubr.f32.gmra.mrb[0].mxu0 %v2700
      %v2928 = vpop.f32.mrb[0].mxu0
      %v2929 = vadd.f32 0.0, %v2928
      %v2930 = vpop.f32.mrb[0].mxu0
      %2931 = vmatprep.mubr.f32.mxu0 0.0
      %2932 = vmatmul.mubr.f32.gmra.mrb[0].mxu0 %v2702
      %v2933 = vpop.f32.mrb[0].mxu0
      %v2934 = vadd.f32 0.0, %v2933
      %v2935 = vpop.f32.mrb[0].mxu0
      %2936 = vmatprep.mubr.f32.mxu0 0.0
      %2937 = vmatmul.mubr.f32.gmra.mrb[0].mxu0 %v2704
      %v2938 = vpop.f32.mrb[0].mxu0
      %v2939 = vadd.f32 0.0, %v2938
      %v2940 = vpop.f32.mrb[0].mxu0
      %2941 = vmatprep.mubr.f32.mxu0 0.0
      %2942 = vmatmul.mubr.f32.gmra.mrb[0].mxu0 %v2706
      %v2943 = vpop.f32.mrb[0].mxu0
      %v2944 = vadd.f32 0.0, %v2943
      %v2945 = vpop.f32.mrb[0].mxu0
      %2946 = vmatprep.mubr.f32.mxu0 0.0
      %2947 = vmatmul.mubr.f32.gmra.mrb[0].mxu0 %v2708
      %v2948 = vpop.f32.mrb[0].mxu0
      %v2949 = vadd.f32 0.0, %v2948
      %v2950 = vpop.f32.mrb[0].mxu0
      %2951 = vmatprep.mubr.f32.mxu0 0.0
      %2952 = vmatmul.mubr.f32.gmra.mrb[0].mxu0 %v2710
      %v2953 = vpop.f32.mrb[0].mxu0
      %v2954 = vadd.f32 0.0, %v2953
      %v2955 = vpop.f32.mrb[0].mxu0
      %2956 = vmatprep.mubr.f32.mxu0 0.0
      %2957 = vmatmul.mubr.f32.gmra.mrb[0].mxu0 %v2712
      %v2958 = vpop.f32.mrb[0].mxu0
      %v2959 = vadd.f32 0.0, %v2958
      %v2960 = vpop.f32.mrb[0].mxu0
      %2961 = vdwg.mxu0
      %v2962 = vadd.f32 %v2530, %v2784
      %v2963 = vadd.f32 %v2531, %v2789
      %v2964 = vadd.f32 %v2532, %v2794
      %v2965 = vadd.f32 %v2533, %v2799
      %v2966 = vadd.f32 %v2534, %v2804
      %v2967 = vadd.f32 %v2535, %v2809
      %v2968 = vadd.f32 %v2536, %v2814
      %v2969 = vadd.f32 %v2537, %v2819
      %v2970 = vadd.f32 %v2538, %v2824
      %v2971 = vadd.f32 %v2539, %v2829
      %v2972 = vadd.f32 %v2540, %v2834
      %v2973 = vadd.f32 %v2541, %v2839
      %v2974 = vadd.f32 %v2542, %v2844
      %v2975 = vadd.f32 %v2543, %v2849
      %v2976 = vadd.f32 %v2544, %v2854
      %v2977 = vadd.f32 %v2545, %v2859
      %v2978 = vadd.f32 %v2546, %v2864
      %v2979 = vadd.f32 %v2547, %v2869
      %v2980 = vadd.f32 %v2548, %v2874
      %v2981 = vadd.f32 %v2549, %v2879
      %v2982 = vadd.f32 %v2550, %v2884
      %v2983 = vadd.f32 %v2551, %v2889
      %v2984 = vadd.f32 %v2552, %v2894
      %v2985 = vadd.f32 %v2553, %v2899
      %v2986 = vadd.f32 %v2554, %v2904
      %v2987 = vadd.f32 %v2555, %v2909
      %v2988 = vadd.f32 %v2556, %v2914
      %v2989 = vadd.f32 %v2557, %v2919
      %v2990 = vadd.f32 %v2558, %v2924
      %v2991 = vadd.f32 %v2559, %v2929
      %v2992 = vadd.f32 %v2560, %v2934
      %v2993 = vadd.f32 %v2561, %v2939
      %v2994 = vadd.f32 %v2562, %v2944
      %v2995 = vadd.f32 %v2563, %v2949
      %v2996 = vadd.f32 %v2564, %v2954
      %v2997 = vadd.f32 %v2565, %v2959
      %2998 = vst.msk [vmem:[#allocation2] sm:$0xff] %vm612, %v2962
      %2999 = vst.msk [vmem:[#allocation2 + $0x8] sm:$0xff] %vm612, %v2963
      %3000 = vst.msk [vmem:[#allocation2 + $0x10] sm:$0xff] %vm612, %v2964
      %3001 = vst.msk [vmem:[#allocation2 + $0x18] sm:$0xff] %vm612, %v2965
      %3002 = vst.msk [vmem:[#allocation2 + $0x20] sm:$0xff] %vm612, %v2966
      %3003 = vst.msk [vmem:[#allocation2 + $0x28] sm:$0xff] %vm612, %v2967
      %3004 = vst.msk [vmem:[#allocation2 + $0x30] sm:$0xff] %vm612, %v2968
      %3005 = vst.msk [vmem:[#allocation2 + $0x38] sm:$0xff] %vm612, %v2969
      %3006 = vst.msk [vmem:[#allocation2 + $0x40] sm:$0xff] %vm612, %v2970
      %3007 = vst.msk [vmem:[#allocation2 + $0x48] sm:$0xff] %vm612, %v2971
      %3008 = vst.msk [vmem:[#allocation2 + $0x50] sm:$0xff] %vm612, %v2972
      %3009 = vst.msk [vmem:[#allocation2 + $0x58] sm:$0xff] %vm612, %v2973
      %3010 = vst.msk [vmem:[#allocation2 + $0x60] sm:$0xff] %vm612, %v2974
      %3011 = vst.msk [vmem:[#allocation2 + $0x68] sm:$0xff] %vm612, %v2975
      %3012 = vst.msk [vmem:[#allocation2 + $0x70] sm:$0xff] %vm612, %v2976
      %3013 = vst.msk [vmem:[#allocation2 + $0x78] sm:$0xff] %vm612, %v2977
      %3014 = vst.msk [vmem:[#allocation2 + $0x80] sm:$0xff] %vm612, %v2978
      %3015 = vst.msk [vmem:[#allocation2 + $0x88] sm:$0xff] %vm612, %v2979
      %3016 = vst.msk [vmem:[#allocation2 + $0x90] sm:$0xff] %vm612, %v2980
      %3017 = vst.msk [vmem:[#allocation2 + $0x98] sm:$0xff] %vm612, %v2981
      %3018 = vst.msk [vmem:[#allocation2 + $0xa0] sm:$0xff] %vm612, %v2982
      %3019 = vst.msk [vmem:[#allocation2 + $0xa8] sm:$0xff] %vm612, %v2983
      %3020 = vst.msk [vmem:[#allocation2 + $0xb0] sm:$0xff] %vm612, %v2984
      %3021 = vst.msk [vmem:[#allocation2 + $0xb8] sm:$0xff] %vm612, %v2985
      %3022 = vst.msk [vmem:[#allocation2 + $0xc0] sm:$0xff] %vm612, %v2986
      %3023 = vst.msk [vmem:[#allocation2 + $0xc8] sm:$0xff] %vm612, %v2987
      %3024 = vst.msk [vmem:[#allocation2 + $0xd0] sm:$0xff] %vm612, %v2988
      %3025 = vst.msk [vmem:[#allocation2 + $0xd8] sm:$0xff] %vm612, %v2989
      %3026 = vst.msk [vmem:[#allocation2 + $0xe0] sm:$0xff] %vm612, %v2990
      %3027 = vst.msk [vmem:[#allocation2 + $0xe8] sm:$0xff] %vm612, %v2991
      %3028 = vst.msk [vmem:[#allocation2 + $0xf0] sm:$0xff] %vm612, %v2992
      %3029 = vst.msk [vmem:[#allocation2 + $0xf8] sm:$0xff] %vm612, %v2993
      %3030 = vst.msk [vmem:[#allocation2 + $0x100] sm:$0xff] %vm612, %v2994
      %3031 = vst.msk [vmem:[#allocation2 + $0x108] sm:$0xff] %vm612, %v2995
      %3032 = vst.msk [vmem:[#allocation2 + $0x110] sm:$0xff] %vm612, %v2996
      %3033 = vst.msk [vmem:[#allocation2 + $0x118] sm:$0xff] %vm612, %v2997
      %v3034 = vld [vmem:[#allocation2] sm:$0xff]
      %v3035 = vld [vmem:[#allocation2 + $0x8] sm:$0xff]
      %v3036 = vld [vmem:[#allocation2 + $0x10] sm:$0xff]
      %v3037 = vld [vmem:[#allocation2 + $0x18] sm:$0xff]
      %v3038 = vld [vmem:[#allocation2 + $0x20] sm:$0xff]
      %v3039 = vld [vmem:[#allocation2 + $0x28] sm:$0xff]
      %v3040 = vld [vmem:[#allocation2 + $0x30] sm:$0xff]
      %v3041 = vld [vmem:[#allocation2 + $0x38] sm:$0xff]
      %v3042 = vld [vmem:[#allocation2 + $0x40] sm:$0xff]
      %v3043 = vld [vmem:[#allocation2 + $0x48] sm:$0xff]
      %v3044 = vld [vmem:[#allocation2 + $0x50] sm:$0xff]
      %v3045 = vld [vmem:[#allocation2 + $0x58] sm:$0xff]
      %v3046 = vld [vmem:[#allocation2 + $0x60] sm:$0xff]
      %v3047 = vld [vmem:[#allocation2 + $0x68] sm:$0xff]
      %v3048 = vld [vmem:[#allocation2 + $0x70] sm:$0xff]
      %v3049 = vld [vmem:[#allocation2 + $0x78] sm:$0xff]
      %v3050 = vld [vmem:[#allocation2 + $0x80] sm:$0xff]
      %v3051 = vld [vmem:[#allocation2 + $0x88] sm:$0xff]
      %v3052 = vld [vmem:[#allocation2 + $0x90] sm:$0xff]
      %v3053 = vld [vmem:[#allocation2 + $0x98] sm:$0xff]
      %v3054 = vld [vmem:[#allocation2 + $0xa0] sm:$0xff]
      %v3055 = vld [vmem:[#allocation2 + $0xa8] sm:$0xff]
      %v3056 = vld [vmem:[#allocation2 + $0xb0] sm:$0xff]
      %v3057 = vld [vmem:[#allocation2 + $0xb8] sm:$0xff]
      %v3058 = vld [vmem:[#allocation2 + $0xc0] sm:$0xff]
      %v3059 = vld [vmem:[#allocation2 + $0xc8] sm:$0xff]
      %v3060 = vld [vmem:[#allocation2 + $0xd0] sm:$0xff]
      %v3061 = vld [vmem:[#allocation2 + $0xd8] sm:$0xff]
      %v3062 = vld [vmem:[#allocation2 + $0xe0] sm:$0xff]
      %v3063 = vld [vmem:[#allocation2 + $0xe8] sm:$0xff]
      %v3064 = vld [vmem:[#allocation2 + $0xf0] sm:$0xff]
      %v3065 = vld [vmem:[#allocation2 + $0xf8] sm:$0xff]
      %v3066 = vld [vmem:[#allocation2 + $0x100] sm:$0xff]
      %v3067 = vld [vmem:[#allocation2 + $0x108] sm:$0xff]
      %v3068 = vld [vmem:[#allocation2 + $0x110] sm:$0xff]
      %v3069 = vld [vmem:[#allocation2 + $0x118] sm:$0xff]
      %s3070 = scalar_lea.vmem %s1, 24
      %v3071 = vld [vmem:[%s3070] sm:$0x7]
      %v3074 = vrot.slane %v251, 4
      %v3075 = vsel %vm2568, %v2640, %v3074
      %v3076 = vrot.slane %v252, 4
      %v3077 = vsel %vm2568, %v3074, %v3076
      %v3078 = vsel %vm254, %v3075, 0
      %v3080 = vsel %vm254, %v3077, 0
      %v3083 = vsel %vm363, %v3071, 0
      %3085 = vmatprep.subr.mxu0 0.0
      %3086 = vmatpush1.msra.mxu0 %v3083
      %3087 = vmatprep.subr.mxu0 0.0
      %3088 = vmatpush1.msra.mxu0 0.0
      %3089 = vmatprep.subr.mxu0 0.0
      %3090 = vmatpush1.msra.mxu0 0.0
      %3091 = vmatprep.subr.mxu0 0.0
      %3092 = vmatpush1.msra.mxu0 0.0
      %3093 = vmatprep.subr.mxu0 0.0
      %3094 = vmatpush1.msra.mxu0 0.0
      %3095 = vmatprep.subr.mxu0 0.0
      %3096 = vmatpush1.msra.mxu0 0.0
      %3097 = vmatprep.subr.mxu0 0.0
      %3098 = vmatpush1.msra.mxu0 0.0
      %3099 = vmatprep.subr.mxu0 0.0
      %3100 = vmatpush1.msra.mxu0 0.0
      %3101 = vmatprep.subr.mxu0 0.0
      %3102 = vmatpush1.msra.mxu0 0.0
      %3103 = vmatprep.subr.mxu0 0.0
      %3104 = vmatpush1.msra.mxu0 0.0
      %3105 = vmatprep.subr.mxu0 0.0
      %3106 = vmatpush1.msra.mxu0 0.0
      %3107 = vmatprep.subr.mxu0 0.0
      %3108 = vmatpush1.msra.mxu0 0.0
      %3109 = vmatprep.subr.mxu0 0.0
      %3110 = vmatpush1.msra.mxu0 0.0
      %3111 = vmatprep.subr.mxu0 0.0
      %3112 = vmatpush1.msra.mxu0 0.0
      %3113 = vmatprep.subr.mxu0 0.0
      %3114 = vmatpush1.msra.mxu0 0.0
      %3115 = vmatprep.subr.mxu0 0.0
      %3116 = vmatpush1.msra.mxu0 0.0
      %3117 = vmatprep.subr.mxu0 0.0
      %3118 = vmatpush1.msra.mxu0 0.0
      %3119 = vmatprep.subr.mxu0 0.0
      %3120 = vmatpush1.msra.mxu0 0.0
      %3121 = vmatprep.subr.mxu0 0.0
      %3122 = vmatpush1.msra.mxu0 0.0
      %3123 = vmatprep.subr.mxu0 0.0
      %3124 = vmatpush1.msra.mxu0 0.0
      %3125 = vmatprep.subr.mxu0 0.0
      %3126 = vmatpush1.msra.mxu0 0.0
      %3127 = vmatprep.subr.mxu0 0.0
      %3128 = vmatpush1.msra.mxu0 0.0
      %3129 = vmatprep.subr.mxu0 0.0
      %3130 = vmatpush1.msra.mxu0 0.0
      %3131 = vmatprep.subr.mxu0 0.0
      %3132 = vmatpush1.msra.mxu0 0.0
      %3133 = vmatprep.subr.mxu0 0.0
      %3134 = vmatpush1.msra.mxu0 0.0
      %3135 = vmatprep.subr.mxu0 0.0
      %3136 = vmatpush1.msra.mxu0 0.0
      %3137 = vmatprep.subr.mxu0 0.0
      %3138 = vmatpush1.msra.mxu0 0.0
      %3139 = vmatprep.subr.mxu0 0.0
      %3140 = vmatpush1.msra.mxu0 0.0
      %3141 = vmatprep.subr.mxu0 0.0
      %3142 = vmatpush1.msra.mxu0 0.0
      %3143 = vmatprep.subr.mxu0 0.0
      %3144 = vmatpush1.msra.mxu0 0.0
      %3145 = vmatprep.subr.mxu0 0.0
      %3146 = vmatpush1.msra.mxu0 0.0
      %3147 = vmatprep.subr.mxu0 0.0
      %3148 = vmatpush1.msra.mxu0 0.0
      %3149 = vmatprep.mubr.f32.mxu0 0.0
      %3150 = vmatmul.mubr.f32.gmra.mrb[0].mxu0 %v2646
      %v3151 = vpop.f32.mrb[0].mxu0
      %v3152 = vadd.f32 0.0, %v3151
      %v3153 = vpop.f32.mrb[0].mxu0
      %3154 = vmatprep.mubr.f32.mxu0 0.0
      %3155 = vmatmul.mubr.f32.gmra.mrb[0].mxu0 %v2648
      %v3156 = vpop.f32.mrb[0].mxu0
      %v3157 = vadd.f32 0.0, %v3156
      %v3158 = vpop.f32.mrb[0].mxu0
      %3159 = vmatprep.mubr.f32.mxu0 0.0
      %3160 = vmatmul.mubr.f32.gmra.mrb[0].mxu0 %v2650
      %v3161 = vpop.f32.mrb[0].mxu0
      %v3162 = vadd.f32 0.0, %v3161
      %v3163 = vpop.f32.mrb[0].mxu0
      %3164 = vmatprep.mubr.f32.mxu0 0.0
      %3165 = vmatmul.mubr.f32.gmra.mrb[0].mxu0 %v2652
      %v3166 = vpop.f32.mrb[0].mxu0
      %v3167 = vadd.f32 0.0, %v3166
      %v3168 = vpop.f32.mrb[0].mxu0
      %3169 = vmatprep.mubr.f32.mxu0 0.0
      %3170 = vmatmul.mubr.f32.gmra.mrb[0].mxu0 %v2654
      %v3171 = vpop.f32.mrb[0].mxu0
      %v3172 = vadd.f32 0.0, %v3171
      %v3173 = vpop.f32.mrb[0].mxu0
      %3174 = vmatprep.mubr.f32.mxu0 0.0
      %3175 = vmatmul.mubr.f32.gmra.mrb[0].mxu0 %v2656
      %v3176 = vpop.f32.mrb[0].mxu0
      %v3177 = vadd.f32 0.0, %v3176
      %v3178 = vpop.f32.mrb[0].mxu0
      %3179 = vmatprep.mubr.f32.mxu0 0.0
      %3180 = vmatmul.mubr.f32.gmra.mrb[0].mxu0 %v2658
      %v3181 = vpop.f32.mrb[0].mxu0
      %v3182 = vadd.f32 0.0, %v3181
      %v3183 = vpop.f32.mrb[0].mxu0
      %3184 = vmatprep.mubr.f32.mxu0 0.0
      %3185 = vmatmul.mubr.f32.gmra.mrb[0].mxu0 %v2660
      %v3186 = vpop.f32.mrb[0].mxu0
      %v3187 = vadd.f32 0.0, %v3186
      %v3188 = vpop.f32.mrb[0].mxu0
      %3189 = vmatprep.mubr.f32.mxu0 0.0
      %3190 = vmatmul.mubr.f32.gmra.mrb[0].mxu0 %v2662
      %v3191 = vpop.f32.mrb[0].mxu0
      %v3192 = vadd.f32 0.0, %v3191
      %v3193 = vpop.f32.mrb[0].mxu0
      %3194 = vmatprep.mubr.f32.mxu0 0.0
      %3195 = vmatmul.mubr.f32.gmra.mrb[0].mxu0 %v2664
      %v3196 = vpop.f32.mrb[0].mxu0
      %v3197 = vadd.f32 0.0, %v3196
      %v3198 = vpop.f32.mrb[0].mxu0
      %3199 = vmatprep.mubr.f32.mxu0 0.0
      %3200 = vmatmul.mubr.f32.gmra.mrb[0].mxu0 %v2666
      %v3201 = vpop.f32.mrb[0].mxu0
      %v3202 = vadd.f32 0.0, %v3201
      %v3203 = vpop.f32.mrb[0].mxu0
      %3204 = vmatprep.mubr.f32.mxu0 0.0
      %3205 = vmatmul.mubr.f32.gmra.mrb[0].mxu0 %v2668
      %v3206 = vpop.f32.mrb[0].mxu0
      %v3207 = vadd.f32 0.0, %v3206
      %v3208 = vpop.f32.mrb[0].mxu0
      %3209 = vmatprep.mubr.f32.mxu0 0.0
      %3210 = vmatmul.mubr.f32.gmra.mrb[0].mxu0 %v2670
      %v3211 = vpop.f32.mrb[0].mxu0
      %v3212 = vadd.f32 0.0, %v3211
      %v3213 = vpop.f32.mrb[0].mxu0
      %3214 = vmatprep.mubr.f32.mxu0 0.0
      %3215 = vmatmul.mubr.f32.gmra.mrb[0].mxu0 %v2672
      %v3216 = vpop.f32.mrb[0].mxu0
      %v3217 = vadd.f32 0.0, %v3216
      %v3218 = vpop.f32.mrb[0].mxu0
      %3219 = vmatprep.mubr.f32.mxu0 0.0
      %3220 = vmatmul.mubr.f32.gmra.mrb[0].mxu0 %v2674
      %v3221 = vpop.f32.mrb[0].mxu0
      %v3222 = vadd.f32 0.0, %v3221
      %v3223 = vpop.f32.mrb[0].mxu0
      %3224 = vmatprep.mubr.f32.mxu0 0.0
      %3225 = vmatmul.mubr.f32.gmra.mrb[0].mxu0 %v2676
      %v3226 = vpop.f32.mrb[0].mxu0
      %v3227 = vadd.f32 0.0, %v3226
      %v3228 = vpop.f32.mrb[0].mxu0
      %3229 = vmatprep.mubr.f32.mxu0 0.0
      %3230 = vmatmul.mubr.f32.gmra.mrb[0].mxu0 %v2678
      %v3231 = vpop.f32.mrb[0].mxu0
      %v3232 = vadd.f32 0.0, %v3231
      %v3233 = vpop.f32.mrb[0].mxu0
      %3234 = vmatprep.mubr.f32.mxu0 0.0
      %3235 = vmatmul.mubr.f32.gmra.mrb[0].mxu0 %v2680
      %v3236 = vpop.f32.mrb[0].mxu0
      %v3237 = vadd.f32 0.0, %v3236
      %v3238 = vpop.f32.mrb[0].mxu0
      %3239 = vmatprep.mubr.f32.mxu0 0.0
      %3240 = vmatmul.mubr.f32.gmra.mrb[0].mxu0 %v2682
      %v3241 = vpop.f32.mrb[0].mxu0
      %v3242 = vadd.f32 0.0, %v3241
      %v3243 = vpop.f32.mrb[0].mxu0
      %3244 = vmatprep.mubr.f32.mxu0 0.0
      %3245 = vmatmul.mubr.f32.gmra.mrb[0].mxu0 %v2684
      %v3246 = vpop.f32.mrb[0].mxu0
      %v3247 = vadd.f32 0.0, %v3246
      %v3248 = vpop.f32.mrb[0].mxu0
      %3249 = vmatprep.mubr.f32.mxu0 0.0
      %3250 = vmatmul.mubr.f32.gmra.mrb[0].mxu0 %v2686
      %v3251 = vpop.f32.mrb[0].mxu0
      %v3252 = vadd.f32 0.0, %v3251
      %v3253 = vpop.f32.mrb[0].mxu0
      %3254 = vmatprep.mubr.f32.mxu0 0.0
      %3255 = vmatmul.mubr.f32.gmra.mrb[0].mxu0 %v2688
      %v3256 = vpop.f32.mrb[0].mxu0
      %v3257 = vadd.f32 0.0, %v3256
      %v3258 = vpop.f32.mrb[0].mxu0
      %3259 = vmatprep.mubr.f32.mxu0 0.0
      %3260 = vmatmul.mubr.f32.gmra.mrb[0].mxu0 %v2690
      %v3261 = vpop.f32.mrb[0].mxu0
      %v3262 = vadd.f32 0.0, %v3261
      %v3263 = vpop.f32.mrb[0].mxu0
      %3264 = vmatprep.mubr.f32.mxu0 0.0
      %3265 = vmatmul.mubr.f32.gmra.mrb[0].mxu0 %v2692
      %v3266 = vpop.f32.mrb[0].mxu0
      %v3267 = vadd.f32 0.0, %v3266
      %v3268 = vpop.f32.mrb[0].mxu0
      %3269 = vmatprep.mubr.f32.mxu0 0.0
      %3270 = vmatmul.mubr.f32.gmra.mrb[0].mxu0 %v2694
      %v3271 = vpop.f32.mrb[0].mxu0
      %v3272 = vadd.f32 0.0, %v3271
      %v3273 = vpop.f32.mrb[0].mxu0
      %3274 = vmatprep.mubr.f32.mxu0 0.0
      %3275 = vmatmul.mubr.f32.gmra.mrb[0].mxu0 %v2696
      %v3276 = vpop.f32.mrb[0].mxu0
      %v3277 = vadd.f32 0.0, %v3276
      %v3278 = vpop.f32.mrb[0].mxu0
      %3279 = vmatprep.mubr.f32.mxu0 0.0
      %3280 = vmatmul.mubr.f32.gmra.mrb[0].mxu0 %v2698
      %v3281 = vpop.f32.mrb[0].mxu0
      %v3282 = vadd.f32 0.0, %v3281
      %v3283 = vpop.f32.mrb[0].mxu0
      %3284 = vmatprep.mubr.f32.mxu0 0.0
      %3285 = vmatmul.mubr.f32.gmra.mrb[0].mxu0 %v2700
      %v3286 = vpop.f32.mrb[0].mxu0
      %v3287 = vadd.f32 0.0, %v3286
      %v3288 = vpop.f32.mrb[0].mxu0
      %3289 = vmatprep.mubr.f32.mxu0 0.0
      %3290 = vmatmul.mubr.f32.gmra.mrb[0].mxu0 %v2702
      %v3291 = vpop.f32.mrb[0].mxu0
      %v3292 = vadd.f32 0.0, %v3291
      %v3293 = vpop.f32.mrb[0].mxu0
      %3294 = vmatprep.mubr.f32.mxu0 0.0
      %3295 = vmatmul.mubr.f32.gmra.mrb[0].mxu0 %v2704
      %v3296 = vpop.f32.mrb[0].mxu0
      %v3297 = vadd.f32 0.0, %v3296
      %v3298 = vpop.f32.mrb[0].mxu0
      %3299 = vmatprep.mubr.f32.mxu0 0.0
      %3300 = vmatmul.mubr.f32.gmra.mrb[0].mxu0 %v2706
      %v3301 = vpop.f32.mrb[0].mxu0
      %v3302 = vadd.f32 0.0, %v3301
      %v3303 = vpop.f32.mrb[0].mxu0
      %3304 = vmatprep.mubr.f32.mxu0 0.0
      %3305 = vmatmul.mubr.f32.gmra.mrb[0].mxu0 %v2708
      %v3306 = vpop.f32.mrb[0].mxu0
      %v3307 = vadd.f32 0.0, %v3306
      %v3308 = vpop.f32.mrb[0].mxu0
      %3309 = vmatprep.mubr.f32.mxu0 0.0
      %3310 = vmatmul.mubr.f32.gmra.mrb[0].mxu0 %v2710
      %v3311 = vpop.f32.mrb[0].mxu0
      %v3312 = vadd.f32 0.0, %v3311
      %v3313 = vpop.f32.mrb[0].mxu0
      %3314 = vmatprep.mubr.f32.mxu0 0.0
      %3315 = vmatmul.mubr.f32.gmra.mrb[0].mxu0 %v2712
      %v3316 = vpop.f32.mrb[0].mxu0
      %v3317 = vadd.f32 0.0, %v3316
      %v3318 = vpop.f32.mrb[0].mxu0
      %3319 = vmatprep.mubr.f32.mxu0 0.0
      %3320 = vmatmul.mubr.f32.gmra.mrb[0].mxu0 %v3078
      %v3321 = vpop.f32.mrb[0].mxu0
      %v3322 = vadd.f32 0.0, %v3321
      %v3323 = vpop.f32.mrb[0].mxu0
      %3324 = vmatprep.mubr.f32.mxu0 0.0
      %3325 = vmatmul.mubr.f32.gmra.mrb[0].mxu0 %v3080
      %v3326 = vpop.f32.mrb[0].mxu0
      %v3327 = vadd.f32 0.0, %v3326
      %v3328 = vpop.f32.mrb[0].mxu0
      %3329 = vdwg.mxu0
      %v3330 = vadd.f32 %v3034, %v3152
      %v3331 = vadd.f32 %v3035, %v3157
      %v3332 = vadd.f32 %v3036, %v3162
      %v3333 = vadd.f32 %v3037, %v3167
      %v3334 = vadd.f32 %v3038, %v3172
      %v3335 = vadd.f32 %v3039, %v3177
      %v3336 = vadd.f32 %v3040, %v3182
      %v3337 = vadd.f32 %v3041, %v3187
      %v3338 = vadd.f32 %v3042, %v3192
      %v3339 = vadd.f32 %v3043, %v3197
      %v3340 = vadd.f32 %v3044, %v3202
      %v3341 = vadd.f32 %v3045, %v3207
      %v3342 = vadd.f32 %v3046, %v3212
      %v3343 = vadd.f32 %v3047, %v3217
      %v3344 = vadd.f32 %v3048, %v3222
      %v3345 = vadd.f32 %v3049, %v3227
      %v3346 = vadd.f32 %v3050, %v3232
      %v3347 = vadd.f32 %v3051, %v3237
      %v3348 = vadd.f32 %v3052, %v3242
      %v3349 = vadd.f32 %v3053, %v3247
      %v3350 = vadd.f32 %v3054, %v3252
      %v3351 = vadd.f32 %v3055, %v3257
      %v3352 = vadd.f32 %v3056, %v3262
      %v3353 = vadd.f32 %v3057, %v3267
      %v3354 = vadd.f32 %v3058, %v3272
      %v3355 = vadd.f32 %v3059, %v3277
      %v3356 = vadd.f32 %v3060, %v3282
      %v3357 = vadd.f32 %v3061, %v3287
      %v3358 = vadd.f32 %v3062, %v3292
      %v3359 = vadd.f32 %v3063, %v3297
      %v3360 = vadd.f32 %v3064, %v3302
      %v3361 = vadd.f32 %v3065, %v3307
      %v3362 = vadd.f32 %v3066, %v3312
      %v3363 = vadd.f32 %v3067, %v3317
      %v3364 = vadd.f32 %v3068, %v3322
      %v3365 = vadd.f32 %v3069, %v3327
      %3366 = vst.msk [vmem:[#allocation2] sm:$0xff] %vm612, %v3330
      %3367 = vst.msk [vmem:[#allocation2 + $0x8] sm:$0xff] %vm612, %v3331
      %3368 = vst.msk [vmem:[#allocation2 + $0x10] sm:$0xff] %vm612, %v3332
      %3369 = vst.msk [vmem:[#allocation2 + $0x18] sm:$0xff] %vm612, %v3333
      %3370 = vst.msk [vmem:[#allocation2 + $0x20] sm:$0xff] %vm612, %v3334
      %3371 = vst.msk [vmem:[#allocation2 + $0x28] sm:$0xff] %vm612, %v3335
      %3372 = vst.msk [vmem:[#allocation2 + $0x30] sm:$0xff] %vm612, %v3336
      %3373 = vst.msk [vmem:[#allocation2 + $0x38] sm:$0xff] %vm612, %v3337
      %3374 = vst.msk [vmem:[#allocation2 + $0x40] sm:$0xff] %vm612, %v3338
      %3375 = vst.msk [vmem:[#allocation2 + $0x48] sm:$0xff] %vm612, %v3339
      %3376 = vst.msk [vmem:[#allocation2 + $0x50] sm:$0xff] %vm612, %v3340
      %3377 = vst.msk [vmem:[#allocation2 + $0x58] sm:$0xff] %vm612, %v3341
      %3378 = vst.msk [vmem:[#allocation2 + $0x60] sm:$0xff] %vm612, %v3342
      %3379 = vst.msk [vmem:[#allocation2 + $0x68] sm:$0xff] %vm612, %v3343
      %3380 = vst.msk [vmem:[#allocation2 + $0x70] sm:$0xff] %vm612, %v3344
      %3381 = vst.msk [vmem:[#allocation2 + $0x78] sm:$0xff] %vm612, %v3345
      %3382 = vst.msk [vmem:[#allocation2 + $0x80] sm:$0xff] %vm612, %v3346
      %3383 = vst.msk [vmem:[#allocation2 + $0x88] sm:$0xff] %vm612, %v3347
      %3384 = vst.msk [vmem:[#allocation2 + $0x90] sm:$0xff] %vm612, %v3348
      %3385 = vst.msk [vmem:[#allocation2 + $0x98] sm:$0xff] %vm612, %v3349
      %3386 = vst.msk [vmem:[#allocation2 + $0xa0] sm:$0xff] %vm612, %v3350
      %3387 = vst.msk [vmem:[#allocation2 + $0xa8] sm:$0xff] %vm612, %v3351
      %3388 = vst.msk [vmem:[#allocation2 + $0xb0] sm:$0xff] %vm612, %v3352
      %3389 = vst.msk [vmem:[#allocation2 + $0xb8] sm:$0xff] %vm612, %v3353
      %3390 = vst.msk [vmem:[#allocation2 + $0xc0] sm:$0xff] %vm612, %v3354
      %3391 = vst.msk [vmem:[#allocation2 + $0xc8] sm:$0xff] %vm612, %v3355
      %3392 = vst.msk [vmem:[#allocation2 + $0xd0] sm:$0xff] %vm612, %v3356
      %3393 = vst.msk [vmem:[#allocation2 + $0xd8] sm:$0xff] %vm612, %v3357
      %3394 = vst.msk [vmem:[#allocation2 + $0xe0] sm:$0xff] %vm612, %v3358
      %3395 = vst.msk [vmem:[#allocation2 + $0xe8] sm:$0xff] %vm612, %v3359
      %3396 = vst.msk [vmem:[#allocation2 + $0xf0] sm:$0xff] %vm612, %v3360
      %3397 = vst.msk [vmem:[#allocation2 + $0xf8] sm:$0xff] %vm612, %v3361
      %3398 = vst.msk [vmem:[#allocation2 + $0x100] sm:$0xff] %vm612, %v3362
      %3399 = vst.msk [vmem:[#allocation2 + $0x108] sm:$0xff] %vm612, %v3363
      %3400 = vst.msk [vmem:[#allocation2 + $0x110] sm:$0xff] %vm612, %v3364
      %3401 = vst.msk [vmem:[#allocation2 + $0x118] sm:$0xff] %vm612, %v3365
      %v3402 = vld [vmem:[#allocation2] sm:$0xff]
      %v3403 = vld [vmem:[#allocation2 + $0x8] sm:$0xff]
      %v3404 = vld [vmem:[#allocation2 + $0x10] sm:$0xff]
      %v3405 = vld [vmem:[#allocation2 + $0x18] sm:$0xff]
      %v3406 = vld [vmem:[#allocation2 + $0x20] sm:$0xff]
      %v3407 = vld [vmem:[#allocation2 + $0x28] sm:$0xff]
      %v3408 = vld [vmem:[#allocation2 + $0x30] sm:$0xff]
      %v3409 = vld [vmem:[#allocation2 + $0x38] sm:$0xff]
      %v3410 = vld [vmem:[#allocation2 + $0x40] sm:$0xff]
      %v3411 = vld [vmem:[#allocation2 + $0x48] sm:$0xff]
      %v3412 = vld [vmem:[#allocation2 + $0x50] sm:$0xff]
      %v3413 = vld [vmem:[#allocation2 + $0x58] sm:$0xff]
      %v3414 = vld [vmem:[#allocation2 + $0x60] sm:$0xff]
      %v3415 = vld [vmem:[#allocation2 + $0x68] sm:$0xff]
      %v3416 = vld [vmem:[#allocation2 + $0x70] sm:$0xff]
      %v3417 = vld [vmem:[#allocation2 + $0x78] sm:$0xff]
      %v3418 = vld [vmem:[#allocation2 + $0x80] sm:$0xff]
      %v3419 = vld [vmem:[#allocation2 + $0x88] sm:$0xff]
      %v3420 = vld [vmem:[#allocation2 + $0x90] sm:$0xff]
      %v3421 = vld [vmem:[#allocation2 + $0x98] sm:$0xff]
      %v3422 = vld [vmem:[#allocation2 + $0xa0] sm:$0xff]
      %v3423 = vld [vmem:[#allocation2 + $0xa8] sm:$0xff]
      %v3424 = vld [vmem:[#allocation2 + $0xb0] sm:$0xff]
      %v3425 = vld [vmem:[#allocation2 + $0xb8] sm:$0xff]
      %v3426 = vld [vmem:[#allocation2 + $0xc0] sm:$0xff]
      %v3427 = vld [vmem:[#allocation2 + $0xc8] sm:$0xff]
      %v3428 = vld [vmem:[#allocation2 + $0xd0] sm:$0xff]
      %v3429 = vld [vmem:[#allocation2 + $0xd8] sm:$0xff]
      %v3430 = vld [vmem:[#allocation2 + $0xe0] sm:$0xff]
      %v3431 = vld [vmem:[#allocation2 + $0xe8] sm:$0xff]
      %v3432 = vld [vmem:[#allocation2 + $0xf0] sm:$0xff]
      %v3433 = vld [vmem:[#allocation2 + $0xf8] sm:$0xff]
      %v3434 = vld [vmem:[#allocation2 + $0x100] sm:$0xff]
      %v3435 = vld [vmem:[#allocation2 + $0x108] sm:$0xff]
      %v3436 = vld [vmem:[#allocation2 + $0x110] sm:$0xff]
      %v3437 = vld [vmem:[#allocation2 + $0x118] sm:$0xff]
      %s3438 = scalar_lea.vmem %s1, 28
      %v3439 = vld [vmem:[%s3438] sm:$0x7]
      %v3440 = vrot.slane %v216, 5
      %v3441 = vrot.slane %v217, 5
      %v3442 = vsel %vm363, %v3440, %v3441
      %v3443 = vrot.slane %v218, 5
      %v3444 = vsel %vm363, %v3441, %v3443
      %v3445 = vrot.slane %v219, 5
      %v3446 = vsel %vm363, %v3443, %v3445
      %v3447 = vrot.slane %v220, 5
      %v3448 = vsel %vm363, %v3445, %v3447
      %v3449 = vrot.slane %v221, 5
      %v3450 = vsel %vm363, %v3447, %v3449
      %v3451 = vrot.slane %v222, 5
      %v3452 = vsel %vm363, %v3449, %v3451
      %v3453 = vrot.slane %v223, 5
      %v3454 = vsel %vm363, %v3451, %v3453
      %v3455 = vrot.slane %v224, 5
      %v3456 = vsel %vm363, %v3453, %v3455
      %v3457 = vrot.slane %v225, 5
      %v3458 = vsel %vm363, %v3455, %v3457
      %v3459 = vrot.slane %v226, 5
      %v3460 = vsel %vm363, %v3457, %v3459
      %v3461 = vrot.slane %v227, 5
      %v3462 = vsel %vm363, %v3459, %v3461
      %v3463 = vrot.slane %v228, 5
      %v3464 = vsel %vm363, %v3461, %v3463
      %v3465 = vrot.slane %v229, 5
      %v3466 = vsel %vm363, %v3463, %v3465
      %v3467 = vrot.slane %v230, 5
      %v3468 = vsel %vm363, %v3465, %v3467
      %v3469 = vrot.slane %v231, 5
      %v3470 = vsel %vm363, %v3467, %v3469
      %v3471 = vrot.slane %v232, 5
      %v3472 = vsel %vm363, %v3469, %v3471
      %v3473 = vrot.slane %v233, 5
      %v3474 = vsel %vm363, %v3471, %v3473
      %v3475 = vrot.slane %v234, 5
      %v3476 = vsel %vm363, %v3473, %v3475
      %v3477 = vrot.slane %v235, 5
      %v3478 = vsel %vm363, %v3475, %v3477
      %v3479 = vrot.slane %v236, 5
      %v3480 = vsel %vm363, %v3477, %v3479
      %v3481 = vrot.slane %v237, 5
      %v3482 = vsel %vm363, %v3479, %v3481
      %v3483 = vrot.slane %v238, 5
      %v3484 = vsel %vm363, %v3481, %v3483
      %v3485 = vrot.slane %v239, 5
      %v3486 = vsel %vm363, %v3483, %v3485
      %v3487 = vrot.slane %v240, 5
      %v3488 = vsel %vm363, %v3485, %v3487
      %v3489 = vrot.slane %v241, 5
      %v3490 = vsel %vm363, %v3487, %v3489
      %v3491 = vrot.slane %v242, 5
      %v3492 = vsel %vm363, %v3489, %v3491
      %v3493 = vrot.slane %v243, 5
      %v3494 = vsel %vm363, %v3491, %v3493
      %v3495 = vrot.slane %v244, 5
      %v3496 = vsel %vm363, %v3493, %v3495
      %v3497 = vrot.slane %v245, 5
      %v3498 = vsel %vm363, %v3495, %v3497
      %v3499 = vrot.slane %v246, 5
      %v3500 = vsel %vm363, %v3497, %v3499
      %v3501 = vrot.slane %v247, 5
      %v3502 = vsel %vm363, %v3499, %v3501
      %v3503 = vrot.slane %v248, 5
      %v3504 = vsel %vm363, %v3501, %v3503
      %v3505 = vrot.slane %v249, 5
      %v3506 = vsel %vm363, %v3503, %v3505
      %v3507 = vrot.slane %v250, 5
      %v3508 = vsel %vm363, %v3505, %v3507
      %v3509 = vrot.slane %v251, 5
      %v3510 = vsel %vm363, %v3507, %v3509
      %v3511 = vrot.slane %v252, 5
      %v3512 = vsel %vm363, %v3509, %v3511
      %v3513 = vsel %vm254, %v3442, 0
      %v3515 = vsel %vm254, %v3444, 0
      %v3517 = vsel %vm254, %v3446, 0
      %v3519 = vsel %vm254, %v3448, 0
      %v3521 = vsel %vm254, %v3450, 0
      %v3523 = vsel %vm254, %v3452, 0
      %v3525 = vsel %vm254, %v3454, 0
      %v3527 = vsel %vm254, %v3456, 0
      %v3529 = vsel %vm254, %v3458, 0
      %v3531 = vsel %vm254, %v3460, 0
      %v3533 = vsel %vm254, %v3462, 0
      %v3535 = vsel %vm254, %v3464, 0
      %v3537 = vsel %vm254, %v3466, 0
      %v3539 = vsel %vm254, %v3468, 0
      %v3541 = vsel %vm254, %v3470, 0
      %v3543 = vsel %vm254, %v3472, 0
      %v3545 = vsel %vm254, %v3474, 0
      %v3547 = vsel %vm254, %v3476, 0
      %v3549 = vsel %vm254, %v3478, 0
      %v3551 = vsel %vm254, %v3480, 0
      %v3553 = vsel %vm254, %v3482, 0
      %v3555 = vsel %vm254, %v3484, 0
      %v3557 = vsel %vm254, %v3486, 0
      %v3559 = vsel %vm254, %v3488, 0
      %v3561 = vsel %vm254, %v3490, 0
      %v3563 = vsel %vm254, %v3492, 0
      %v3565 = vsel %vm254, %v3494, 0
      %v3567 = vsel %vm254, %v3496, 0
      %v3569 = vsel %vm254, %v3498, 0
      %v3571 = vsel %vm254, %v3500, 0
      %v3573 = vsel %vm254, %v3502, 0
      %v3575 = vsel %vm254, %v3504, 0
      %v3577 = vsel %vm254, %v3506, 0
      %v3579 = vsel %vm254, %v3508, 0
      %v3581 = vsel %vm254, %v3510, 0
      %v3583 = vsel %vm254, %v3512, 0
      %v3586 = vsel %vm363, %v3439, 0
      %3588 = vmatprep.subr.mxu0 0.0
      %3589 = vmatpush1.msra.mxu0 %v3586
      %3590 = vmatprep.subr.mxu0 0.0
      %3591 = vmatpush1.msra.mxu0 0.0
      %3592 = vmatprep.subr.mxu0 0.0
      %3593 = vmatpush1.msra.mxu0 0.0
      %3594 = vmatprep.subr.mxu0 0.0
      %3595 = vmatpush1.msra.mxu0 0.0
      %3596 = vmatprep.subr.mxu0 0.0
      %3597 = vmatpush1.msra.mxu0 0.0
      %3598 = vmatprep.subr.mxu0 0.0
      %3599 = vmatpush1.msra.mxu0 0.0
      %3600 = vmatprep.subr.mxu0 0.0
      %3601 = vmatpush1.msra.mxu0 0.0
      %3602 = vmatprep.subr.mxu0 0.0
      %3603 = vmatpush1.msra.mxu0 0.0
      %3604 = vmatprep.subr.mxu0 0.0
      %3605 = vmatpush1.msra.mxu0 0.0
      %3606 = vmatprep.subr.mxu0 0.0
      %3607 = vmatpush1.msra.mxu0 0.0
      %3608 = vmatprep.subr.mxu0 0.0
      %3609 = vmatpush1.msra.mxu0 0.0
      %3610 = vmatprep.subr.mxu0 0.0
      %3611 = vmatpush1.msra.mxu0 0.0
      %3612 = vmatprep.subr.mxu0 0.0
      %3613 = vmatpush1.msra.mxu0 0.0
      %3614 = vmatprep.subr.mxu0 0.0
      %3615 = vmatpush1.msra.mxu0 0.0
      %3616 = vmatprep.subr.mxu0 0.0
      %3617 = vmatpush1.msra.mxu0 0.0
      %3618 = vmatprep.subr.mxu0 0.0
      %3619 = vmatpush1.msra.mxu0 0.0
      %3620 = vmatprep.subr.mxu0 0.0
      %3621 = vmatpush1.msra.mxu0 0.0
      %3622 = vmatprep.subr.mxu0 0.0
      %3623 = vmatpush1.msra.mxu0 0.0
      %3624 = vmatprep.subr.mxu0 0.0
      %3625 = vmatpush1.msra.mxu0 0.0
      %3626 = vmatprep.subr.mxu0 0.0
      %3627 = vmatpush1.msra.mxu0 0.0
      %3628 = vmatprep.subr.mxu0 0.0
      %3629 = vmatpush1.msra.mxu0 0.0
      %3630 = vmatprep.subr.mxu0 0.0
      %3631 = vmatpush1.msra.mxu0 0.0
      %3632 = vmatprep.subr.mxu0 0.0
      %3633 = vmatpush1.msra.mxu0 0.0
      %3634 = vmatprep.subr.mxu0 0.0
      %3635 = vmatpush1.msra.mxu0 0.0
      %3636 = vmatprep.subr.mxu0 0.0
      %3637 = vmatpush1.msra.mxu0 0.0
      %3638 = vmatprep.subr.mxu0 0.0
      %3639 = vmatpush1.msra.mxu0 0.0
      %3640 = vmatprep.subr.mxu0 0.0
      %3641 = vmatpush1.msra.mxu0 0.0
      %3642 = vmatprep.subr.mxu0 0.0
      %3643 = vmatpush1.msra.mxu0 0.0
      %3644 = vmatprep.subr.mxu0 0.0
      %3645 = vmatpush1.msra.mxu0 0.0
      %3646 = vmatprep.subr.mxu0 0.0
      %3647 = vmatpush1.msra.mxu0 0.0
      %3648 = vmatprep.subr.mxu0 0.0
      %3649 = vmatpush1.msra.mxu0 0.0
      %3650 = vmatprep.subr.mxu0 0.0
      %3651 = vmatpush1.msra.mxu0 0.0
      %3652 = vmatprep.mubr.f32.mxu0 0.0
      %3653 = vmatmul.mubr.f32.gmra.mrb[0].mxu0 %v3513
      %v3654 = vpop.f32.mrb[0].mxu0
      %v3655 = vadd.f32 0.0, %v3654
      %v3656 = vpop.f32.mrb[0].mxu0
      %3657 = vmatprep.mubr.f32.mxu0 0.0
      %3658 = vmatmul.mubr.f32.gmra.mrb[0].mxu0 %v3515
      %v3659 = vpop.f32.mrb[0].mxu0
      %v3660 = vadd.f32 0.0, %v3659
      %v3661 = vpop.f32.mrb[0].mxu0
      %3662 = vmatprep.mubr.f32.mxu0 0.0
      %3663 = vmatmul.mubr.f32.gmra.mrb[0].mxu0 %v3517
      %v3664 = vpop.f32.mrb[0].mxu0
      %v3665 = vadd.f32 0.0, %v3664
      %v3666 = vpop.f32.mrb[0].mxu0
      %3667 = vmatprep.mubr.f32.mxu0 0.0
      %3668 = vmatmul.mubr.f32.gmra.mrb[0].mxu0 %v3519
      %v3669 = vpop.f32.mrb[0].mxu0
      %v3670 = vadd.f32 0.0, %v3669
      %v3671 = vpop.f32.mrb[0].mxu0
      %3672 = vmatprep.mubr.f32.mxu0 0.0
      %3673 = vmatmul.mubr.f32.gmra.mrb[0].mxu0 %v3521
      %v3674 = vpop.f32.mrb[0].mxu0
      %v3675 = vadd.f32 0.0, %v3674
      %v3676 = vpop.f32.mrb[0].mxu0
      %3677 = vmatprep.mubr.f32.mxu0 0.0
      %3678 = vmatmul.mubr.f32.gmra.mrb[0].mxu0 %v3523
      %v3679 = vpop.f32.mrb[0].mxu0
      %v3680 = vadd.f32 0.0, %v3679
      %v3681 = vpop.f32.mrb[0].mxu0
      %3682 = vmatprep.mubr.f32.mxu0 0.0
      %3683 = vmatmul.mubr.f32.gmra.mrb[0].mxu0 %v3525
      %v3684 = vpop.f32.mrb[0].mxu0
      %v3685 = vadd.f32 0.0, %v3684
      %v3686 = vpop.f32.mrb[0].mxu0
      %3687 = vmatprep.mubr.f32.mxu0 0.0
      %3688 = vmatmul.mubr.f32.gmra.mrb[0].mxu0 %v3527
      %v3689 = vpop.f32.mrb[0].mxu0
      %v3690 = vadd.f32 0.0, %v3689
      %v3691 = vpop.f32.mrb[0].mxu0
      %3692 = vmatprep.mubr.f32.mxu0 0.0
      %3693 = vmatmul.mubr.f32.gmra.mrb[0].mxu0 %v3529
      %v3694 = vpop.f32.mrb[0].mxu0
      %v3695 = vadd.f32 0.0, %v3694
      %v3696 = vpop.f32.mrb[0].mxu0
      %3697 = vmatprep.mubr.f32.mxu0 0.0
      %3698 = vmatmul.mubr.f32.gmra.mrb[0].mxu0 %v3531
      %v3699 = vpop.f32.mrb[0].mxu0
      %v3700 = vadd.f32 0.0, %v3699
      %v3701 = vpop.f32.mrb[0].mxu0
      %3702 = vmatprep.mubr.f32.mxu0 0.0
      %3703 = vmatmul.mubr.f32.gmra.mrb[0].mxu0 %v3533
      %v3704 = vpop.f32.mrb[0].mxu0
      %v3705 = vadd.f32 0.0, %v3704
      %v3706 = vpop.f32.mrb[0].mxu0
      %3707 = vmatprep.mubr.f32.mxu0 0.0
      %3708 = vmatmul.mubr.f32.gmra.mrb[0].mxu0 %v3535
      %v3709 = vpop.f32.mrb[0].mxu0
      %v3710 = vadd.f32 0.0, %v3709
      %v3711 = vpop.f32.mrb[0].mxu0
      %3712 = vmatprep.mubr.f32.mxu0 0.0
      %3713 = vmatmul.mubr.f32.gmra.mrb[0].mxu0 %v3537
      %v3714 = vpop.f32.mrb[0].mxu0
      %v3715 = vadd.f32 0.0, %v3714
      %v3716 = vpop.f32.mrb[0].mxu0
      %3717 = vmatprep.mubr.f32.mxu0 0.0
      %3718 = vmatmul.mubr.f32.gmra.mrb[0].mxu0 %v3539
      %v3719 = vpop.f32.mrb[0].mxu0
      %v3720 = vadd.f32 0.0, %v3719
      %v3721 = vpop.f32.mrb[0].mxu0
      %3722 = vmatprep.mubr.f32.mxu0 0.0
      %3723 = vmatmul.mubr.f32.gmra.mrb[0].mxu0 %v3541
      %v3724 = vpop.f32.mrb[0].mxu0
      %v3725 = vadd.f32 0.0, %v3724
      %v3726 = vpop.f32.mrb[0].mxu0
      %3727 = vmatprep.mubr.f32.mxu0 0.0
      %3728 = vmatmul.mubr.f32.gmra.mrb[0].mxu0 %v3543
      %v3729 = vpop.f32.mrb[0].mxu0
      %v3730 = vadd.f32 0.0, %v3729
      %v3731 = vpop.f32.mrb[0].mxu0
      %3732 = vmatprep.mubr.f32.mxu0 0.0
      %3733 = vmatmul.mubr.f32.gmra.mrb[0].mxu0 %v3545
      %v3734 = vpop.f32.mrb[0].mxu0
      %v3735 = vadd.f32 0.0, %v3734
      %v3736 = vpop.f32.mrb[0].mxu0
      %3737 = vmatprep.mubr.f32.mxu0 0.0
      %3738 = vmatmul.mubr.f32.gmra.mrb[0].mxu0 %v3547
      %v3739 = vpop.f32.mrb[0].mxu0
      %v3740 = vadd.f32 0.0, %v3739
      %v3741 = vpop.f32.mrb[0].mxu0
      %3742 = vmatprep.mubr.f32.mxu0 0.0
      %3743 = vmatmul.mubr.f32.gmra.mrb[0].mxu0 %v3549
      %v3744 = vpop.f32.mrb[0].mxu0
      %v3745 = vadd.f32 0.0, %v3744
      %v3746 = vpop.f32.mrb[0].mxu0
      %3747 = vmatprep.mubr.f32.mxu0 0.0
      %3748 = vmatmul.mubr.f32.gmra.mrb[0].mxu0 %v3551
      %v3749 = vpop.f32.mrb[0].mxu0
      %v3750 = vadd.f32 0.0, %v3749
      %v3751 = vpop.f32.mrb[0].mxu0
      %3752 = vmatprep.mubr.f32.mxu0 0.0
      %3753 = vmatmul.mubr.f32.gmra.mrb[0].mxu0 %v3553
      %v3754 = vpop.f32.mrb[0].mxu0
      %v3755 = vadd.f32 0.0, %v3754
      %v3756 = vpop.f32.mrb[0].mxu0
      %3757 = vmatprep.mubr.f32.mxu0 0.0
      %3758 = vmatmul.mubr.f32.gmra.mrb[0].mxu0 %v3555
      %v3759 = vpop.f32.mrb[0].mxu0
      %v3760 = vadd.f32 0.0, %v3759
      %v3761 = vpop.f32.mrb[0].mxu0
      %3762 = vmatprep.mubr.f32.mxu0 0.0
      %3763 = vmatmul.mubr.f32.gmra.mrb[0].mxu0 %v3557
      %v3764 = vpop.f32.mrb[0].mxu0
      %v3765 = vadd.f32 0.0, %v3764
      %v3766 = vpop.f32.mrb[0].mxu0
      %3767 = vmatprep.mubr.f32.mxu0 0.0
      %3768 = vmatmul.mubr.f32.gmra.mrb[0].mxu0 %v3559
      %v3769 = vpop.f32.mrb[0].mxu0
      %v3770 = vadd.f32 0.0, %v3769
      %v3771 = vpop.f32.mrb[0].mxu0
      %3772 = vmatprep.mubr.f32.mxu0 0.0
      %3773 = vmatmul.mubr.f32.gmra.mrb[0].mxu0 %v3561
      %v3774 = vpop.f32.mrb[0].mxu0
      %v3775 = vadd.f32 0.0, %v3774
      %v3776 = vpop.f32.mrb[0].mxu0
      %3777 = vmatprep.mubr.f32.mxu0 0.0
      %3778 = vmatmul.mubr.f32.gmra.mrb[0].mxu0 %v3563
      %v3779 = vpop.f32.mrb[0].mxu0
      %v3780 = vadd.f32 0.0, %v3779
      %v3781 = vpop.f32.mrb[0].mxu0
      %3782 = vmatprep.mubr.f32.mxu0 0.0
      %3783 = vmatmul.mubr.f32.gmra.mrb[0].mxu0 %v3565
      %v3784 = vpop.f32.mrb[0].mxu0
      %v3785 = vadd.f32 0.0, %v3784
      %v3786 = vpop.f32.mrb[0].mxu0
      %3787 = vmatprep.mubr.f32.mxu0 0.0
      %3788 = vmatmul.mubr.f32.gmra.mrb[0].mxu0 %v3567
      %v3789 = vpop.f32.mrb[0].mxu0
      %v3790 = vadd.f32 0.0, %v3789
      %v3791 = vpop.f32.mrb[0].mxu0
      %3792 = vmatprep.mubr.f32.mxu0 0.0
      %3793 = vmatmul.mubr.f32.gmra.mrb[0].mxu0 %v3569
      %v3794 = vpop.f32.mrb[0].mxu0
      %v3795 = vadd.f32 0.0, %v3794
      %v3796 = vpop.f32.mrb[0].mxu0
      %3797 = vmatprep.mubr.f32.mxu0 0.0
      %3798 = vmatmul.mubr.f32.gmra.mrb[0].mxu0 %v3571
      %v3799 = vpop.f32.mrb[0].mxu0
      %v3800 = vadd.f32 0.0, %v3799
      %v3801 = vpop.f32.mrb[0].mxu0
      %3802 = vmatprep.mubr.f32.mxu0 0.0
      %3803 = vmatmul.mubr.f32.gmra.mrb[0].mxu0 %v3573
      %v3804 = vpop.f32.mrb[0].mxu0
      %v3805 = vadd.f32 0.0, %v3804
      %v3806 = vpop.f32.mrb[0].mxu0
      %3807 = vmatprep.mubr.f32.mxu0 0.0
      %3808 = vmatmul.mubr.f32.gmra.mrb[0].mxu0 %v3575
      %v3809 = vpop.f32.mrb[0].mxu0
      %v3810 = vadd.f32 0.0, %v3809
      %v3811 = vpop.f32.mrb[0].mxu0
      %3812 = vmatprep.mubr.f32.mxu0 0.0
      %3813 = vmatmul.mubr.f32.gmra.mrb[0].mxu0 %v3577
      %v3814 = vpop.f32.mrb[0].mxu0
      %v3815 = vadd.f32 0.0, %v3814
      %v3816 = vpop.f32.mrb[0].mxu0
      %3817 = vmatprep.mubr.f32.mxu0 0.0
      %3818 = vmatmul.mubr.f32.gmra.mrb[0].mxu0 %v3579
      %v3819 = vpop.f32.mrb[0].mxu0
      %v3820 = vadd.f32 0.0, %v3819
      %v3821 = vpop.f32.mrb[0].mxu0
      %3822 = vmatprep.mubr.f32.mxu0 0.0
      %3823 = vmatmul.mubr.f32.gmra.mrb[0].mxu0 %v3581
      %v3824 = vpop.f32.mrb[0].mxu0
      %v3825 = vadd.f32 0.0, %v3824
      %v3826 = vpop.f32.mrb[0].mxu0
      %3827 = vmatprep.mubr.f32.mxu0 0.0
      %3828 = vmatmul.mubr.f32.gmra.mrb[0].mxu0 %v3583
      %v3829 = vpop.f32.mrb[0].mxu0
      %v3830 = vadd.f32 0.0, %v3829
      %v3831 = vpop.f32.mrb[0].mxu0
      %3832 = vdwg.mxu0
      %v3833 = vadd.f32 %v3402, %v3655
      %v3834 = vadd.f32 %v3403, %v3660
      %v3835 = vadd.f32 %v3404, %v3665
      %v3836 = vadd.f32 %v3405, %v3670
      %v3837 = vadd.f32 %v3406, %v3675
      %v3838 = vadd.f32 %v3407, %v3680
      %v3839 = vadd.f32 %v3408, %v3685
      %v3840 = vadd.f32 %v3409, %v3690
      %v3841 = vadd.f32 %v3410, %v3695
      %v3842 = vadd.f32 %v3411, %v3700
      %v3843 = vadd.f32 %v3412, %v3705
      %v3844 = vadd.f32 %v3413, %v3710
      %v3845 = vadd.f32 %v3414, %v3715
      %v3846 = vadd.f32 %v3415, %v3720
      %v3847 = vadd.f32 %v3416, %v3725
      %v3848 = vadd.f32 %v3417, %v3730
      %v3849 = vadd.f32 %v3418, %v3735
      %v3850 = vadd.f32 %v3419, %v3740
      %v3851 = vadd.f32 %v3420, %v3745
      %v3852 = vadd.f32 %v3421, %v3750
      %v3853 = vadd.f32 %v3422, %v3755
      %v3854 = vadd.f32 %v3423, %v3760
      %v3855 = vadd.f32 %v3424, %v3765
      %v3856 = vadd.f32 %v3425, %v3770
      %v3857 = vadd.f32 %v3426, %v3775
      %v3858 = vadd.f32 %v3427, %v3780
      %v3859 = vadd.f32 %v3428, %v3785
      %v3860 = vadd.f32 %v3429, %v3790
      %v3861 = vadd.f32 %v3430, %v3795
      %v3862 = vadd.f32 %v3431, %v3800
      %v3863 = vadd.f32 %v3432, %v3805
      %v3864 = vadd.f32 %v3433, %v3810
      %v3865 = vadd.f32 %v3434, %v3815
      %v3866 = vadd.f32 %v3435, %v3820
      %v3867 = vadd.f32 %v3436, %v3825
      %v3868 = vadd.f32 %v3437, %v3830
      %3869 = vst.msk [vmem:[#allocation2] sm:$0xff] %vm612, %v3833
      %3870 = vst.msk [vmem:[#allocation2 + $0x8] sm:$0xff] %vm612, %v3834
      %3871 = vst.msk [vmem:[#allocation2 + $0x10] sm:$0xff] %vm612, %v3835
      %3872 = vst.msk [vmem:[#allocation2 + $0x18] sm:$0xff] %vm612, %v3836
      %3873 = vst.msk [vmem:[#allocation2 + $0x20] sm:$0xff] %vm612, %v3837
      %3874 = vst.msk [vmem:[#allocation2 + $0x28] sm:$0xff] %vm612, %v3838
      %3875 = vst.msk [vmem:[#allocation2 + $0x30] sm:$0xff] %vm612, %v3839
      %3876 = vst.msk [vmem:[#allocation2 + $0x38] sm:$0xff] %vm612, %v3840
      %3877 = vst.msk [vmem:[#allocation2 + $0x40] sm:$0xff] %vm612, %v3841
      %3878 = vst.msk [vmem:[#allocation2 + $0x48] sm:$0xff] %vm612, %v3842
      %3879 = vst.msk [vmem:[#allocation2 + $0x50] sm:$0xff] %vm612, %v3843
      %3880 = vst.msk [vmem:[#allocation2 + $0x58] sm:$0xff] %vm612, %v3844
      %3881 = vst.msk [vmem:[#allocation2 + $0x60] sm:$0xff] %vm612, %v3845
      %3882 = vst.msk [vmem:[#allocation2 + $0x68] sm:$0xff] %vm612, %v3846
      %3883 = vst.msk [vmem:[#allocation2 + $0x70] sm:$0xff] %vm612, %v3847
      %3884 = vst.msk [vmem:[#allocation2 + $0x78] sm:$0xff] %vm612, %v3848
      %3885 = vst.msk [vmem:[#allocation2 + $0x80] sm:$0xff] %vm612, %v3849
      %3886 = vst.msk [vmem:[#allocation2 + $0x88] sm:$0xff] %vm612, %v3850
      %3887 = vst.msk [vmem:[#allocation2 + $0x90] sm:$0xff] %vm612, %v3851
      %3888 = vst.msk [vmem:[#allocation2 + $0x98] sm:$0xff] %vm612, %v3852
      %3889 = vst.msk [vmem:[#allocation2 + $0xa0] sm:$0xff] %vm612, %v3853
      %3890 = vst.msk [vmem:[#allocation2 + $0xa8] sm:$0xff] %vm612, %v3854
      %3891 = vst.msk [vmem:[#allocation2 + $0xb0] sm:$0xff] %vm612, %v3855
      %3892 = vst.msk [vmem:[#allocation2 + $0xb8] sm:$0xff] %vm612, %v3856
      %3893 = vst.msk [vmem:[#allocation2 + $0xc0] sm:$0xff] %vm612, %v3857
      %3894 = vst.msk [vmem:[#allocation2 + $0xc8] sm:$0xff] %vm612, %v3858
      %3895 = vst.msk [vmem:[#allocation2 + $0xd0] sm:$0xff] %vm612, %v3859
      %3896 = vst.msk [vmem:[#allocation2 + $0xd8] sm:$0xff] %vm612, %v3860
      %3897 = vst.msk [vmem:[#allocation2 + $0xe0] sm:$0xff] %vm612, %v3861
      %3898 = vst.msk [vmem:[#allocation2 + $0xe8] sm:$0xff] %vm612, %v3862
      %3899 = vst.msk [vmem:[#allocation2 + $0xf0] sm:$0xff] %vm612, %v3863
      %3900 = vst.msk [vmem:[#allocation2 + $0xf8] sm:$0xff] %vm612, %v3864
      %3901 = vst.msk [vmem:[#allocation2 + $0x100] sm:$0xff] %vm612, %v3865
      %3902 = vst.msk [vmem:[#allocation2 + $0x108] sm:$0xff] %vm612, %v3866
      %3903 = vst.msk [vmem:[#allocation2 + $0x110] sm:$0xff] %vm612, %v3867
      %3904 = vst.msk [vmem:[#allocation2 + $0x118] sm:$0xff] %vm612, %v3868
      %v3905 = vld [vmem:[#allocation2] sm:$0xff]
      %v3906 = vld [vmem:[#allocation2 + $0x8] sm:$0xff]
      %v3907 = vld [vmem:[#allocation2 + $0x10] sm:$0xff]
      %v3908 = vld [vmem:[#allocation2 + $0x18] sm:$0xff]
      %v3909 = vld [vmem:[#allocation2 + $0x20] sm:$0xff]
      %v3910 = vld [vmem:[#allocation2 + $0x28] sm:$0xff]
      %v3911 = vld [vmem:[#allocation2 + $0x30] sm:$0xff]
      %v3912 = vld [vmem:[#allocation2 + $0x38] sm:$0xff]
      %v3913 = vld [vmem:[#allocation2 + $0x40] sm:$0xff]
      %v3914 = vld [vmem:[#allocation2 + $0x48] sm:$0xff]
      %v3915 = vld [vmem:[#allocation2 + $0x50] sm:$0xff]
      %v3916 = vld [vmem:[#allocation2 + $0x58] sm:$0xff]
      %v3917 = vld [vmem:[#allocation2 + $0x60] sm:$0xff]
      %v3918 = vld [vmem:[#allocation2 + $0x68] sm:$0xff]
      %v3919 = vld [vmem:[#allocation2 + $0x70] sm:$0xff]
      %v3920 = vld [vmem:[#allocation2 + $0x78] sm:$0xff]
      %v3921 = vld [vmem:[#allocation2 + $0x80] sm:$0xff]
      %v3922 = vld [vmem:[#allocation2 + $0x88] sm:$0xff]
      %v3923 = vld [vmem:[#allocation2 + $0x90] sm:$0xff]
      %v3924 = vld [vmem:[#allocation2 + $0x98] sm:$0xff]
      %v3925 = vld [vmem:[#allocation2 + $0xa0] sm:$0xff]
      %v3926 = vld [vmem:[#allocation2 + $0xa8] sm:$0xff]
      %v3927 = vld [vmem:[#allocation2 + $0xb0] sm:$0xff]
      %v3928 = vld [vmem:[#allocation2 + $0xb8] sm:$0xff]
      %v3929 = vld [vmem:[#allocation2 + $0xc0] sm:$0xff]
      %v3930 = vld [vmem:[#allocation2 + $0xc8] sm:$0xff]
      %v3931 = vld [vmem:[#allocation2 + $0xd0] sm:$0xff]
      %v3932 = vld [vmem:[#allocation2 + $0xd8] sm:$0xff]
      %v3933 = vld [vmem:[#allocation2 + $0xe0] sm:$0xff]
      %v3934 = vld [vmem:[#allocation2 + $0xe8] sm:$0xff]
      %v3935 = vld [vmem:[#allocation2 + $0xf0] sm:$0xff]
      %v3936 = vld [vmem:[#allocation2 + $0xf8] sm:$0xff]
      %v3937 = vld [vmem:[#allocation2 + $0x100] sm:$0xff]
      %v3938 = vld [vmem:[#allocation2 + $0x108] sm:$0xff]
      %v3939 = vld [vmem:[#allocation2 + $0x110] sm:$0xff]
      %v3940 = vld [vmem:[#allocation2 + $0x118] sm:$0xff]
      %s3941 = scalar_lea.vmem %s1, 32
      %v3942 = vld [vmem:[%s3941] sm:$0x7]
      %vm3943 = vcmask 1041408
      %v3944 = vrot.slane %v216, 6
      %v3945 = vrot.slane %v217, 6
      %v3946 = vsel %vm3943, %v3944, %v3945
      %v3947 = vrot.slane %v218, 6
      %v3948 = vsel %vm3943, %v3945, %v3947
      %v3949 = vrot.slane %v219, 6
      %v3950 = vsel %vm3943, %v3947, %v3949
      %v3951 = vrot.slane %v220, 6
      %v3952 = vsel %vm3943, %v3949, %v3951
      %v3953 = vrot.slane %v221, 6
      %v3954 = vsel %vm3943, %v3951, %v3953
      %v3955 = vrot.slane %v222, 6
      %v3956 = vsel %vm3943, %v3953, %v3955
      %v3957 = vrot.slane %v223, 6
      %v3958 = vsel %vm3943, %v3955, %v3957
      %v3959 = vrot.slane %v224, 6
      %v3960 = vsel %vm3943, %v3957, %v3959
      %v3961 = vrot.slane %v225, 6
      %v3962 = vsel %vm3943, %v3959, %v3961
      %v3963 = vrot.slane %v226, 6
      %v3964 = vsel %vm3943, %v3961, %v3963
      %v3965 = vrot.slane %v227, 6
      %v3966 = vsel %vm3943, %v3963, %v3965
      %v3967 = vrot.slane %v228, 6
      %v3968 = vsel %vm3943, %v3965, %v3967
      %v3969 = vrot.slane %v229, 6
      %v3970 = vsel %vm3943, %v3967, %v3969
      %v3971 = vrot.slane %v230, 6
      %v3972 = vsel %vm3943, %v3969, %v3971
      %v3973 = vrot.slane %v231, 6
      %v3974 = vsel %vm3943, %v3971, %v3973
      %v3975 = vrot.slane %v232, 6
      %v3976 = vsel %vm3943, %v3973, %v3975
      %v3977 = vrot.slane %v233, 6
      %v3978 = vsel %vm3943, %v3975, %v3977
      %v3979 = vrot.slane %v234, 6
      %v3980 = vsel %vm3943, %v3977, %v3979
      %v3981 = vrot.slane %v235, 6
      %v3982 = vsel %vm3943, %v3979, %v3981
      %v3983 = vrot.slane %v236, 6
      %v3984 = vsel %vm3943, %v3981, %v3983
      %v3985 = vrot.slane %v237, 6
      %v3986 = vsel %vm3943, %v3983, %v3985
      %v3987 = vrot.slane %v238, 6
      %v3988 = vsel %vm3943, %v3985, %v3987
      %v3989 = vrot.slane %v239, 6
      %v3990 = vsel %vm3943, %v3987, %v3989
      %v3991 = vrot.slane %v240, 6
      %v3992 = vsel %vm3943, %v3989, %v3991
      %v3993 = vrot.slane %v241, 6
      %v3994 = vsel %vm3943, %v3991, %v3993
      %v3995 = vrot.slane %v242, 6
      %v3996 = vsel %vm3943, %v3993, %v3995
      %v3997 = vrot.slane %v243, 6
      %v3998 = vsel %vm3943, %v3995, %v3997
      %v3999 = vrot.slane %v244, 6
      %v4000 = vsel %vm3943, %v3997, %v3999
      %v4001 = vrot.slane %v245, 6
      %v4002 = vsel %vm3943, %v3999, %v4001
      %v4003 = vrot.slane %v246, 6
      %v4004 = vsel %vm3943, %v4001, %v4003
      %v4005 = vrot.slane %v247, 6
      %v4006 = vsel %vm3943, %v4003, %v4005
      %v4007 = vrot.slane %v248, 6
      %v4008 = vsel %vm3943, %v4005, %v4007
      %v4009 = vrot.slane %v249, 6
      %v4010 = vsel %vm3943, %v4007, %v4009
      %v4011 = vrot.slane %v250, 6
      %v4012 = vsel %vm3943, %v4009, %v4011
      %v4013 = vrot.slane %v251, 6
      %v4014 = vsel %vm3943, %v4011, %v4013
      %v4015 = vrot.slane %v252, 6
      %v4016 = vsel %vm3943, %v4013, %v4015
      %v4017 = vsel %vm254, %v3946, 0
      %v4019 = vsel %vm254, %v3948, 0
      %v4021 = vsel %vm254, %v3950, 0
      %v4023 = vsel %vm254, %v3952, 0
      %v4025 = vsel %vm254, %v3954, 0
      %v4027 = vsel %vm254, %v3956, 0
      %v4029 = vsel %vm254, %v3958, 0
      %v4031 = vsel %vm254, %v3960, 0
      %v4033 = vsel %vm254, %v3962, 0
      %v4035 = vsel %vm254, %v3964, 0
      %v4037 = vsel %vm254, %v3966, 0
      %v4039 = vsel %vm254, %v3968, 0
      %v4041 = vsel %vm254, %v3970, 0
      %v4043 = vsel %vm254, %v3972, 0
      %v4045 = vsel %vm254, %v3974, 0
      %v4047 = vsel %vm254, %v3976, 0
      %v4049 = vsel %vm254, %v3978, 0
      %v4051 = vsel %vm254, %v3980, 0
      %v4053 = vsel %vm254, %v3982, 0
      %v4055 = vsel %vm254, %v3984, 0
      %v4057 = vsel %vm254, %v3986, 0
      %v4059 = vsel %vm254, %v3988, 0
      %v4061 = vsel %vm254, %v3990, 0
      %v4063 = vsel %vm254, %v3992, 0
      %v4065 = vsel %vm254, %v3994, 0
      %v4067 = vsel %vm254, %v3996, 0
      %v4069 = vsel %vm254, %v3998, 0
      %v4071 = vsel %vm254, %v4000, 0
      %v4073 = vsel %vm254, %v4002, 0
      %v4075 = vsel %vm254, %v4004, 0
      %v4077 = vsel %vm254, %v4006, 0
      %v4079 = vsel %vm254, %v4008, 0
      %v4081 = vsel %vm254, %v4010, 0
      %v4083 = vsel %vm254, %v4012, 0
      %v4085 = vsel %vm254, %v4014, 0
      %v4087 = vsel %vm254, %v4016, 0
      %v4090 = vsel %vm363, %v3942, 0
      %4092 = vmatprep.subr.mxu0 0.0
      %4093 = vmatpush1.msra.mxu0 %v4090
      %4094 = vmatprep.subr.mxu0 0.0
      %4095 = vmatpush1.msra.mxu0 0.0
      %4096 = vmatprep.subr.mxu0 0.0
      %4097 = vmatpush1.msra.mxu0 0.0
      %4098 = vmatprep.subr.mxu0 0.0
      %4099 = vmatpush1.msra.mxu0 0.0
      %4100 = vmatprep.subr.mxu0 0.0
      %4101 = vmatpush1.msra.mxu0 0.0
      %4102 = vmatprep.subr.mxu0 0.0
      %4103 = vmatpush1.msra.mxu0 0.0
      %4104 = vmatprep.subr.mxu0 0.0
      %4105 = vmatpush1.msra.mxu0 0.0
      %4106 = vmatprep.subr.mxu0 0.0
      %4107 = vmatpush1.msra.mxu0 0.0
      %4108 = vmatprep.subr.mxu0 0.0
      %4109 = vmatpush1.msra.mxu0 0.0
      %4110 = vmatprep.subr.mxu0 0.0
      %4111 = vmatpush1.msra.mxu0 0.0
      %4112 = vmatprep.subr.mxu0 0.0
      %4113 = vmatpush1.msra.mxu0 0.0
      %4114 = vmatprep.subr.mxu0 0.0
      %4115 = vmatpush1.msra.mxu0 0.0
      %4116 = vmatprep.subr.mxu0 0.0
      %4117 = vmatpush1.msra.mxu0 0.0
      %4118 = vmatprep.subr.mxu0 0.0
      %4119 = vmatpush1.msra.mxu0 0.0
      %4120 = vmatprep.subr.mxu0 0.0
      %4121 = vmatpush1.msra.mxu0 0.0
      %4122 = vmatprep.subr.mxu0 0.0
      %4123 = vmatpush1.msra.mxu0 0.0
      %4124 = vmatprep.subr.mxu0 0.0
      %4125 = vmatpush1.msra.mxu0 0.0
      %4126 = vmatprep.subr.mxu0 0.0
      %4127 = vmatpush1.msra.mxu0 0.0
      %4128 = vmatprep.subr.mxu0 0.0
      %4129 = vmatpush1.msra.mxu0 0.0
      %4130 = vmatprep.subr.mxu0 0.0
      %4131 = vmatpush1.msra.mxu0 0.0
      %4132 = vmatprep.subr.mxu0 0.0
      %4133 = vmatpush1.msra.mxu0 0.0
      %4134 = vmatprep.subr.mxu0 0.0
      %4135 = vmatpush1.msra.mxu0 0.0
      %4136 = vmatprep.subr.mxu0 0.0
      %4137 = vmatpush1.msra.mxu0 0.0
      %4138 = vmatprep.subr.mxu0 0.0
      %4139 = vmatpush1.msra.mxu0 0.0
      %4140 = vmatprep.subr.mxu0 0.0
      %4141 = vmatpush1.msra.mxu0 0.0
      %4142 = vmatprep.subr.mxu0 0.0
      %4143 = vmatpush1.msra.mxu0 0.0
      %4144 = vmatprep.subr.mxu0 0.0
      %4145 = vmatpush1.msra.mxu0 0.0
      %4146 = vmatprep.subr.mxu0 0.0
      %4147 = vmatpush1.msra.mxu0 0.0
      %4148 = vmatprep.subr.mxu0 0.0
      %4149 = vmatpush1.msra.mxu0 0.0
      %4150 = vmatprep.subr.mxu0 0.0
      %4151 = vmatpush1.msra.mxu0 0.0
      %4152 = vmatprep.subr.mxu0 0.0
      %4153 = vmatpush1.msra.mxu0 0.0
      %4154 = vmatprep.subr.mxu0 0.0
      %4155 = vmatpush1.msra.mxu0 0.0
      %4156 = vmatprep.mubr.f32.mxu0 0.0
      %4157 = vmatmul.mubr.f32.gmra.mrb[0].mxu0 %v4017
      %v4158 = vpop.f32.mrb[0].mxu0
      %v4159 = vadd.f32 0.0, %v4158
      %v4160 = vpop.f32.mrb[0].mxu0
      %4161 = vmatprep.mubr.f32.mxu0 0.0
      %4162 = vmatmul.mubr.f32.gmra.mrb[0].mxu0 %v4019
      %v4163 = vpop.f32.mrb[0].mxu0
      %v4164 = vadd.f32 0.0, %v4163
      %v4165 = vpop.f32.mrb[0].mxu0
      %4166 = vmatprep.mubr.f32.mxu0 0.0
      %4167 = vmatmul.mubr.f32.gmra.mrb[0].mxu0 %v4021
      %v4168 = vpop.f32.mrb[0].mxu0
      %v4169 = vadd.f32 0.0, %v4168
      %v4170 = vpop.f32.mrb[0].mxu0
      %4171 = vmatprep.mubr.f32.mxu0 0.0
      %4172 = vmatmul.mubr.f32.gmra.mrb[0].mxu0 %v4023
      %v4173 = vpop.f32.mrb[0].mxu0
      %v4174 = vadd.f32 0.0, %v4173
      %v4175 = vpop.f32.mrb[0].mxu0
      %4176 = vmatprep.mubr.f32.mxu0 0.0
      %4177 = vmatmul.mubr.f32.gmra.mrb[0].mxu0 %v4025
      %v4178 = vpop.f32.mrb[0].mxu0
      %v4179 = vadd.f32 0.0, %v4178
      %v4180 = vpop.f32.mrb[0].mxu0
      %4181 = vmatprep.mubr.f32.mxu0 0.0
      %4182 = vmatmul.mubr.f32.gmra.mrb[0].mxu0 %v4027
      %v4183 = vpop.f32.mrb[0].mxu0
      %v4184 = vadd.f32 0.0, %v4183
      %v4185 = vpop.f32.mrb[0].mxu0
      %4186 = vmatprep.mubr.f32.mxu0 0.0
      %4187 = vmatmul.mubr.f32.gmra.mrb[0].mxu0 %v4029
      %v4188 = vpop.f32.mrb[0].mxu0
      %v4189 = vadd.f32 0.0, %v4188
      %v4190 = vpop.f32.mrb[0].mxu0
      %4191 = vmatprep.mubr.f32.mxu0 0.0
      %4192 = vmatmul.mubr.f32.gmra.mrb[0].mxu0 %v4031
      %v4193 = vpop.f32.mrb[0].mxu0
      %v4194 = vadd.f32 0.0, %v4193
      %v4195 = vpop.f32.mrb[0].mxu0
      %4196 = vmatprep.mubr.f32.mxu0 0.0
      %4197 = vmatmul.mubr.f32.gmra.mrb[0].mxu0 %v4033
      %v4198 = vpop.f32.mrb[0].mxu0
      %v4199 = vadd.f32 0.0, %v4198
      %v4200 = vpop.f32.mrb[0].mxu0
      %4201 = vmatprep.mubr.f32.mxu0 0.0
      %4202 = vmatmul.mubr.f32.gmra.mrb[0].mxu0 %v4035
      %v4203 = vpop.f32.mrb[0].mxu0
      %v4204 = vadd.f32 0.0, %v4203
      %v4205 = vpop.f32.mrb[0].mxu0
      %4206 = vmatprep.mubr.f32.mxu0 0.0
      %4207 = vmatmul.mubr.f32.gmra.mrb[0].mxu0 %v4037
      %v4208 = vpop.f32.mrb[0].mxu0
      %v4209 = vadd.f32 0.0, %v4208
      %v4210 = vpop.f32.mrb[0].mxu0
      %4211 = vmatprep.mubr.f32.mxu0 0.0
      %4212 = vmatmul.mubr.f32.gmra.mrb[0].mxu0 %v4039
      %v4213 = vpop.f32.mrb[0].mxu0
      %v4214 = vadd.f32 0.0, %v4213
      %v4215 = vpop.f32.mrb[0].mxu0
      %4216 = vmatprep.mubr.f32.mxu0 0.0
      %4217 = vmatmul.mubr.f32.gmra.mrb[0].mxu0 %v4041
      %v4218 = vpop.f32.mrb[0].mxu0
      %v4219 = vadd.f32 0.0, %v4218
      %v4220 = vpop.f32.mrb[0].mxu0
      %4221 = vmatprep.mubr.f32.mxu0 0.0
      %4222 = vmatmul.mubr.f32.gmra.mrb[0].mxu0 %v4043
      %v4223 = vpop.f32.mrb[0].mxu0
      %v4224 = vadd.f32 0.0, %v4223
      %v4225 = vpop.f32.mrb[0].mxu0
      %4226 = vmatprep.mubr.f32.mxu0 0.0
      %4227 = vmatmul.mubr.f32.gmra.mrb[0].mxu0 %v4045
      %v4228 = vpop.f32.mrb[0].mxu0
      %v4229 = vadd.f32 0.0, %v4228
      %v4230 = vpop.f32.mrb[0].mxu0
      %4231 = vmatprep.mubr.f32.mxu0 0.0
      %4232 = vmatmul.mubr.f32.gmra.mrb[0].mxu0 %v4047
      %v4233 = vpop.f32.mrb[0].mxu0
      %v4234 = vadd.f32 0.0, %v4233
      %v4235 = vpop.f32.mrb[0].mxu0
      %4236 = vmatprep.mubr.f32.mxu0 0.0
      %4237 = vmatmul.mubr.f32.gmra.mrb[0].mxu0 %v4049
      %v4238 = vpop.f32.mrb[0].mxu0
      %v4239 = vadd.f32 0.0, %v4238
      %v4240 = vpop.f32.mrb[0].mxu0
      %4241 = vmatprep.mubr.f32.mxu0 0.0
      %4242 = vmatmul.mubr.f32.gmra.mrb[0].mxu0 %v4051
      %v4243 = vpop.f32.mrb[0].mxu0
      %v4244 = vadd.f32 0.0, %v4243
      %v4245 = vpop.f32.mrb[0].mxu0
      %4246 = vmatprep.mubr.f32.mxu0 0.0
      %4247 = vmatmul.mubr.f32.gmra.mrb[0].mxu0 %v4053
      %v4248 = vpop.f32.mrb[0].mxu0
      %v4249 = vadd.f32 0.0, %v4248
      %v4250 = vpop.f32.mrb[0].mxu0
      %4251 = vmatprep.mubr.f32.mxu0 0.0
      %4252 = vmatmul.mubr.f32.gmra.mrb[0].mxu0 %v4055
      %v4253 = vpop.f32.mrb[0].mxu0
      %v4254 = vadd.f32 0.0, %v4253
      %v4255 = vpop.f32.mrb[0].mxu0
      %4256 = vmatprep.mubr.f32.mxu0 0.0
      %4257 = vmatmul.mubr.f32.gmra.mrb[0].mxu0 %v4057
      %v4258 = vpop.f32.mrb[0].mxu0
      %v4259 = vadd.f32 0.0, %v4258
      %v4260 = vpop.f32.mrb[0].mxu0
      %4261 = vmatprep.mubr.f32.mxu0 0.0
      %4262 = vmatmul.mubr.f32.gmra.mrb[0].mxu0 %v4059
      %v4263 = vpop.f32.mrb[0].mxu0
      %v4264 = vadd.f32 0.0, %v4263
      %v4265 = vpop.f32.mrb[0].mxu0
      %4266 = vmatprep.mubr.f32.mxu0 0.0
      %4267 = vmatmul.mubr.f32.gmra.mrb[0].mxu0 %v4061
      %v4268 = vpop.f32.mrb[0].mxu0
      %v4269 = vadd.f32 0.0, %v4268
      %v4270 = vpop.f32.mrb[0].mxu0
      %4271 = vmatprep.mubr.f32.mxu0 0.0
      %4272 = vmatmul.mubr.f32.gmra.mrb[0].mxu0 %v4063
      %v4273 = vpop.f32.mrb[0].mxu0
      %v4274 = vadd.f32 0.0, %v4273
      %v4275 = vpop.f32.mrb[0].mxu0
      %4276 = vmatprep.mubr.f32.mxu0 0.0
      %4277 = vmatmul.mubr.f32.gmra.mrb[0].mxu0 %v4065
      %v4278 = vpop.f32.mrb[0].mxu0
      %v4279 = vadd.f32 0.0, %v4278
      %v4280 = vpop.f32.mrb[0].mxu0
      %4281 = vmatprep.mubr.f32.mxu0 0.0
      %4282 = vmatmul.mubr.f32.gmra.mrb[0].mxu0 %v4067
      %v4283 = vpop.f32.mrb[0].mxu0
      %v4284 = vadd.f32 0.0, %v4283
      %v4285 = vpop.f32.mrb[0].mxu0
      %4286 = vmatprep.mubr.f32.mxu0 0.0
      %4287 = vmatmul.mubr.f32.gmra.mrb[0].mxu0 %v4069
      %v4288 = vpop.f32.mrb[0].mxu0
      %v4289 = vadd.f32 0.0, %v4288
      %v4290 = vpop.f32.mrb[0].mxu0
      %4291 = vmatprep.mubr.f32.mxu0 0.0
      %4292 = vmatmul.mubr.f32.gmra.mrb[0].mxu0 %v4071
      %v4293 = vpop.f32.mrb[0].mxu0
      %v4294 = vadd.f32 0.0, %v4293
      %v4295 = vpop.f32.mrb[0].mxu0
      %4296 = vmatprep.mubr.f32.mxu0 0.0
      %4297 = vmatmul.mubr.f32.gmra.mrb[0].mxu0 %v4073
      %v4298 = vpop.f32.mrb[0].mxu0
      %v4299 = vadd.f32 0.0, %v4298
      %v4300 = vpop.f32.mrb[0].mxu0
      %4301 = vmatprep.mubr.f32.mxu0 0.0
      %4302 = vmatmul.mubr.f32.gmra.mrb[0].mxu0 %v4075
      %v4303 = vpop.f32.mrb[0].mxu0
      %v4304 = vadd.f32 0.0, %v4303
      %v4305 = vpop.f32.mrb[0].mxu0
      %4306 = vmatprep.mubr.f32.mxu0 0.0
      %4307 = vmatmul.mubr.f32.gmra.mrb[0].mxu0 %v4077
      %v4308 = vpop.f32.mrb[0].mxu0
      %v4309 = vadd.f32 0.0, %v4308
      %v4310 = vpop.f32.mrb[0].mxu0
      %4311 = vmatprep.mubr.f32.mxu0 0.0
      %4312 = vmatmul.mubr.f32.gmra.mrb[0].mxu0 %v4079
      %v4313 = vpop.f32.mrb[0].mxu0
      %v4314 = vadd.f32 0.0, %v4313
      %v4315 = vpop.f32.mrb[0].mxu0
      %4316 = vmatprep.mubr.f32.mxu0 0.0
      %4317 = vmatmul.mubr.f32.gmra.mrb[0].mxu0 %v4081
      %v4318 = vpop.f32.mrb[0].mxu0
      %v4319 = vadd.f32 0.0, %v4318
      %v4320 = vpop.f32.mrb[0].mxu0
      %4321 = vmatprep.mubr.f32.mxu0 0.0
      %4322 = vmatmul.mubr.f32.gmra.mrb[0].mxu0 %v4083
      %v4323 = vpop.f32.mrb[0].mxu0
      %v4324 = vadd.f32 0.0, %v4323
      %v4325 = vpop.f32.mrb[0].mxu0
      %4326 = vmatprep.mubr.f32.mxu0 0.0
      %4327 = vmatmul.mubr.f32.gmra.mrb[0].mxu0 %v4085
      %v4328 = vpop.f32.mrb[0].mxu0
      %v4329 = vadd.f32 0.0, %v4328
      %v4330 = vpop.f32.mrb[0].mxu0
      %4331 = vmatprep.mubr.f32.mxu0 0.0
      %4332 = vmatmul.mubr.f32.gmra.mrb[0].mxu0 %v4087
      %v4333 = vpop.f32.mrb[0].mxu0
      %v4334 = vadd.f32 0.0, %v4333
      %v4335 = vpop.f32.mrb[0].mxu0
      %4336 = vdwg.mxu0
      %v4337 = vadd.f32 %v3905, %v4159
      %v4338 = vadd.f32 %v3906, %v4164
      %v4339 = vadd.f32 %v3907, %v4169
      %v4340 = vadd.f32 %v3908, %v4174
      %v4341 = vadd.f32 %v3909, %v4179
      %v4342 = vadd.f32 %v3910, %v4184
      %v4343 = vadd.f32 %v3911, %v4189
      %v4344 = vadd.f32 %v3912, %v4194
      %v4345 = vadd.f32 %v3913, %v4199
      %v4346 = vadd.f32 %v3914, %v4204
      %v4347 = vadd.f32 %v3915, %v4209
      %v4348 = vadd.f32 %v3916, %v4214
      %v4349 = vadd.f32 %v3917, %v4219
      %v4350 = vadd.f32 %v3918, %v4224
      %v4351 = vadd.f32 %v3919, %v4229
      %v4352 = vadd.f32 %v3920, %v4234
      %v4353 = vadd.f32 %v3921, %v4239
      %v4354 = vadd.f32 %v3922, %v4244
      %v4355 = vadd.f32 %v3923, %v4249
      %v4356 = vadd.f32 %v3924, %v4254
      %v4357 = vadd.f32 %v3925, %v4259
      %v4358 = vadd.f32 %v3926, %v4264
      %v4359 = vadd.f32 %v3927, %v4269
      %v4360 = vadd.f32 %v3928, %v4274
      %v4361 = vadd.f32 %v3929, %v4279
      %v4362 = vadd.f32 %v3930, %v4284
      %v4363 = vadd.f32 %v3931, %v4289
      %v4364 = vadd.f32 %v3932, %v4294
      %v4365 = vadd.f32 %v3933, %v4299
      %v4366 = vadd.f32 %v3934, %v4304
      %v4367 = vadd.f32 %v3935, %v4309
      %v4368 = vadd.f32 %v3936, %v4314
      %v4369 = vadd.f32 %v3937, %v4319
      %v4370 = vadd.f32 %v3938, %v4324
      %v4371 = vadd.f32 %v3939, %v4329
      %v4372 = vadd.f32 %v3940, %v4334
      %4373 = vst.msk [vmem:[#allocation2] sm:$0xff] %vm612, %v4337
      %4374 = vst.msk [vmem:[#allocation2 + $0x8] sm:$0xff] %vm612, %v4338
      %4375 = vst.msk [vmem:[#allocation2 + $0x10] sm:$0xff] %vm612, %v4339
      %4376 = vst.msk [vmem:[#allocation2 + $0x18] sm:$0xff] %vm612, %v4340
      %4377 = vst.msk [vmem:[#allocation2 + $0x20] sm:$0xff] %vm612, %v4341
      %4378 = vst.msk [vmem:[#allocation2 + $0x28] sm:$0xff] %vm612, %v4342
      %4379 = vst.msk [vmem:[#allocation2 + $0x30] sm:$0xff] %vm612, %v4343
      %4380 = vst.msk [vmem:[#allocation2 + $0x38] sm:$0xff] %vm612, %v4344
      %4381 = vst.msk [vmem:[#allocation2 + $0x40] sm:$0xff] %vm612, %v4345
      %4382 = vst.msk [vmem:[#allocation2 + $0x48] sm:$0xff] %vm612, %v4346
      %4383 = vst.msk [vmem:[#allocation2 + $0x50] sm:$0xff] %vm612, %v4347
      %4384 = vst.msk [vmem:[#allocation2 + $0x58] sm:$0xff] %vm612, %v4348
      %4385 = vst.msk [vmem:[#allocation2 + $0x60] sm:$0xff] %vm612, %v4349
      %4386 = vst.msk [vmem:[#allocation2 + $0x68] sm:$0xff] %vm612, %v4350
      %4387 = vst.msk [vmem:[#allocation2 + $0x70] sm:$0xff] %vm612, %v4351
      %4388 = vst.msk [vmem:[#allocation2 + $0x78] sm:$0xff] %vm612, %v4352
      %4389 = vst.msk [vmem:[#allocation2 + $0x80] sm:$0xff] %vm612, %v4353
      %4390 = vst.msk [vmem:[#allocation2 + $0x88] sm:$0xff] %vm612, %v4354
      %4391 = vst.msk [vmem:[#allocation2 + $0x90] sm:$0xff] %vm612, %v4355
      %4392 = vst.msk [vmem:[#allocation2 + $0x98] sm:$0xff] %vm612, %v4356
      %4393 = vst.msk [vmem:[#allocation2 + $0xa0] sm:$0xff] %vm612, %v4357
      %4394 = vst.msk [vmem:[#allocation2 + $0xa8] sm:$0xff] %vm612, %v4358
      %4395 = vst.msk [vmem:[#allocation2 + $0xb0] sm:$0xff] %vm612, %v4359
      %4396 = vst.msk [vmem:[#allocation2 + $0xb8] sm:$0xff] %vm612, %v4360
      %4397 = vst.msk [vmem:[#allocation2 + $0xc0] sm:$0xff] %vm612, %v4361
      %4398 = vst.msk [vmem:[#allocation2 + $0xc8] sm:$0xff] %vm612, %v4362
      %4399 = vst.msk [vmem:[#allocation2 + $0xd0] sm:$0xff] %vm612, %v4363
      %4400 = vst.msk [vmem:[#allocation2 + $0xd8] sm:$0xff] %vm612, %v4364
      %4401 = vst.msk [vmem:[#allocation2 + $0xe0] sm:$0xff] %vm612, %v4365
      %4402 = vst.msk [vmem:[#allocation2 + $0xe8] sm:$0xff] %vm612, %v4366
      %4403 = vst.msk [vmem:[#allocation2 + $0xf0] sm:$0xff] %vm612, %v4367
      %4404 = vst.msk [vmem:[#allocation2 + $0xf8] sm:$0xff] %vm612, %v4368
      %4405 = vst.msk [vmem:[#allocation2 + $0x100] sm:$0xff] %vm612, %v4369
      %4406 = vst.msk [vmem:[#allocation2 + $0x108] sm:$0xff] %vm612, %v4370
      %4407 = vst.msk [vmem:[#allocation2 + $0x110] sm:$0xff] %vm612, %v4371
      %4408 = vst.msk [vmem:[#allocation2 + $0x118] sm:$0xff] %vm612, %v4372
      %v4409 = vld [vmem:[#allocation2] sm:$0xff]
      %v4410 = vld [vmem:[#allocation2 + $0x8] sm:$0xff]
      %v4411 = vld [vmem:[#allocation2 + $0x10] sm:$0xff]
      %v4412 = vld [vmem:[#allocation2 + $0x18] sm:$0xff]
      %v4413 = vld [vmem:[#allocation2 + $0x20] sm:$0xff]
      %v4414 = vld [vmem:[#allocation2 + $0x28] sm:$0xff]
      %v4415 = vld [vmem:[#allocation2 + $0x30] sm:$0xff]
      %v4416 = vld [vmem:[#allocation2 + $0x38] sm:$0xff]
      %v4417 = vld [vmem:[#allocation2 + $0x40] sm:$0xff]
      %v4418 = vld [vmem:[#allocation2 + $0x48] sm:$0xff]
      %v4419 = vld [vmem:[#allocation2 + $0x50] sm:$0xff]
      %v4420 = vld [vmem:[#allocation2 + $0x58] sm:$0xff]
      %v4421 = vld [vmem:[#allocation2 + $0x60] sm:$0xff]
      %v4422 = vld [vmem:[#allocation2 + $0x68] sm:$0xff]
      %v4423 = vld [vmem:[#allocation2 + $0x70] sm:$0xff]
      %v4424 = vld [vmem:[#allocation2 + $0x78] sm:$0xff]
      %v4425 = vld [vmem:[#allocation2 + $0x80] sm:$0xff]
      %v4426 = vld [vmem:[#allocation2 + $0x88] sm:$0xff]
      %v4427 = vld [vmem:[#allocation2 + $0x90] sm:$0xff]
      %v4428 = vld [vmem:[#allocation2 + $0x98] sm:$0xff]
      %v4429 = vld [vmem:[#allocation2 + $0xa0] sm:$0xff]
      %v4430 = vld [vmem:[#allocation2 + $0xa8] sm:$0xff]
      %v4431 = vld [vmem:[#allocation2 + $0xb0] sm:$0xff]
      %v4432 = vld [vmem:[#allocation2 + $0xb8] sm:$0xff]
      %v4433 = vld [vmem:[#allocation2 + $0xc0] sm:$0xff]
      %v4434 = vld [vmem:[#allocation2 + $0xc8] sm:$0xff]
      %v4435 = vld [vmem:[#allocation2 + $0xd0] sm:$0xff]
      %v4436 = vld [vmem:[#allocation2 + $0xd8] sm:$0xff]
      %v4437 = vld [vmem:[#allocation2 + $0xe0] sm:$0xff]
      %v4438 = vld [vmem:[#allocation2 + $0xe8] sm:$0xff]
      %v4439 = vld [vmem:[#allocation2 + $0xf0] sm:$0xff]
      %v4440 = vld [vmem:[#allocation2 + $0xf8] sm:$0xff]
      %v4441 = vld [vmem:[#allocation2 + $0x100] sm:$0xff]
      %v4442 = vld [vmem:[#allocation2 + $0x108] sm:$0xff]
      %v4443 = vld [vmem:[#allocation2 + $0x110] sm:$0xff]
      %v4444 = vld [vmem:[#allocation2 + $0x118] sm:$0xff]
      %v4445 = vld [vmem:[%s2] sm:$0x1]
      %v4447 = vlaneseq
      %v4448 = vshrl.u32 %v4447, 7
      %v4449 = vsub.s32 0, %v4448
      %v4450 = vrot.slane %v4445, %v4449
      %v4452 = vadd.f32 %v4409, %v4450
      %v4453 = vadd.f32 %v4410, %v4450
      %v4454 = vadd.f32 %v4411, %v4450
      %v4455 = vadd.f32 %v4412, %v4450
      %v4456 = vadd.f32 %v4413, %v4450
      %v4457 = vadd.f32 %v4414, %v4450
      %v4458 = vadd.f32 %v4415, %v4450
      %v4459 = vadd.f32 %v4416, %v4450
      %v4460 = vadd.f32 %v4417, %v4450
      %v4461 = vadd.f32 %v4418, %v4450
      %v4462 = vadd.f32 %v4419, %v4450
      %v4463 = vadd.f32 %v4420, %v4450
      %v4464 = vadd.f32 %v4421, %v4450
      %v4465 = vadd.f32 %v4422, %v4450
      %v4466 = vadd.f32 %v4423, %v4450
      %v4467 = vadd.f32 %v4424, %v4450
      %v4468 = vadd.f32 %v4425, %v4450
      %v4469 = vadd.f32 %v4426, %v4450
      %v4470 = vadd.f32 %v4427, %v4450
      %v4471 = vadd.f32 %v4428, %v4450
      %v4472 = vadd.f32 %v4429, %v4450
      %v4473 = vadd.f32 %v4430, %v4450
      %v4474 = vadd.f32 %v4431, %v4450
      %v4475 = vadd.f32 %v4432, %v4450
      %v4476 = vadd.f32 %v4433, %v4450
      %v4477 = vadd.f32 %v4434, %v4450
      %v4478 = vadd.f32 %v4435, %v4450
      %v4479 = vadd.f32 %v4436, %v4450
      %v4480 = vadd.f32 %v4437, %v4450
      %v4481 = vadd.f32 %v4438, %v4450
      %v4482 = vadd.f32 %v4439, %v4450
      %v4483 = vadd.f32 %v4440, %v4450
      %v4484 = vadd.f32 %v4441, %v4450
      %v4485 = vadd.f32 %v4442, %v4450
      %v4486 = vadd.f32 %v4443, %v4450
      %v4487 = vadd.f32 %v4444, %v4450
      %v4488 = vmax.f32 %v4452, 0.0
      %v4489 = vmax.f32 %v4453, 0.0
      %v4490 = vmax.f32 %v4454, 0.0
      %v4491 = vmax.f32 %v4455, 0.0
      %v4492 = vmax.f32 %v4456, 0.0
      %v4493 = vmax.f32 %v4457, 0.0
      %v4494 = vmax.f32 %v4458, 0.0
      %v4495 = vmax.f32 %v4459, 0.0
      %v4496 = vmax.f32 %v4460, 0.0
      %v4497 = vmax.f32 %v4461, 0.0
      %v4498 = vmax.f32 %v4462, 0.0
      %v4499 = vmax.f32 %v4463, 0.0
      %v4500 = vmax.f32 %v4464, 0.0
      %v4501 = vmax.f32 %v4465, 0.0
      %v4502 = vmax.f32 %v4466, 0.0
      %v4503 = vmax.f32 %v4467, 0.0
      %v4504 = vmax.f32 %v4468, 0.0
      %v4505 = vmax.f32 %v4469, 0.0
      %v4506 = vmax.f32 %v4470, 0.0
      %v4507 = vmax.f32 %v4471, 0.0
      %v4508 = vmax.f32 %v4472, 0.0
      %v4509 = vmax.f32 %v4473, 0.0
      %v4510 = vmax.f32 %v4474, 0.0
      %v4511 = vmax.f32 %v4475, 0.0
      %v4512 = vmax.f32 %v4476, 0.0
      %v4513 = vmax.f32 %v4477, 0.0
      %v4514 = vmax.f32 %v4478, 0.0
      %v4515 = vmax.f32 %v4479, 0.0
      %v4516 = vmax.f32 %v4480, 0.0
      %v4517 = vmax.f32 %v4481, 0.0
      %v4518 = vmax.f32 %v4482, 0.0
      %v4519 = vmax.f32 %v4483, 0.0
      %v4520 = vmax.f32 %v4484, 0.0
      %v4521 = vmax.f32 %v4485, 0.0
      %v4522 = vmax.f32 %v4486, 0.0
      %v4523 = vmax.f32 %v4487, 0.0
      %v4524 = vpack.c.bf16 %v4489, %v4488
      %v4525 = vpack.c.bf16 %v4491, %v4490
      %v4526 = vpack.c.bf16 %v4493, %v4492
      %v4527 = vpack.c.bf16 %v4495, %v4494
      %v4528 = vpack.c.bf16 %v4497, %v4496
      %v4529 = vpack.c.bf16 %v4499, %v4498
      %v4530 = vpack.c.bf16 %v4501, %v4500
      %v4531 = vpack.c.bf16 %v4503, %v4502
      %v4532 = vpack.c.bf16 %v4505, %v4504
      %v4533 = vpack.c.bf16 %v4507, %v4506
      %v4534 = vpack.c.bf16 %v4509, %v4508
      %v4535 = vpack.c.bf16 %v4511, %v4510
      %v4536 = vpack.c.bf16 %v4513, %v4512
      %v4537 = vpack.c.bf16 %v4515, %v4514
      %v4538 = vpack.c.bf16 %v4517, %v4516
      %v4539 = vpack.c.bf16 %v4519, %v4518
      %v4540 = vpack.c.bf16 %v4521, %v4520
      %v4541 = vpack.c.bf16 %v4523, %v4522
      %v4560 = vunpack.c.l.b16 %v4524
      %v4561 = vunpack.c.h.b16 %v4524
      %v4562 = vunpack.c.l.b16 %v4525
      %v4563 = vunpack.c.h.b16 %v4525
      %v4564 = vunpack.c.l.b16 %v4526
      %v4565 = vunpack.c.h.b16 %v4526
      %v4566 = vunpack.c.l.b16 %v4527
      %v4567 = vunpack.c.h.b16 %v4527
      %v4568 = vunpack.c.l.b16 %v4528
      %v4569 = vunpack.c.h.b16 %v4528
      %v4570 = vunpack.c.l.b16 %v4529
      %v4571 = vunpack.c.h.b16 %v4529
      %v4572 = vunpack.c.l.b16 %v4530
      %v4573 = vunpack.c.h.b16 %v4530
      %v4574 = vunpack.c.l.b16 %v4531
      %v4575 = vunpack.c.h.b16 %v4531
      %v4576 = vunpack.c.l.b16 %v4532
      %v4577 = vunpack.c.h.b16 %v4532
      %v4578 = vunpack.c.l.b16 %v4533
      %v4579 = vunpack.c.h.b16 %v4533
      %v4580 = vunpack.c.l.b16 %v4534
      %v4581 = vunpack.c.h.b16 %v4534
      %v4582 = vunpack.c.l.b16 %v4535
      %v4583 = vunpack.c.h.b16 %v4535
      %v4584 = vunpack.c.l.b16 %v4536
      %v4585 = vunpack.c.h.b16 %v4536
      %v4586 = vunpack.c.l.b16 %v4537
      %v4587 = vunpack.c.h.b16 %v4537
      %v4588 = vunpack.c.l.b16 %v4538
      %v4589 = vunpack.c.h.b16 %v4538
      %v4590 = vunpack.c.l.b16 %v4539
      %v4591 = vunpack.c.h.b16 %v4539
      %v4592 = vunpack.c.l.b16 %v4540
      %v4593 = vunpack.c.h.b16 %v4540
      %v4594 = vunpack.c.l.b16 %v4541
      %v4595 = vunpack.c.h.b16 %v4541
      %v4596 = vpack.c.b16 %v4560, %v4560
      %v4597 = vpack.c.b16 %v4561, %v4561
      %v4598 = vpack.c.b16 %v4562, %v4562
      %v4599 = vpack.c.b16 %v4563, %v4563
      %v4600 = vpack.c.b16 %v4564, %v4564
      %v4601 = vpack.c.b16 %v4565, %v4565
      %v4602 = vpack.c.b16 %v4566, %v4566
      %v4603 = vpack.c.b16 %v4567, %v4567
      %v4604 = vpack.c.b16 %v4568, %v4568
      %v4605 = vpack.c.b16 %v4569, %v4569
      %v4606 = vpack.c.b16 %v4570, %v4570
      %v4607 = vpack.c.b16 %v4571, %v4571
      %v4608 = vpack.c.b16 %v4572, %v4572
      %v4609 = vpack.c.b16 %v4573, %v4573
      %v4610 = vpack.c.b16 %v4574, %v4574
      %v4611 = vpack.c.b16 %v4575, %v4575
      %v4612 = vpack.c.b16 %v4576, %v4576
      %v4613 = vpack.c.b16 %v4577, %v4577
      %v4614 = vpack.c.b16 %v4578, %v4578
      %v4615 = vpack.c.b16 %v4579, %v4579
      %v4616 = vpack.c.b16 %v4580, %v4580
      %v4617 = vpack.c.b16 %v4581, %v4581
      %v4618 = vpack.c.b16 %v4582, %v4582
      %v4619 = vpack.c.b16 %v4583, %v4583
      %v4620 = vpack.c.b16 %v4584, %v4584
      %v4621 = vpack.c.b16 %v4585, %v4585
      %v4622 = vpack.c.b16 %v4586, %v4586
      %v4623 = vpack.c.b16 %v4587, %v4587
      %v4624 = vpack.c.b16 %v4588, %v4588
      %v4625 = vpack.c.b16 %v4589, %v4589
      %v4626 = vpack.c.b16 %v4590, %v4590
      %v4627 = vpack.c.b16 %v4591, %v4591
      %v4628 = vpack.c.b16 %v4592, %v4592
      %v4629 = vpack.c.b16 %v4593, %v4593
      %v4630 = vpack.c.b16 %v4594, %v4594
      %v4631 = vpack.c.b16 %v4595, %v4595
      %vm4668 = vcmask 125952
      %4669 = vst.msk [vmem:[%s170] sm:$0xf] %vm4668, %v4596
      %4670 = vst.msk [vmem:[%s170 + $0x4] sm:$0xf] %vm4668, %v4597
      %4671 = vst.msk [vmem:[%s170 + $0x8] sm:$0xf] %vm4668, %v4598
      %4672 = vst.msk [vmem:[%s170 + $0xc] sm:$0xf] %vm4668, %v4599
      %4673 = vst.msk [vmem:[%s170 + $0x10] sm:$0xf] %vm4668, %v4600
      %4674 = vst.msk [vmem:[%s170 + $0x14] sm:$0xf] %vm4668, %v4601
      %4675 = vst.msk [vmem:[%s170 + $0x18] sm:$0xf] %vm4668, %v4602
      %4676 = vst.msk [vmem:[%s170 + $0x1c] sm:$0xf] %vm4668, %v4603
      %4677 = vst.msk [vmem:[%s170 + $0x20] sm:$0xf] %vm4668, %v4604
      %4678 = vst.msk [vmem:[%s170 + $0x24] sm:$0xf] %vm4668, %v4605
      %4679 = vst.msk [vmem:[%s170 + $0x28] sm:$0xf] %vm4668, %v4606
      %4680 = vst.msk [vmem:[%s170 + $0x2c] sm:$0xf] %vm4668, %v4607
      %4681 = vst.msk [vmem:[%s170 + $0x30] sm:$0xf] %vm4668, %v4608
      %4682 = vst.msk [vmem:[%s170 + $0x34] sm:$0xf] %vm4668, %v4609
      %4683 = vst.msk [vmem:[%s170 + $0x38] sm:$0xf] %vm4668, %v4610
      %4684 = vst.msk [vmem:[%s170 + $0x3c] sm:$0xf] %vm4668, %v4611
      %4685 = vst.msk [vmem:[%s170 + $0x40] sm:$0xf] %vm4668, %v4612
      %4686 = vst.msk [vmem:[%s170 + $0x44] sm:$0xf] %vm4668, %v4613
      %4687 = vst.msk [vmem:[%s170 + $0x48] sm:$0xf] %vm4668, %v4614
      %4688 = vst.msk [vmem:[%s170 + $0x4c] sm:$0xf] %vm4668, %v4615
      %4689 = vst.msk [vmem:[%s170 + $0x50] sm:$0xf] %vm4668, %v4616
      %4690 = vst.msk [vmem:[%s170 + $0x54] sm:$0xf] %vm4668, %v4617
      %4691 = vst.msk [vmem:[%s170 + $0x58] sm:$0xf] %vm4668, %v4618
      %4692 = vst.msk [vmem:[%s170 + $0x5c] sm:$0xf] %vm4668, %v4619
      %4693 = vst.msk [vmem:[%s170 + $0x60] sm:$0xf] %vm4668, %v4620
      %4694 = vst.msk [vmem:[%s170 + $0x64] sm:$0xf] %vm4668, %v4621
      %4695 = vst.msk [vmem:[%s170 + $0x68] sm:$0xf] %vm4668, %v4622
      %4696 = vst.msk [vmem:[%s170 + $0x6c] sm:$0xf] %vm4668, %v4623
      %4697 = vst.msk [vmem:[%s170 + $0x70] sm:$0xf] %vm4668, %v4624
      %4698 = vst.msk [vmem:[%s170 + $0x74] sm:$0xf] %vm4668, %v4625
      %4699 = vst.msk [vmem:[%s170 + $0x78] sm:$0xf] %vm4668, %v4626
      %4700 = vst.msk [vmem:[%s170 + $0x7c] sm:$0xf] %vm4668, %v4627
      %4701 = vst.msk [vmem:[%s170 + $0x80] sm:$0xf] %vm4668, %v4628
      %4702 = vst.msk [vmem:[%s170 + $0x84] sm:$0xf] %vm4668, %v4629
      %4703 = vst.msk [vmem:[%s170 + $0x88] sm:$0xf] %vm4668, %v4630
      %4704 = vst.msk [vmem:[%s170 + $0x8c] sm:$0xf] %vm4668, %v4631
      %p4705 = scmp.lt.s32.totalorder %s14, 1
      %s4706 = scalar_select %p4705, %s14, 1
      %s4707 = smul.addr %s4706, 36
      %s4708 = smul.addr %s4707, 4
      %s4709 = scalar_lea.vmem %s3, %s4708
      // Predicated region
      $region33: #{tpu_custom_call.1} parent=31 // pred_check
        %p4710 = pneg %p100
      $region34: #{tpu_custom_call.1} parent=31 // pred_check_branch
        %4712 = sbr.rel (%p4710) target = $region36
      $region35: #{tpu_custom_call.1} parent=31 // pred_region
        _
      $region36: #{tpu_custom_call.1} parent=31 // pred_fallthru
        _
    $region32: #{tpu_custom_call.1} parent=5 // pred_fallthru
      _
    %p4713 = scmp.le.s32.totalorder 2, %s9
    // Predicated region
    $region37: #{tpu_custom_call.1} parent=5 // pred_check
      %p4714 = pneg %p4713
    $region38: #{tpu_custom_call.1} parent=5 // pred_check_branch
      %4716 = sbr.rel (%p4714) target = $region40
    $region39: #{tpu_custom_call.1} parent=5 // pred_region
      %s4717 = ssub.s32 %s9, 2
      // Predicated region
      $region41: #{tpu_custom_call.1} parent=39 // pred_check
        %p4718 = pneg %p106
      $region42: #{tpu_custom_call.1} parent=39 // pred_check_branch
        %4720 = sbr.rel (%p4718) target = $region44
      $region43: #{tpu_custom_call.1} parent=39 // pred_region
        %p4721 = scmp.lt.s32.totalorder %s15, 1
        %s4722 = scalar_select %p4721, %s15, 1
        %s4723 = smul.addr %s4722, 36
        %s4724 = smul.addr %s4723, 4
        %s4725 = scalar_lea.vmem %s3, %s4724
      $region44: #{tpu_custom_call.1} parent=39 // pred_fallthru
        _
    $region40: #{tpu_custom_call.1} parent=5 // pred_fallthru
      _
  $region6: #{tpu_custom_call.1} parent=0 // loop_footer
    %s13 = sadd.s32 1, %s9
  $region7: #{tpu_custom_call.1} parent=0 // loop_footer_branch
    %8 = sbr.rel target = $region3
  $region8: #{tpu_custom_call.1} parent=0 // loop_exit
    _

</llo_original>
